<compile_context>
chip_gen: v5e
topology: v5e:2x2
jax: 0.10.0
libtpu: 0.0.40
codegen_flags: <defaults>
</compile_context>

<pallas_src>
import jax
import jax.numpy as jnp
import numpy as np
from jax.experimental import pallas as pl
from jax.experimental.pallas import tpu as pltpu

# ----------------------------- configuration -------------------------------
DIM = 32                     # dim
H = W = 8                    # input_resolution
NUM_HEADS = 4
WINDOW = 4                   # window_size
SHIFT = 2                    # shift_size (SW-MSA path, uses attn mask)
MLP_RATIO = 4.0
B = 2

HEAD_DIM = DIM // NUM_HEADS
N = WINDOW * WINDOW                      # tokens per window
NW = (H // WINDOW) * (W // WINDOW)       # windows per image
HIDDEN = int(DIM * MLP_RATIO)
SCALE = HEAD_DIM ** -0.5
EPS = 1e-6


# ----------------------------- helpers (glue) -------------------------------
def window_partition(x, ws):
    b, h, w, c = x.shape
    x = x.reshape(b, h // ws, ws, w // ws, ws, c)
    return x.transpose(0, 1, 3, 2, 4, 5).reshape(-1, ws, ws, c)


def window_reverse(windows, ws, h, w):
    b = windows.shape[0] // (h * w // ws // ws)
    x = windows.reshape(b, h // ws, w // ws, ws, ws, -1)
    return x.transpose(0, 1, 3, 2, 4, 5).reshape(b, h, w, -1)


def relative_position_index(ws):
    coords = np.stack(np.meshgrid(np.arange(ws), np.arange(ws), indexing="ij"))
    cf = coords.reshape(2, -1)
    rel = cf[:, :, None] - cf[:, None, :]
    rel = rel.transpose(1, 2, 0).copy()
    rel[:, :, 0] += ws - 1
    rel[:, :, 1] += ws - 1
    rel[:, :, 0] *= 2 * ws - 1
    return rel.sum(-1)  # (N, N) int


def build_attn_mask(h, w, ws, shift):
    if shift == 0:
        return np.zeros((NW, ws * ws, ws * ws), np.float32)
    img = np.zeros((1, h, w, 1), np.float32)
    cnt = 0
    for hs in (slice(0, -ws), slice(-ws, -shift), slice(-shift, None)):
        for wss in (slice(0, -ws), slice(-ws, -shift), slice(-shift, None)):
            img[:, hs, wss, :] = cnt
            cnt += 1
    mw = window_partition(img, ws).reshape(-1, ws * ws)
    am = mw[:, None, :] - mw[:, :, None]
    return np.where(am != 0, -100.0, 0.0).astype(np.float32)  # (nW, N, N)


def _erf(x):
    # Abramowitz–Stegun 7.1.26 rational approximation (|err| < 1.5e-7 ~ f32 eps)
    # -> matches PyTorch's exact (erf-based) nn.GELU at float32 precision.
    a1, a2, a3, a4, a5 = 0.254829592, -0.284496736, 1.421413741, -1.453152027, 1.061405429
    p = 0.3275911
    ax = jnp.abs(x)
    t = 1.0 / (1.0 + p * ax)
    poly = ((((a5 * t + a4) * t + a3) * t + a2) * t + a1) * t
    y = 1.0 - poly * jnp.exp(-ax * ax)
    return jnp.where(x >= 0, y, -y)


def _gelu_exact(x):
    return 0.5 * x * (1.0 + _erf(x * (1.0 / np.sqrt(2.0))))


# ------------------------------ Pallas kernel -------------------------------
def _swin_block_kernel(x_ref, g1_ref, b1_ref, wqkv_ref, bqkv_ref, bias_ref,
                       wproj_ref, bproj_ref, g2_ref, b2_ref,
                       w1_ref, bb1_ref, w2_ref, bb2_ref, o_ref):
    """All B*nW windows (tokens already in window-permuted order):
    norm1 + QKV + windowed attention + proj + residual + norm2 + MLP + residual.
    """
    M = x_ref.shape[0]                   # B * NW * N tokens
    BW = M // N                          # number of windows in this call
    x = x_ref[...]                       # (M, C)

    # ---- LayerNorm 1 (eps inside sqrt, biased variance: PyTorch semantics) --
    mu = jnp.mean(x, axis=-1, keepdims=True)
    xc = x - mu
    var = jnp.mean(xc * xc, axis=-1, keepdims=True)
    xn = xc * jax.lax.rsqrt(var + EPS) * g1_ref[0] + b1_ref[0]

    # ---- QKV projection for all tokens at once ------------------------------
    # (attention scale is already folded into the Q columns of wqkv/bqkv)
    qkv = jnp.dot(xn, wqkv_ref[...], preferred_element_type=jnp.float32) + bqkv_ref[0]
    qkv3 = qkv.reshape(BW, N, 3 * DIM)                     # windows on a batch dim

    # ---- window attention, batched over all BW windows ----------------------
    # NOTE: the literal `matmul2`/rearrange lines in the reference module are
    # shape-inconsistent as written; this implements the documented intent:
    # (attn @ v).transpose(1,2).reshape(B_, N, C) followed by proj.
    # Each head's context is folded directly into its 8-row slice of W_proj,
    # so no lane-axis head concatenation is needed.
    attn_acc = jnp.zeros((M, DIM), jnp.float32)
    for h in range(NUM_HEADS):                             # static unroll (4 heads)
        lo = h * HEAD_DIM
        qh = qkv3[:, :, lo:lo + HEAD_DIM]                  # (BW, N, hd)
        kh = qkv3[:, :, DIM + lo:DIM + lo + HEAD_DIM]
        vh = qkv3[:, :, 2 * DIM + lo:2 * DIM + lo + HEAD_DIM]
        s = jnp.einsum("wqd,wkd->wqk", qh, kh,
                       preferred_element_type=jnp.float32)  # (BW, N, N)
        s = s + bias_ref[h]                                 # rel-pos bias + shift mask
        s = s - jnp.max(s, axis=-1, keepdims=True)
        e = jnp.exp(s)
        p = e / jnp.sum(e, axis=-1, keepdims=True)          # exact softmax (f32 check)
        ctx_h = jnp.einsum("wqk,wkd->wqd", p, vh,
                           preferred_element_type=jnp.float32)       # (BW, N, hd)
        attn_acc = attn_acc + jnp.dot(ctx_h.reshape(M, HEAD_DIM),
                                      wproj_ref[lo:lo + HEAD_DIM, :],
                                      preferred_element_type=jnp.float32)
    y = x + attn_acc + bproj_ref[0]                         # residual 1 (drop_path=Identity)

    # ---- LayerNorm 2 + MLP + residual 2 -------------------------------------
    mu2 = jnp.mean(y, axis=-1, keepdims=True)
    yc = y - mu2
    var2 = jnp.mean(yc * yc, axis=-1, keepdims=True)
    yn = yc * jax.lax.rsqrt(var2 + EPS) * g2_ref[0] + b2_ref[0]

    hmid = jnp.dot(yn, w1_ref[...], preferred_element_type=jnp.float32) + bb1_ref[0]
    hmid = _gelu_exact(hmid)
    m = jnp.dot(hmid, w2_ref[...], preferred_element_type=jnp.float32) + bb2_ref[0]
    o_ref[...] = y + m


# ------------------------------- forward pass -------------------------------
def swin_block_forward(x, params, rel_bias, attn_mask):
    Bb, L, C = x.shape
    assert L == H * W and C == DIM

    # Token permutation (roll + window partition) — pure glue. Since every op
    # in the block is per-token or per-window, the residual/MLP run in the
    # permuted order inside the kernel and the permutation is undone once at
    # the end.
    xs = x.reshape(Bb, H, W, C)
    if SHIFT > 0:
        xs = jnp.roll(xs, shift=(-SHIFT, -SHIFT), axis=(1, 2))
    xw = window_partition(xs, WINDOW).reshape(Bb * NW * N, C)        # (B*nW*N, C)

    # Fold the attention scale into the Q columns of the QKV projection.
    qscale = jnp.concatenate([jnp.full((DIM,), SCALE, jnp.float32),
                              jnp.ones((2 * DIM,), jnp.float32)])
    wqkv = params["wqkv"] * qscale[None, :]
    bqkv = params["bqkv"] * qscale[None, :]

    # Pre-summed relative-position bias + shifted-window mask, tiled over the
    # batch so in-kernel window index w maps directly to bias[:, w]:
    bias = rel_bias[:, None, :, :] + attn_mask[None, :, :, :]        # (nh, nW, N, N)
    bias = jnp.broadcast_to(bias[:, None], (NUM_HEADS, Bb, NW, N, N))
    bias = bias.reshape(NUM_HEADS, Bb * NW, N, N)

    vmem = pltpu.MemorySpace.VMEM
    out = pl.pallas_call(
        _swin_block_kernel,
        out_shape=jax.ShapeDtypeStruct((Bb * NW * N, C), jnp.float32),
        in_specs=[pl.BlockSpec(memory_space=vmem)] * 14,   # whole arrays resident in VMEM
        out_specs=pl.BlockSpec(memory_space=vmem),
    )(xw, params["g1"], params["b1"], wqkv, bqkv, bias,
      params["wproj"], params["bproj"], params["g2"], params["b2"],
      params["w1"], params["bb1"], params["w2"], params["bb2"])

    # Inverse permutation: window reverse + roll back.
    aw = out.reshape(Bb * NW, WINDOW, WINDOW, C)
    xs = window_reverse(aw, WINDOW, H, W)
    if SHIFT > 0:
        xs = jnp.roll(xs, shift=(SHIFT, SHIFT), axis=(1, 2))
    return xs.reshape(Bb, L, C)


# ---------------------------- pure-JAX reference ----------------------------
def _layernorm(x, g, b):
    mu = x.mean(-1, keepdims=True)
    var = ((x - mu) ** 2).mean(-1, keepdims=True)
    return (x - mu) / jnp.sqrt(var + EPS) * g + b


def reference_forward(x, params, rel_bias, attn_mask):
    Bb, L, C = x.shape
    shortcut = x
    xs = _layernorm(x, params["g1"][0], params["b1"][0]).reshape(Bb, H, W, C)
    if SHIFT > 0:
        xs = jnp.roll(xs, shift=(-SHIFT, -SHIFT), axis=(1, 2))
    xw = window_partition(xs, WINDOW).reshape(-1, N, C)
    B_ = xw.shape[0]

    qkv = xw @ params["wqkv"] + params["bqkv"][0]
    qkv = qkv.reshape(B_, N, 3, NUM_HEADS, HEAD_DIM).transpose(2, 0, 3, 1, 4)
    q, k, v = qkv[0] * SCALE, qkv[1], qkv[2]
    attn = jnp.einsum("bhid,bhjd->bhij", q, k)
    attn = attn + rel_bias[None]
    attn = attn.reshape(B_ // NW, NW, NUM_HEADS, N, N) + attn_mask[None, :, None]
    attn = attn.reshape(B_, NUM_HEADS, N, N)
    attn = jax.nn.softmax(attn, axis=-1)
    ctx = jnp.einsum("bhij,bhjd->bhid", attn, v)
    ctx = ctx.transpose(0, 2, 1, 3).reshape(B_, N, C)
    ctx = ctx @ params["wproj"] + params["bproj"][0]

    xs = window_reverse(ctx.reshape(-1, WINDOW, WINDOW, C), WINDOW, H, W)
    if SHIFT > 0:
        xs = jnp.roll(xs, shift=(SHIFT, SHIFT), axis=(1, 2))
    y = shortcut + xs.reshape(Bb, L, C)

    yn = _layernorm(y, params["g2"][0], params["b2"][0])
    h = jax.nn.gelu(yn @ params["w1"] + params["bb1"][0], approximate=False)
    return y + h @ params["w2"] + params["bb2"][0]


# ---------------------------------- main -------------------------------------
def init_params(key):
    ks = jax.random.split(key, 9)

    def nrm(k, shape, std=0.02):
        return (std * jax.random.normal(k, shape)).astype(jnp.float32)

    return dict(
        g1=jnp.ones((1, DIM), jnp.float32), b1=jnp.zeros((1, DIM), jnp.float32),
        wqkv=nrm(ks[0], (DIM, 3 * DIM)), bqkv=nrm(ks[1], (1, 3 * DIM)),
        rel_table=nrm(ks[2], ((2 * WINDOW - 1) ** 2, NUM_HEADS)),
        wproj=nrm(ks[3], (DIM, DIM)), bproj=nrm(ks[4], (1, DIM)),
        g2=jnp.ones((1, DIM), jnp.float32), b2=jnp.zeros((1, DIM), jnp.float32),
        w1=nrm(ks[5], (DIM, HIDDEN)), bb1=nrm(ks[6], (1, HIDDEN)),
        w2=nrm(ks[7], (HIDDEN, DIM)), bb2=nrm(ks[8], (1, DIM)),
    )


if __name__ == "__main__":
    key = jax.random.PRNGKey(0)
    kx, kp = jax.random.split(key)
    x = jax.random.normal(kx, (B, H * W, DIM), dtype=jnp.float32)
    params = init_params(kp)

    # Relative position bias (gather is glue) and shifted-window mask.
    rpi = relative_position_index(WINDOW)                                  # (N, N)
    rel_bias = params["rel_table"][jnp.asarray(rpi.reshape(-1))]
    rel_bias = rel_bias.reshape(N, N, NUM_HEADS).transpose(2, 0, 1)        # (nh, N, N)
    attn_mask = jnp.asarray(build_attn_mask(H, W, WINDOW, SHIFT))          # (nW, N, N)

    fwd = jax.jit(swin_block_forward)
    out = jax.block_until_ready(fwd(x, params, rel_bias, attn_mask))

    ref = reference_forward(x, params, rel_bias, attn_mask)
    np.testing.assert_allclose(np.asarray(out), np.asarray(ref), rtol=2e-4, atol=2e-4)

    print("KERNEL_OK")
</pallas_src>

<mosaic_0001>
module attributes {stable_mosaic.version = 11 : i64} {
  func.func @_swin_block_kernel(%arg0: memref<128x32xf32, #tpu.memory_space<vmem>>, %arg1: memref<1x32xf32, #tpu.memory_space<vmem>>, %arg2: memref<1x32xf32, #tpu.memory_space<vmem>>, %arg3: memref<32x96xf32, #tpu.memory_space<vmem>>, %arg4: memref<1x96xf32, #tpu.memory_space<vmem>>, %arg5: memref<4x8x16x16xf32, #tpu.memory_space<vmem>>, %arg6: memref<32x32xf32, #tpu.memory_space<vmem>>, %arg7: memref<1x32xf32, #tpu.memory_space<vmem>>, %arg8: memref<1x32xf32, #tpu.memory_space<vmem>>, %arg9: memref<1x32xf32, #tpu.memory_space<vmem>>, %arg10: memref<32x128xf32, #tpu.memory_space<vmem>>, %arg11: memref<1x128xf32, #tpu.memory_space<vmem>>, %arg12: memref<128x32xf32, #tpu.memory_space<vmem>>, %arg13: memref<1x32xf32, #tpu.memory_space<vmem>>, %arg14: memref<128x32xf32, #tpu.memory_space<vmem>>) attributes {dimension_semantics = [], scalar_prefetch = 0 : i64, scratch_operands = 0 : i64, tpu.core_type = #tpu.core_type<tc>} {
    %c0 = arith.constant 0 : index
    %c0_0 = arith.constant 0 : index
    %0 = vector.load %arg0[%c0, %c0_0] : memref<128x32xf32, #tpu.memory_space<vmem>>, vector<128x32xf32>
    %cst = arith.constant dense<0.000000e+00> : vector<128xf32>
    %1 = vector.multi_reduction <add>, %0, %cst [1] : vector<128x32xf32> to vector<128xf32>
    %2 = vector.shape_cast %1 : vector<128xf32> to vector<128x1xf32>
    %cst_1 = arith.constant 3.200000e+01 : f32
    %3 = vector.broadcast %cst_1 : f32 to vector<128x1xf32>
    %4 = arith.divf %2, %3 : vector<128x1xf32>
    %5 = vector.broadcast %4 : vector<128x1xf32> to vector<128x32xf32>
    %6 = arith.subf %0, %5 : vector<128x32xf32>
    %7 = arith.mulf %6, %6 : vector<128x32xf32>
    %cst_2 = arith.constant dense<0.000000e+00> : vector<128xf32>
    %8 = vector.multi_reduction <add>, %7, %cst_2 [1] : vector<128x32xf32> to vector<128xf32>
    %9 = vector.shape_cast %8 : vector<128xf32> to vector<128x1xf32>
    %cst_3 = arith.constant 3.200000e+01 : f32
    %10 = vector.broadcast %cst_3 : f32 to vector<128x1xf32>
    %11 = arith.divf %9, %10 : vector<128x1xf32>
    %cst_4 = arith.constant 9.99999997E-7 : f32
    %12 = vector.broadcast %cst_4 : f32 to vector<128x1xf32>
    %13 = arith.addf %11, %12 : vector<128x1xf32>
    %14 = math.rsqrt %13 : vector<128x1xf32>
    %15 = vector.broadcast %14 : vector<128x1xf32> to vector<128x32xf32>
    %16 = arith.mulf %6, %15 : vector<128x32xf32>
    %c0_5 = arith.constant 0 : index
    %c0_6 = arith.constant 0 : index
    %17 = vector.load %arg1[%c0_5, %c0_6] : memref<1x32xf32, #tpu.memory_space<vmem>>, vector<1x32xf32>
    %18 = vector.shape_cast %17 : vector<1x32xf32> to vector<32xf32>
    %19 = vector.shape_cast %18 : vector<32xf32> to vector<1x32xf32>
    %20 = vector.broadcast %19 : vector<1x32xf32> to vector<128x32xf32>
    %21 = arith.mulf %16, %20 : vector<128x32xf32>
    %c0_7 = arith.constant 0 : index
    %c0_8 = arith.constant 0 : index
    %22 = vector.load %arg2[%c0_7, %c0_8] : memref<1x32xf32, #tpu.memory_space<vmem>>, vector<1x32xf32>
    %23 = vector.shape_cast %22 : vector<1x32xf32> to vector<32xf32>
    %24 = vector.shape_cast %23 : vector<32xf32> to vector<1x32xf32>
    %25 = vector.broadcast %24 : vector<1x32xf32> to vector<128x32xf32>
    %26 = arith.addf %21, %25 : vector<128x32xf32>
    %c0_9 = arith.constant 0 : index
    %c0_10 = arith.constant 0 : index
    %27 = vector.load %arg3[%c0_9, %c0_10] : memref<32x96xf32, #tpu.memory_space<vmem>>, vector<32x96xf32>
    %cst_11 = arith.constant dense<0.000000e+00> : vector<128x96xf32>
    %28 = tpu.matmul %26, %27, %cst_11 {dimension_numbers = #tpu.dot_dimension_numbers<[1], [0], [0], [1], [0, 0, 1, 1], [], []>} : vector<128x32xf32>, vector<32x96xf32>, vector<128x96xf32> -> vector<128x96xf32>
    %c0_12 = arith.constant 0 : index
    %c0_13 = arith.constant 0 : index
    %29 = vector.load %arg4[%c0_12, %c0_13] : memref<1x96xf32, #tpu.memory_space<vmem>>, vector<1x96xf32>
    %30 = vector.shape_cast %29 : vector<1x96xf32> to vector<96xf32>
    %31 = vector.shape_cast %30 : vector<96xf32> to vector<1x96xf32>
    %32 = vector.broadcast %31 : vector<1x96xf32> to vector<128x96xf32>
    %33 = arith.addf %28, %32 : vector<128x96xf32>
    %34 = vector.shape_cast %33 : vector<128x96xf32> to vector<8x16x96xf32>
    %cst_14 = arith.constant 0.000000e+00 : f32
    %35 = vector.broadcast %cst_14 : f32 to vector<128x32xf32>
    %36 = vector.extract_strided_slice %34 {offsets = [0, 0, 0], sizes = [8, 16, 8], strides = [1, 1, 1]} : vector<8x16x96xf32> to vector<8x16x8xf32>
    %37 = vector.extract_strided_slice %34 {offsets = [0, 0, 32], sizes = [8, 16, 8], strides = [1, 1, 1]} : vector<8x16x96xf32> to vector<8x16x8xf32>
    %38 = vector.extract_strided_slice %34 {offsets = [0, 0, 64], sizes = [8, 16, 8], strides = [1, 1, 1]} : vector<8x16x96xf32> to vector<8x16x8xf32>
    "tpu.trace_start"() <{level = 10 : i32, message = "wqd,wkd->wqk"}> : () -> ()
    %cst_15 = arith.constant dense<0.000000e+00> : vector<8x16x16xf32>
    %39 = tpu.matmul %36, %37, %cst_15 {dimension_numbers = #tpu.dot_dimension_numbers<[2], [2], [1], [1], [0, 0, 0, 1, 1, 1], [0], [0]>} : vector<8x16x8xf32>, vector<8x16x8xf32>, vector<8x16x16xf32> -> vector<8x16x16xf32>
    "tpu.trace_stop"() : () -> ()
    %c0_16 = arith.constant 0 : index
    %c0_17 = arith.constant 0 : index
    %c0_18 = arith.constant 0 : index
    %c0_19 = arith.constant 0 : index
    %40 = vector.load %arg5[%c0_16, %c0_17, %c0_18, %c0_19] : memref<4x8x16x16xf32, #tpu.memory_space<vmem>>, vector<1x8x16x16xf32>
    %41 = vector.shape_cast %40 : vector<1x8x16x16xf32> to vector<8x16x16xf32>
    %42 = arith.addf %39, %41 : vector<8x16x16xf32>
    %cst_20 = arith.constant dense<0xFF800000> : vector<8x16xf32>
    %43 = vector.multi_reduction <maximumf>, %42, %cst_20 [2] : vector<8x16x16xf32> to vector<8x16xf32>
    %44 = vector.shape_cast %43 : vector<8x16xf32> to vector<8x16x1xf32>
    %45 = vector.broadcast %44 : vector<8x16x1xf32> to vector<8x16x16xf32>
    %46 = arith.subf %42, %45 : vector<8x16x16xf32>
    %47 = math.exp %46 : vector<8x16x16xf32>
    %cst_21 = arith.constant dense<0.000000e+00> : vector<8x16xf32>
    %48 = vector.multi_reduction <add>, %47, %cst_21 [2] : vector<8x16x16xf32> to vector<8x16xf32>
    %49 = vector.shape_cast %48 : vector<8x16xf32> to vector<8x16x1xf32>
    %50 = vector.broadcast %49 : vector<8x16x1xf32> to vector<8x16x16xf32>
    %51 = arith.divf %47, %50 : vector<8x16x16xf32>
    "tpu.trace_start"() <{level = 10 : i32, message = "wqk,wkd->wqd"}> : () -> ()
    %cst_22 = arith.constant dense<0.000000e+00> : vector<8x16x8xf32>
    %52 = tpu.matmul %51, %38, %cst_22 {dimension_numbers = #tpu.dot_dimension_numbers<[2], [1], [1], [2], [0, 0, 0, 1, 1, 2], [0], [0]>} : vector<8x16x16xf32>, vector<8x16x8xf32>, vector<8x16x8xf32> -> vector<8x16x8xf32>
    "tpu.trace_stop"() : () -> ()
    %53 = vector.shape_cast %52 : vector<8x16x8xf32> to vector<128x8xf32>
    %c0_23 = arith.constant 0 : index
    %c0_24 = arith.constant 0 : index
    %54 = vector.load %arg6[%c0_23, %c0_24] : memref<32x32xf32, #tpu.memory_space<vmem>>, vector<8x32xf32>
    %cst_25 = arith.constant dense<0.000000e+00> : vector<128x32xf32>
    %55 = tpu.matmul %53, %54, %cst_25 {dimension_numbers = #tpu.dot_dimension_numbers<[1], [0], [0], [1], [0, 0, 1, 1], [], []>} : vector<128x8xf32>, vector<8x32xf32>, vector<128x32xf32> -> vector<128x32xf32>
    %56 = arith.addf %35, %55 : vector<128x32xf32>
    %57 = vector.extract_strided_slice %34 {offsets = [0, 0, 8], sizes = [8, 16, 8], strides = [1, 1, 1]} : vector<8x16x96xf32> to vector<8x16x8xf32>
    %58 = vector.extract_strided_slice %34 {offsets = [0, 0, 40], sizes = [8, 16, 8], strides = [1, 1, 1]} : vector<8x16x96xf32> to vector<8x16x8xf32>
    %59 = vector.extract_strided_slice %34 {offsets = [0, 0, 72], sizes = [8, 16, 8], strides = [1, 1, 1]} : vector<8x16x96xf32> to vector<8x16x8xf32>
    "tpu.trace_start"() <{level = 10 : i32, message = "wqd,wkd->wqk"}> : () -> ()
    %cst_26 = arith.constant dense<0.000000e+00> : vector<8x16x16xf32>
    %60 = tpu.matmul %57, %58, %cst_26 {dimension_numbers = #tpu.dot_dimension_numbers<[2], [2], [1], [1], [0, 0, 0, 1, 1, 1], [0], [0]>} : vector<8x16x8xf32>, vector<8x16x8xf32>, vector<8x16x16xf32> -> vector<8x16x16xf32>
    "tpu.trace_stop"() : () -> ()
    %c1 = arith.constant 1 : index
    %c0_27 = arith.constant 0 : index
    %c0_28 = arith.constant 0 : index
    %c0_29 = arith.constant 0 : index
    %61 = vector.load %arg5[%c1, %c0_27, %c0_28, %c0_29] : memref<4x8x16x16xf32, #tpu.memory_space<vmem>>, vector<1x8x16x16xf32>
    %62 = vector.shape_cast %61 : vector<1x8x16x16xf32> to vector<8x16x16xf32>
    %63 = arith.addf %60, %62 : vector<8x16x16xf32>
    %cst_30 = arith.constant dense<0xFF800000> : vector<8x16xf32>
    %64 = vector.multi_reduction <maximumf>, %63, %cst_30 [2] : vector<8x16x16xf32> to vector<8x16xf32>
    %65 = vector.shape_cast %64 : vector<8x16xf32> to vector<8x16x1xf32>
    %66 = vector.broadcast %65 : vector<8x16x1xf32> to vector<8x16x16xf32>
    %67 = arith.subf %63, %66 : vector<8x16x16xf32>
    %68 = math.exp %67 : vector<8x16x16xf32>
    %cst_31 = arith.constant dense<0.000000e+00> : vector<8x16xf32>
    %69 = vector.multi_reduction <add>, %68, %cst_31 [2] : vector<8x16x16xf32> to vector<8x16xf32>
    %70 = vector.shape_cast %69 : vector<8x16xf32> to vector<8x16x1xf32>
    %71 = vector.broadcast %70 : vector<8x16x1xf32> to vector<8x16x16xf32>
    %72 = arith.divf %68, %71 : vector<8x16x16xf32>
    "tpu.trace_start"() <{level = 10 : i32, message = "wqk,wkd->wqd"}> : () -> ()
    %cst_32 = arith.constant dense<0.000000e+00> : vector<8x16x8xf32>
    %73 = tpu.matmul %72, %59, %cst_32 {dimension_numbers = #tpu.dot_dimension_numbers<[2], [1], [1], [2], [0, 0, 0, 1, 1, 2], [0], [0]>} : vector<8x16x16xf32>, vector<8x16x8xf32>, vector<8x16x8xf32> -> vector<8x16x8xf32>
    "tpu.trace_stop"() : () -> ()
    %74 = vector.shape_cast %73 : vector<8x16x8xf32> to vector<128x8xf32>
    %c8 = arith.constant 8 : index
    %c0_33 = arith.constant 0 : index
    %75 = vector.load %arg6[%c8, %c0_33] : memref<32x32xf32, #tpu.memory_space<vmem>>, vector<8x32xf32>
    %cst_34 = arith.constant dense<0.000000e+00> : vector<128x32xf32>
    %76 = tpu.matmul %74, %75, %cst_34 {dimension_numbers = #tpu.dot_dimension_numbers<[1], [0], [0], [1], [0, 0, 1, 1], [], []>} : vector<128x8xf32>, vector<8x32xf32>, vector<128x32xf32> -> vector<128x32xf32>
    %77 = arith.addf %56, %76 : vector<128x32xf32>
    %78 = vector.extract_strided_slice %34 {offsets = [0, 0, 16], sizes = [8, 16, 8], strides = [1, 1, 1]} : vector<8x16x96xf32> to vector<8x16x8xf32>
    %79 = vector.extract_strided_slice %34 {offsets = [0, 0, 48], sizes = [8, 16, 8], strides = [1, 1, 1]} : vector<8x16x96xf32> to vector<8x16x8xf32>
    %80 = vector.extract_strided_slice %34 {offsets = [0, 0, 80], sizes = [8, 16, 8], strides = [1, 1, 1]} : vector<8x16x96xf32> to vector<8x16x8xf32>
    "tpu.trace_start"() <{level = 10 : i32, message = "wqd,wkd->wqk"}> : () -> ()
    %cst_35 = arith.constant dense<0.000000e+00> : vector<8x16x16xf32>
    %81 = tpu.matmul %78, %79, %cst_35 {dimension_numbers = #tpu.dot_dimension_numbers<[2], [2], [1], [1], [0, 0, 0, 1, 1, 1], [0], [0]>} : vector<8x16x8xf32>, vector<8x16x8xf32>, vector<8x16x16xf32> -> vector<8x16x16xf32>
    "tpu.trace_stop"() : () -> ()
    %c2 = arith.constant 2 : index
    %c0_36 = arith.constant 0 : index
    %c0_37 = arith.constant 0 : index
    %c0_38 = arith.constant 0 : index
    %82 = vector.load %arg5[%c2, %c0_36, %c0_37, %c0_38] : memref<4x8x16x16xf32, #tpu.memory_space<vmem>>, vector<1x8x16x16xf32>
    %83 = vector.shape_cast %82 : vector<1x8x16x16xf32> to vector<8x16x16xf32>
    %84 = arith.addf %81, %83 : vector<8x16x16xf32>
    %cst_39 = arith.constant dense<0xFF800000> : vector<8x16xf32>
    %85 = vector.multi_reduction <maximumf>, %84, %cst_39 [2] : vector<8x16x16xf32> to vector<8x16xf32>
    %86 = vector.shape_cast %85 : vector<8x16xf32> to vector<8x16x1xf32>
    %87 = vector.broadcast %86 : vector<8x16x1xf32> to vector<8x16x16xf32>
    %88 = arith.subf %84, %87 : vector<8x16x16xf32>
    %89 = math.exp %88 : vector<8x16x16xf32>
    %cst_40 = arith.constant dense<0.000000e+00> : vector<8x16xf32>
    %90 = vector.multi_reduction <add>, %89, %cst_40 [2] : vector<8x16x16xf32> to vector<8x16xf32>
    %91 = vector.shape_cast %90 : vector<8x16xf32> to vector<8x16x1xf32>
    %92 = vector.broadcast %91 : vector<8x16x1xf32> to vector<8x16x16xf32>
    %93 = arith.divf %89, %92 : vector<8x16x16xf32>
    "tpu.trace_start"() <{level = 10 : i32, message = "wqk,wkd->wqd"}> : () -> ()
    %cst_41 = arith.constant dense<0.000000e+00> : vector<8x16x8xf32>
    %94 = tpu.matmul %93, %80, %cst_41 {dimension_numbers = #tpu.dot_dimension_numbers<[2], [1], [1], [2], [0, 0, 0, 1, 1, 2], [0], [0]>} : vector<8x16x16xf32>, vector<8x16x8xf32>, vector<8x16x8xf32> -> vector<8x16x8xf32>
    "tpu.trace_stop"() : () -> ()
    %95 = vector.shape_cast %94 : vector<8x16x8xf32> to vector<128x8xf32>
    %c16 = arith.constant 16 : index
    %c0_42 = arith.constant 0 : index
    %96 = vector.load %arg6[%c16, %c0_42] : memref<32x32xf32, #tpu.memory_space<vmem>>, vector<8x32xf32>
    %cst_43 = arith.constant dense<0.000000e+00> : vector<128x32xf32>
    %97 = tpu.matmul %95, %96, %cst_43 {dimension_numbers = #tpu.dot_dimension_numbers<[1], [0], [0], [1], [0, 0, 1, 1], [], []>} : vector<128x8xf32>, vector<8x32xf32>, vector<128x32xf32> -> vector<128x32xf32>
    %98 = arith.addf %77, %97 : vector<128x32xf32>
    %99 = vector.extract_strided_slice %34 {offsets = [0, 0, 24], sizes = [8, 16, 8], strides = [1, 1, 1]} : vector<8x16x96xf32> to vector<8x16x8xf32>
    %100 = vector.extract_strided_slice %34 {offsets = [0, 0, 56], sizes = [8, 16, 8], strides = [1, 1, 1]} : vector<8x16x96xf32> to vector<8x16x8xf32>
    %101 = vector.extract_strided_slice %34 {offsets = [0, 0, 88], sizes = [8, 16, 8], strides = [1, 1, 1]} : vector<8x16x96xf32> to vector<8x16x8xf32>
    "tpu.trace_start"() <{level = 10 : i32, message = "wqd,wkd->wqk"}> : () -> ()
    %cst_44 = arith.constant dense<0.000000e+00> : vector<8x16x16xf32>
    %102 = tpu.matmul %99, %100, %cst_44 {dimension_numbers = #tpu.dot_dimension_numbers<[2], [2], [1], [1], [0, 0, 0, 1, 1, 1], [0], [0]>} : vector<8x16x8xf32>, vector<8x16x8xf32>, vector<8x16x16xf32> -> vector<8x16x16xf32>
    "tpu.trace_stop"() : () -> ()
    %c3 = arith.constant 3 : index
    %c0_45 = arith.constant 0 : index
    %c0_46 = arith.constant 0 : index
    %c0_47 = arith.constant 0 : index
    %103 = vector.load %arg5[%c3, %c0_45, %c0_46, %c0_47] : memref<4x8x16x16xf32, #tpu.memory_space<vmem>>, vector<1x8x16x16xf32>
    %104 = vector.shape_cast %103 : vector<1x8x16x16xf32> to vector<8x16x16xf32>
    %105 = arith.addf %102, %104 : vector<8x16x16xf32>
    %cst_48 = arith.constant dense<0xFF800000> : vector<8x16xf32>
    %106 = vector.multi_reduction <maximumf>, %105, %cst_48 [2] : vector<8x16x16xf32> to vector<8x16xf32>
    %107 = vector.shape_cast %106 : vector<8x16xf32> to vector<8x16x1xf32>
    %108 = vector.broadcast %107 : vector<8x16x1xf32> to vector<8x16x16xf32>
    %109 = arith.subf %105, %108 : vector<8x16x16xf32>
    %110 = math.exp %109 : vector<8x16x16xf32>
    %cst_49 = arith.constant dense<0.000000e+00> : vector<8x16xf32>
    %111 = vector.multi_reduction <add>, %110, %cst_49 [2] : vector<8x16x16xf32> to vector<8x16xf32>
    %112 = vector.shape_cast %111 : vector<8x16xf32> to vector<8x16x1xf32>
    %113 = vector.broadcast %112 : vector<8x16x1xf32> to vector<8x16x16xf32>
    %114 = arith.divf %110, %113 : vector<8x16x16xf32>
    "tpu.trace_start"() <{level = 10 : i32, message = "wqk,wkd->wqd"}> : () -> ()
    %cst_50 = arith.constant dense<0.000000e+00> : vector<8x16x8xf32>
    %115 = tpu.matmul %114, %101, %cst_50 {dimension_numbers = #tpu.dot_dimension_numbers<[2], [1], [1], [2], [0, 0, 0, 1, 1, 2], [0], [0]>} : vector<8x16x16xf32>, vector<8x16x8xf32>, vector<8x16x8xf32> -> vector<8x16x8xf32>
    "tpu.trace_stop"() : () -> ()
    %116 = vector.shape_cast %115 : vector<8x16x8xf32> to vector<128x8xf32>
    %c24 = arith.constant 24 : index
    %c0_51 = arith.constant 0 : index
    %117 = vector.load %arg6[%c24, %c0_51] : memref<32x32xf32, #tpu.memory_space<vmem>>, vector<8x32xf32>
    %cst_52 = arith.constant dense<0.000000e+00> : vector<128x32xf32>
    %118 = tpu.matmul %116, %117, %cst_52 {dimension_numbers = #tpu.dot_dimension_numbers<[1], [0], [0], [1], [0, 0, 1, 1], [], []>} : vector<128x8xf32>, vector<8x32xf32>, vector<128x32xf32> -> vector<128x32xf32>
    %119 = arith.addf %98, %118 : vector<128x32xf32>
    %120 = arith.addf %0, %119 : vector<128x32xf32>
    %c0_53 = arith.constant 0 : index
    %c0_54 = arith.constant 0 : index
    %121 = vector.load %arg7[%c0_53, %c0_54] : memref<1x32xf32, #tpu.memory_space<vmem>>, vector<1x32xf32>
    %122 = vector.shape_cast %121 : vector<1x32xf32> to vector<32xf32>
    %123 = vector.shape_cast %122 : vector<32xf32> to vector<1x32xf32>
    %124 = vector.broadcast %123 : vector<1x32xf32> to vector<128x32xf32>
    %125 = arith.addf %120, %124 : vector<128x32xf32>
    %cst_55 = arith.constant dense<0.000000e+00> : vector<128xf32>
    %126 = vector.multi_reduction <add>, %125, %cst_55 [1] : vector<128x32xf32> to vector<128xf32>
    %127 = vector.shape_cast %126 : vector<128xf32> to vector<128x1xf32>
    %cst_56 = arith.constant 3.200000e+01 : f32
    %128 = vector.broadcast %cst_56 : f32 to vector<128x1xf32>
    %129 = arith.divf %127, %128 : vector<128x1xf32>
    %130 = vector.broadcast %129 : vector<128x1xf32> to vector<128x32xf32>
    %131 = arith.subf %125, %130 : vector<128x32xf32>
    %132 = arith.mulf %131, %131 : vector<128x32xf32>
    %cst_57 = arith.constant dense<0.000000e+00> : vector<128xf32>
    %133 = vector.multi_reduction <add>, %132, %cst_57 [1] : vector<128x32xf32> to vector<128xf32>
    %134 = vector.shape_cast %133 : vector<128xf32> to vector<128x1xf32>
    %cst_58 = arith.constant 3.200000e+01 : f32
    %135 = vector.broadcast %cst_58 : f32 to vector<128x1xf32>
    %136 = arith.divf %134, %135 : vector<128x1xf32>
    %cst_59 = arith.constant 9.99999997E-7 : f32
    %137 = vector.broadcast %cst_59 : f32 to vector<128x1xf32>
    %138 = arith.addf %136, %137 : vector<128x1xf32>
    %139 = math.rsqrt %138 : vector<128x1xf32>
    %140 = vector.broadcast %139 : vector<128x1xf32> to vector<128x32xf32>
    %141 = arith.mulf %131, %140 : vector<128x32xf32>
    %c0_60 = arith.constant 0 : index
    %c0_61 = arith.constant 0 : index
    %142 = vector.load %arg8[%c0_60, %c0_61] : memref<1x32xf32, #tpu.memory_space<vmem>>, vector<1x32xf32>
    %143 = vector.shape_cast %142 : vector<1x32xf32> to vector<32xf32>
    %144 = vector.shape_cast %143 : vector<32xf32> to vector<1x32xf32>
    %145 = vector.broadcast %144 : vector<1x32xf32> to vector<128x32xf32>
    %146 = arith.mulf %141, %145 : vector<128x32xf32>
    %c0_62 = arith.constant 0 : index
    %c0_63 = arith.constant 0 : index
    %147 = vector.load %arg9[%c0_62, %c0_63] : memref<1x32xf32, #tpu.memory_space<vmem>>, vector<1x32xf32>
    %148 = vector.shape_cast %147 : vector<1x32xf32> to vector<32xf32>
    %149 = vector.shape_cast %148 : vector<32xf32> to vector<1x32xf32>
    %150 = vector.broadcast %149 : vector<1x32xf32> to vector<128x32xf32>
    %151 = arith.addf %146, %150 : vector<128x32xf32>
    %c0_64 = arith.constant 0 : index
    %c0_65 = arith.constant 0 : index
    %152 = vector.load %arg10[%c0_64, %c0_65] : memref<32x128xf32, #tpu.memory_space<vmem>>, vector<32x128xf32>
    %cst_66 = arith.constant dense<0.000000e+00> : vector<128x128xf32>
    %153 = tpu.matmul %151, %152, %cst_66 {dimension_numbers = #tpu.dot_dimension_numbers<[1], [0], [0], [1], [0, 0, 1, 1], [], []>} : vector<128x32xf32>, vector<32x128xf32>, vector<128x128xf32> -> vector<128x128xf32>
    %c0_67 = arith.constant 0 : index
    %c0_68 = arith.constant 0 : index
    %154 = vector.load %arg11[%c0_67, %c0_68] : memref<1x128xf32, #tpu.memory_space<vmem>>, vector<1x128xf32>
    %155 = vector.shape_cast %154 : vector<1x128xf32> to vector<128xf32>
    %156 = vector.shape_cast %155 : vector<128xf32> to vector<1x128xf32>
    %157 = vector.broadcast %156 : vector<1x128xf32> to vector<128x128xf32>
    %158 = arith.addf %153, %157 : vector<128x128xf32>
    %cst_69 = arith.constant 5.000000e-01 : f32
    %159 = vector.broadcast %cst_69 : f32 to vector<128x128xf32>
    %160 = arith.mulf %159, %158 : vector<128x128xf32>
    %cst_70 = arith.constant 0.707106769 : f32
    %161 = vector.broadcast %cst_70 : f32 to vector<128x128xf32>
    %162 = arith.mulf %158, %161 : vector<128x128xf32>
    %163 = math.absf %162 : vector<128x128xf32>
    %cst_71 = arith.constant 0.327591091 : f32
    %164 = vector.broadcast %cst_71 : f32 to vector<128x128xf32>
    %165 = arith.mulf %164, %163 : vector<128x128xf32>
    %cst_72 = arith.constant 1.000000e+00 : f32
    %166 = vector.broadcast %cst_72 : f32 to vector<128x128xf32>
    %167 = arith.addf %166, %165 : vector<128x128xf32>
    %cst_73 = arith.constant 1.000000e+00 : f32
    %168 = vector.broadcast %cst_73 : f32 to vector<128x128xf32>
    %169 = arith.divf %168, %167 : vector<128x128xf32>
    %cst_74 = arith.constant 1.06140542 : f32
    %170 = vector.broadcast %cst_74 : f32 to vector<128x128xf32>
    %171 = arith.mulf %170, %169 : vector<128x128xf32>
    %cst_75 = arith.constant -1.45315206 : f32
    %172 = vector.broadcast %cst_75 : f32 to vector<128x128xf32>
    %173 = arith.addf %171, %172 : vector<128x128xf32>
    %174 = arith.mulf %173, %169 : vector<128x128xf32>
    %cst_76 = arith.constant 1.42141378 : f32
    %175 = vector.broadcast %cst_76 : f32 to vector<128x128xf32>
    %176 = arith.addf %174, %175 : vector<128x128xf32>
    %177 = arith.mulf %176, %169 : vector<128x128xf32>
    %cst_77 = arith.constant -0.284496725 : f32
    %178 = vector.broadcast %cst_77 : f32 to vector<128x128xf32>
    %179 = arith.addf %177, %178 : vector<128x128xf32>
    %180 = arith.mulf %179, %169 : vector<128x128xf32>
    %cst_78 = arith.constant 0.254829586 : f32
    %181 = vector.broadcast %cst_78 : f32 to vector<128x128xf32>
    %182 = arith.addf %180, %181 : vector<128x128xf32>
    %183 = arith.mulf %182, %169 : vector<128x128xf32>
    %cst_79 = arith.constant 0.000000e+00 : f32
    %184 = vector.broadcast %cst_79 : f32 to vector<128x128xf32>
    %185 = arith.subf %184, %163 : vector<128x128xf32>
    %186 = arith.mulf %185, %163 : vector<128x128xf32>
    %187 = math.exp %186 : vector<128x128xf32>
    %188 = arith.mulf %183, %187 : vector<128x128xf32>
    %cst_80 = arith.constant 1.000000e+00 : f32
    %189 = vector.broadcast %cst_80 : f32 to vector<128x128xf32>
    %190 = arith.subf %189, %188 : vector<128x128xf32>
    %cst_81 = arith.constant 0.000000e+00 : f32
    %191 = vector.broadcast %cst_81 : f32 to vector<128x128xf32>
    %192 = arith.cmpf oge, %162, %191 : vector<128x128xf32>
    %cst_82 = arith.constant 0.000000e+00 : f32
    %193 = vector.broadcast %cst_82 : f32 to vector<128x128xf32>
    %194 = arith.subf %193, %190 : vector<128x128xf32>
    %195 = arith.select %192, %190, %194 : vector<128x128xi1>, vector<128x128xf32>
    %cst_83 = arith.constant 1.000000e+00 : f32
    %196 = vector.broadcast %cst_83 : f32 to vector<128x128xf32>
    %197 = arith.addf %196, %195 : vector<128x128xf32>
    %198 = arith.mulf %160, %197 : vector<128x128xf32>
    %c0_84 = arith.constant 0 : index
    %c0_85 = arith.constant 0 : index
    %199 = vector.load %arg12[%c0_84, %c0_85] : memref<128x32xf32, #tpu.memory_space<vmem>>, vector<128x32xf32>
    %cst_86 = arith.constant dense<0.000000e+00> : vector<128x32xf32>
    %200 = tpu.matmul %198, %199, %cst_86 {dimension_numbers = #tpu.dot_dimension_numbers<[1], [0], [0], [1], [0, 0, 1, 1], [], []>} : vector<128x128xf32>, vector<128x32xf32>, vector<128x32xf32> -> vector<128x32xf32>
    %c0_87 = arith.constant 0 : index
    %c0_88 = arith.constant 0 : index
    %201 = vector.load %arg13[%c0_87, %c0_88] : memref<1x32xf32, #tpu.memory_space<vmem>>, vector<1x32xf32>
    %202 = vector.shape_cast %201 : vector<1x32xf32> to vector<32xf32>
    %203 = vector.shape_cast %202 : vector<32xf32> to vector<1x32xf32>
    %204 = vector.broadcast %203 : vector<1x32xf32> to vector<128x32xf32>
    %205 = arith.addf %200, %204 : vector<128x32xf32>
    %206 = arith.addf %125, %205 : vector<128x32xf32>
    %c0_89 = arith.constant 0 : index
    %c0_90 = arith.constant 0 : index
    %207 = vector.load %arg14[%c0_89, %c0_90] : memref<128x32xf32, #tpu.memory_space<vmem>>, vector<128x32xf32>
    tpu.vector_store %arg14[%c0_89, %c0_90], %206 {strides = array<i32>} : memref<128x32xf32, #tpu.memory_space<vmem>>, vector<128x32xf32>,
    return
  }
}

</mosaic_0001>

<llo_original>
// kernel: mul.9
$region0: #{mul.9}
  #allocation0 [shape = 's32[1]{0}', space=sflag, size = 0x4, scoped, tag = 'scoped memory for mul.9']
  %s0 = inlined_call_operand.vmem [shape: f32[1,96], index: 0, kind: input, shape index: {}]
  %s1 = inlined_call_operand.vmem [shape: f32[1,96], index: 1, kind: input, shape index: {}]
  %s2 = inlined_call_operand.vmem [shape: f32[1,96], index: 2, kind: output, shape index: {}]
  %v3 = vld [vmem:[%s0] sm:$0x1]
  %v4 = vld [vmem:[%s1] sm:$0x1]
  %5 = xla_tuple %v3, %v4
  %6 = xla_tuple %5
  %v7 = vmul.f32 %v3, %v4
  %8 = xla_tuple %v7
  %9 = vst [vmem:[%s2] sm:$0x1] %v7

// kernel: swin_block_forward.1
$region0: #{swin_block_forward.1}
  #allocation0 [shape = 'u32[]', space=smem, size = 0x4, offset = 0x4, fixed_abs, tag = 'smem constant byte address 0x4 - core index']
  #allocation1 [shape = 'u32[72,128]{1,0:T(1,128)}', space=vmem, size = 0x9000, scoped, tag = 'internal scratch']
  %s0 = inlined_call_operand.vmem [shape: f32[128,32], index: 0, kind: input, shape index: {}]
  %s1 = inlined_call_operand.vmem [shape: f32[1,32], index: 1, kind: input, shape index: {}]
  %s2 = inlined_call_operand.vmem [shape: f32[1,32], index: 2, kind: input, shape index: {}]
  %s3 = inlined_call_operand.vmem [shape: f32[32,96], index: 3, kind: input, shape index: {}]
  %s4 = inlined_call_operand.vmem [shape: f32[1,96], index: 4, kind: input, shape index: {}]
  %s5 = inlined_call_operand.vmem [shape: f32[4,8,16,16], index: 5, kind: input, shape index: {}]
  %s6 = inlined_call_operand.vmem [shape: f32[32,32], index: 6, kind: input, shape index: {}]
  %s7 = inlined_call_operand.vmem [shape: f32[1,32], index: 7, kind: input, shape index: {}]
  %s8 = inlined_call_operand.vmem [shape: f32[1,32], index: 8, kind: input, shape index: {}]
  %s9 = inlined_call_operand.vmem [shape: f32[1,32], index: 9, kind: input, shape index: {}]
  %s10 = inlined_call_operand.vmem [shape: f32[32,128], index: 10, kind: input, shape index: {}]
  %s11 = inlined_call_operand.vmem [shape: f32[1,128], index: 11, kind: input, shape index: {}]
  %s12 = inlined_call_operand.vmem [shape: f32[128,32], index: 12, kind: input, shape index: {}]
  %s13 = inlined_call_operand.vmem [shape: f32[1,32], index: 13, kind: input, shape index: {}]
  %s14 = inlined_call_operand.vmem [shape: f32[128,32], index: 14, kind: output, shape index: {}]
  %s15 = sld [smem:[#allocation0]]
  $region66: #{swin_block_forward.1} parent=0
    _
  %s17 = ssub.s32 1, %s15
  %s18 = scalar_select 0, %s17, %s15
  // Predicated region
  $region2: #{swin_block_forward.1} parent=0 // pred_check
    _
  $region3: #{swin_block_forward.1} parent=0 // pred_check_branch
    %20 = sbr.rel (0) target = $region5
  $region4: #{swin_block_forward.1} parent=0 // pred_region
    _
  $region5: #{swin_block_forward.1} parent=0 // pred_fallthru
    _
  // Predicated region
  $region6: #{swin_block_forward.1} parent=0 // pred_check
    _
  $region7: #{swin_block_forward.1} parent=0 // pred_check_branch
    %22 = sbr.rel (0) target = $region9
  $region8: #{swin_block_forward.1} parent=0 // pred_region
    _
  $region9: #{swin_block_forward.1} parent=0 // pred_fallthru
    _
  // Predicated region
  $region10: #{swin_block_forward.1} parent=0 // pred_check
    _
  $region11: #{swin_block_forward.1} parent=0 // pred_check_branch
    %24 = sbr.rel (0) target = $region13
  $region12: #{swin_block_forward.1} parent=0 // pred_region
    _
  $region13: #{swin_block_forward.1} parent=0 // pred_fallthru
    _
  // Predicated region
  $region14: #{swin_block_forward.1} parent=0 // pred_check
    _
  $region15: #{swin_block_forward.1} parent=0 // pred_check_branch
    %26 = sbr.rel (0) target = $region17
  $region16: #{swin_block_forward.1} parent=0 // pred_region
    _
  $region17: #{swin_block_forward.1} parent=0 // pred_fallthru
    _
  // Predicated region
  $region18: #{swin_block_forward.1} parent=0 // pred_check
    _
  $region19: #{swin_block_forward.1} parent=0 // pred_check_branch
    %28 = sbr.rel (0) target = $region21
  $region20: #{swin_block_forward.1} parent=0 // pred_region
    _
  $region21: #{swin_block_forward.1} parent=0 // pred_fallthru
    _
  // Predicated region
  $region22: #{swin_block_forward.1} parent=0 // pred_check
    _
  $region23: #{swin_block_forward.1} parent=0 // pred_check_branch
    %30 = sbr.rel (0) target = $region25
  $region24: #{swin_block_forward.1} parent=0 // pred_region
    _
  $region25: #{swin_block_forward.1} parent=0 // pred_fallthru
    _
  // Predicated region
  $region26: #{swin_block_forward.1} parent=0 // pred_check
    _
  $region27: #{swin_block_forward.1} parent=0 // pred_check_branch
    %32 = sbr.rel (0) target = $region29
  $region28: #{swin_block_forward.1} parent=0 // pred_region
    _
  $region29: #{swin_block_forward.1} parent=0 // pred_fallthru
    _
  // Predicated region
  $region30: #{swin_block_forward.1} parent=0 // pred_check
    _
  $region31: #{swin_block_forward.1} parent=0 // pred_check_branch
    %34 = sbr.rel (0) target = $region33
  $region32: #{swin_block_forward.1} parent=0 // pred_region
    _
  $region33: #{swin_block_forward.1} parent=0 // pred_fallthru
    _
  // Predicated region
  $region34: #{swin_block_forward.1} parent=0 // pred_check
    _
  $region35: #{swin_block_forward.1} parent=0 // pred_check_branch
    %36 = sbr.rel (0) target = $region37
  $region36: #{swin_block_forward.1} parent=0 // pred_region
    _
  $region37: #{swin_block_forward.1} parent=0 // pred_fallthru
    _
  // Predicated region
  $region38: #{swin_block_forward.1} parent=0 // pred_check
    _
  $region39: #{swin_block_forward.1} parent=0 // pred_check_branch
    %38 = sbr.rel (0) target = $region41
  $region40: #{swin_block_forward.1} parent=0 // pred_region
    _
  $region41: #{swin_block_forward.1} parent=0 // pred_fallthru
    _
  // Predicated region
  $region42: #{swin_block_forward.1} parent=0 // pred_check
    _
  $region43: #{swin_block_forward.1} parent=0 // pred_check_branch
    %40 = sbr.rel (0) target = $region45
  $region44: #{swin_block_forward.1} parent=0 // pred_region
    _
  $region45: #{swin_block_forward.1} parent=0 // pred_fallthru
    _
  // Predicated region
  $region46: #{swin_block_forward.1} parent=0 // pred_check
    _
  $region47: #{swin_block_forward.1} parent=0 // pred_check_branch
    %42 = sbr.rel (0) target = $region49
  $region48: #{swin_block_forward.1} parent=0 // pred_region
    _
  $region49: #{swin_block_forward.1} parent=0 // pred_fallthru
    _
  // Predicated region
  $region50: #{swin_block_forward.1} parent=0 // pred_check
    _
  $region51: #{swin_block_forward.1} parent=0 // pred_check_branch
    %44 = sbr.rel (0) target = $region53
  $region52: #{swin_block_forward.1} parent=0 // pred_region
    _
  $region53: #{swin_block_forward.1} parent=0 // pred_fallthru
    _
  // Predicated region
  $region54: #{swin_block_forward.1} parent=0 // pred_check
    _
  $region55: #{swin_block_forward.1} parent=0 // pred_check_branch
    %46 = sbr.rel (0) target = $region57
  $region56: #{swin_block_forward.1} parent=0 // pred_region
    _
  $region57: #{swin_block_forward.1} parent=0 // pred_fallthru
    _
  %v47 = vld [vmem:[%s0] sm:$0xff]
  %v48 = vld [vmem:[%s0 + $0x8] sm:$0xff]
  %v49 = vld [vmem:[%s0 + $0x10] sm:$0xff]
  %v50 = vld [vmem:[%s0 + $0x18] sm:$0xff]
  %v51 = vld [vmem:[%s0 + $0x20] sm:$0xff]
  %v52 = vld [vmem:[%s0 + $0x28] sm:$0xff]
  %v53 = vld [vmem:[%s0 + $0x30] sm:$0xff]
  %v54 = vld [vmem:[%s0 + $0x38] sm:$0xff]
  %v55 = vld [vmem:[%s0 + $0x40] sm:$0xff]
  %v56 = vld [vmem:[%s0 + $0x48] sm:$0xff]
  %v57 = vld [vmem:[%s0 + $0x50] sm:$0xff]
  %v58 = vld [vmem:[%s0 + $0x58] sm:$0xff]
  %v59 = vld [vmem:[%s0 + $0x60] sm:$0xff]
  %v60 = vld [vmem:[%s0 + $0x68] sm:$0xff]
  %v61 = vld [vmem:[%s0 + $0x70] sm:$0xff]
  %v62 = vld [vmem:[%s0 + $0x78] sm:$0xff]
  %vm63 = vcmask 261120
  %v64 = vsel %vm63, %v47, 0.0
  %65 = vadd.xlane.f32.xlu0 %v64
  %v66 = vpop.xlane.xlu0 %65
  %v67 = vsel %vm63, %v48, 0.0
  %68 = vadd.xlane.f32.xlu0 %v67
  %v69 = vpop.xlane.xlu0 %68
  %v70 = vsel %vm63, %v49, 0.0
  %71 = vadd.xlane.f32.xlu0 %v70
  %v72 = vpop.xlane.xlu0 %71
  %v73 = vsel %vm63, %v50, 0.0
  %74 = vadd.xlane.f32.xlu0 %v73
  %v75 = vpop.xlane.xlu0 %74
  %v76 = vsel %vm63, %v51, 0.0
  %77 = vadd.xlane.f32.xlu0 %v76
  %v78 = vpop.xlane.xlu0 %77
  %v79 = vsel %vm63, %v52, 0.0
  %80 = vadd.xlane.f32.xlu0 %v79
  %v81 = vpop.xlane.xlu0 %80
  %v82 = vsel %vm63, %v53, 0.0
  %83 = vadd.xlane.f32.xlu0 %v82
  %v84 = vpop.xlane.xlu0 %83
  %v85 = vsel %vm63, %v54, 0.0
  %86 = vadd.xlane.f32.xlu0 %v85
  %v87 = vpop.xlane.xlu0 %86
  %v88 = vsel %vm63, %v55, 0.0
  %89 = vadd.xlane.f32.xlu0 %v88
  %v90 = vpop.xlane.xlu0 %89
  %v91 = vsel %vm63, %v56, 0.0
  %92 = vadd.xlane.f32.xlu0 %v91
  %v93 = vpop.xlane.xlu0 %92
  %v94 = vsel %vm63, %v57, 0.0
  %95 = vadd.xlane.f32.xlu0 %v94
  %v96 = vpop.xlane.xlu0 %95
  %v97 = vsel %vm63, %v58, 0.0
  %98 = vadd.xlane.f32.xlu0 %v97
  %v99 = vpop.xlane.xlu0 %98
  %v100 = vsel %vm63, %v59, 0.0
  %101 = vadd.xlane.f32.xlu0 %v100
  %v102 = vpop.xlane.xlu0 %101
  %v103 = vsel %vm63, %v60, 0.0
  %104 = vadd.xlane.f32.xlu0 %v103
  %v105 = vpop.xlane.xlu0 %104
  %v106 = vsel %vm63, %v61, 0.0
  %107 = vadd.xlane.f32.xlu0 %v106
  %v108 = vpop.xlane.xlu0 %107
  %v109 = vsel %vm63, %v62, 0.0
  %110 = vadd.xlane.f32.xlu0 %v109
  %v111 = vpop.xlane.xlu0 %110
  %v112 = vrcp.pop 32.0
  %v113 = vmul.f32 32.0, %v112
  %v114 = vsub.f32 1.0, %v113
  %v115 = vmul.f32 %v112, %v114
  %v116 = vadd.f32 %v112, %v115
  %vm117 = vweird.f32 %v112
  %v118 = vsel %vm117, %v112, %v116
  %v119 = vmul.f32 %v66, %v118
  %v120 = vmul.f32 %v69, %v118
  %v121 = vmul.f32 %v72, %v118
  %v122 = vmul.f32 %v75, %v118
  %v123 = vmul.f32 %v78, %v118
  %v124 = vmul.f32 %v81, %v118
  %v125 = vmul.f32 %v84, %v118
  %v126 = vmul.f32 %v87, %v118
  %v127 = vmul.f32 %v90, %v118
  %v128 = vmul.f32 %v93, %v118
  %v129 = vmul.f32 %v96, %v118
  %v130 = vmul.f32 %v99, %v118
  %v131 = vmul.f32 %v102, %v118
  %v132 = vmul.f32 %v105, %v118
  %v133 = vmul.f32 %v108, %v118
  %v134 = vmul.f32 %v111, %v118
  %v135 = vsub.f32 %v47, %v119
  %v136 = vsub.f32 %v48, %v120
  %v137 = vsub.f32 %v49, %v121
  %v138 = vsub.f32 %v50, %v122
  %v139 = vsub.f32 %v51, %v123
  %v140 = vsub.f32 %v52, %v124
  %v141 = vsub.f32 %v53, %v125
  %v142 = vsub.f32 %v54, %v126
  %v143 = vsub.f32 %v55, %v127
  %v144 = vsub.f32 %v56, %v128
  %v145 = vsub.f32 %v57, %v129
  %v146 = vsub.f32 %v58, %v130
  %v147 = vsub.f32 %v59, %v131
  %v148 = vsub.f32 %v60, %v132
  %v149 = vsub.f32 %v61, %v133
  %v150 = vsub.f32 %v62, %v134
  %v151 = vmul.f32 %v135, %v135
  %v152 = vmul.f32 %v136, %v136
  %v153 = vmul.f32 %v137, %v137
  %v154 = vmul.f32 %v138, %v138
  %v155 = vmul.f32 %v139, %v139
  %v156 = vmul.f32 %v140, %v140
  %v157 = vmul.f32 %v141, %v141
  %v158 = vmul.f32 %v142, %v142
  %v159 = vmul.f32 %v143, %v143
  %v160 = vmul.f32 %v144, %v144
  %v161 = vmul.f32 %v145, %v145
  %v162 = vmul.f32 %v146, %v146
  %v163 = vmul.f32 %v147, %v147
  %v164 = vmul.f32 %v148, %v148
  %v165 = vmul.f32 %v149, %v149
  %v166 = vmul.f32 %v150, %v150
  %v167 = vsel %vm63, %v151, 0.0
  %168 = vadd.xlane.f32.xlu0 %v167
  %v169 = vpop.xlane.xlu0 %168
  %v170 = vsel %vm63, %v152, 0.0
  %171 = vadd.xlane.f32.xlu0 %v170
  %v172 = vpop.xlane.xlu0 %171
  %v173 = vsel %vm63, %v153, 0.0
  %174 = vadd.xlane.f32.xlu0 %v173
  %v175 = vpop.xlane.xlu0 %174
  %v176 = vsel %vm63, %v154, 0.0
  %177 = vadd.xlane.f32.xlu0 %v176
  %v178 = vpop.xlane.xlu0 %177
  %v179 = vsel %vm63, %v155, 0.0
  %180 = vadd.xlane.f32.xlu0 %v179
  %v181 = vpop.xlane.xlu0 %180
  %v182 = vsel %vm63, %v156, 0.0
  %183 = vadd.xlane.f32.xlu0 %v182
  %v184 = vpop.xlane.xlu0 %183
  %v185 = vsel %vm63, %v157, 0.0
  %186 = vadd.xlane.f32.xlu0 %v185
  %v187 = vpop.xlane.xlu0 %186
  %v188 = vsel %vm63, %v158, 0.0
  %189 = vadd.xlane.f32.xlu0 %v188
  %v190 = vpop.xlane.xlu0 %189
  %v191 = vsel %vm63, %v159, 0.0
  %192 = vadd.xlane.f32.xlu0 %v191
  %v193 = vpop.xlane.xlu0 %192
  %v194 = vsel %vm63, %v160, 0.0
  %195 = vadd.xlane.f32.xlu0 %v194
  %v196 = vpop.xlane.xlu0 %195
  %v197 = vsel %vm63, %v161, 0.0
  %198 = vadd.xlane.f32.xlu0 %v197
  %v199 = vpop.xlane.xlu0 %198
  %v200 = vsel %vm63, %v162, 0.0
  %201 = vadd.xlane.f32.xlu0 %v200
  %v202 = vpop.xlane.xlu0 %201
  %v203 = vsel %vm63, %v163, 0.0
  %204 = vadd.xlane.f32.xlu0 %v203
  %v205 = vpop.xlane.xlu0 %204
  %v206 = vsel %vm63, %v164, 0.0
  %207 = vadd.xlane.f32.xlu0 %v206
  %v208 = vpop.xlane.xlu0 %207
  %v209 = vsel %vm63, %v165, 0.0
  %210 = vadd.xlane.f32.xlu0 %v209
  %v211 = vpop.xlane.xlu0 %210
  %v212 = vsel %vm63, %v166, 0.0
  %213 = vadd.xlane.f32.xlu0 %v212
  %v214 = vpop.xlane.xlu0 %213
  %v215 = vmul.f32 %v169, %v118
  %v216 = vmul.f32 %v172, %v118
  %v217 = vmul.f32 %v175, %v118
  %v218 = vmul.f32 %v178, %v118
  %v219 = vmul.f32 %v181, %v118
  %v220 = vmul.f32 %v184, %v118
  %v221 = vmul.f32 %v187, %v118
  %v222 = vmul.f32 %v190, %v118
  %v223 = vmul.f32 %v193, %v118
  %v224 = vmul.f32 %v196, %v118
  %v225 = vmul.f32 %v199, %v118
  %v226 = vmul.f32 %v202, %v118
  %v227 = vmul.f32 %v205, %v118
  %v228 = vmul.f32 %v208, %v118
  %v229 = vmul.f32 %v211, %v118
  %v230 = vmul.f32 %v214, %v118
  %v231 = vadd.f32 %v215, 1e-06
  %v232 = vadd.f32 %v216, 1e-06
  %v233 = vadd.f32 %v217, 1e-06
  %v234 = vadd.f32 %v218, 1e-06
  %v235 = vadd.f32 %v219, 1e-06
  %v236 = vadd.f32 %v220, 1e-06
  %v237 = vadd.f32 %v221, 1e-06
  %v238 = vadd.f32 %v222, 1e-06
  %v239 = vadd.f32 %v223, 1e-06
  %v240 = vadd.f32 %v224, 1e-06
  %v241 = vadd.f32 %v225, 1e-06
  %v242 = vadd.f32 %v226, 1e-06
  %v243 = vadd.f32 %v227, 1e-06
  %v244 = vadd.f32 %v228, 1e-06
  %v245 = vadd.f32 %v229, 1e-06
  %v246 = vadd.f32 %v230, 1e-06
  %v247 = vrsqrt.pop %v231
  %v248 = vmul.f32 %v247, %v231
  %v249 = vmul.f32 %v248, %v247
  %v250 = vmul.f32 0.5, %v249
  %v251 = vsub.f32 1.5, %v250
  %v252 = vmul.f32 %v247, %v251
  %vm253 = vweird.f32 %v231
  %vm254 = vweird.f32 %v247
  %vm255 = vmor %vm253, %vm254
  %v256 = vsel %vm255, %v247, %v252
  %v257 = vrsqrt.pop %v232
  %v258 = vmul.f32 %v257, %v232
  %v259 = vmul.f32 %v258, %v257
  %v260 = vmul.f32 0.5, %v259
  %v261 = vsub.f32 1.5, %v260
  %v262 = vmul.f32 %v257, %v261
  %vm263 = vweird.f32 %v232
  %vm264 = vweird.f32 %v257
  %vm265 = vmor %vm263, %vm264
  %v266 = vsel %vm265, %v257, %v262
  %v267 = vrsqrt.pop %v233
  %v268 = vmul.f32 %v267, %v233
  %v269 = vmul.f32 %v268, %v267
  %v270 = vmul.f32 0.5, %v269
  %v271 = vsub.f32 1.5, %v270
  %v272 = vmul.f32 %v267, %v271
  %vm273 = vweird.f32 %v233
  %vm274 = vweird.f32 %v267
  %vm275 = vmor %vm273, %vm274
  %v276 = vsel %vm275, %v267, %v272
  %v277 = vrsqrt.pop %v234
  %v278 = vmul.f32 %v277, %v234
  %v279 = vmul.f32 %v278, %v277
  %v280 = vmul.f32 0.5, %v279
  %v281 = vsub.f32 1.5, %v280
  %v282 = vmul.f32 %v277, %v281
  %vm283 = vweird.f32 %v234
  %vm284 = vweird.f32 %v277
  %vm285 = vmor %vm283, %vm284
  %v286 = vsel %vm285, %v277, %v282
  %v287 = vrsqrt.pop %v235
  %v288 = vmul.f32 %v287, %v235
  %v289 = vmul.f32 %v288, %v287
  %v290 = vmul.f32 0.5, %v289
  %v291 = vsub.f32 1.5, %v290
  %v292 = vmul.f32 %v287, %v291
  %vm293 = vweird.f32 %v235
  %vm294 = vweird.f32 %v287
  %vm295 = vmor %vm293, %vm294
  %v296 = vsel %vm295, %v287, %v292
  %v297 = vrsqrt.pop %v236
  %v298 = vmul.f32 %v297, %v236
  %v299 = vmul.f32 %v298, %v297
  %v300 = vmul.f32 0.5, %v299
  %v301 = vsub.f32 1.5, %v300
  %v302 = vmul.f32 %v297, %v301
  %vm303 = vweird.f32 %v236
  %vm304 = vweird.f32 %v297
  %vm305 = vmor %vm303, %vm304
  %v306 = vsel %vm305, %v297, %v302
  %v307 = vrsqrt.pop %v237
  %v308 = vmul.f32 %v307, %v237
  %v309 = vmul.f32 %v308, %v307
  %v310 = vmul.f32 0.5, %v309
  %v311 = vsub.f32 1.5, %v310
  %v312 = vmul.f32 %v307, %v311
  %vm313 = vweird.f32 %v237
  %vm314 = vweird.f32 %v307
  %vm315 = vmor %vm313, %vm314
  %v316 = vsel %vm315, %v307, %v312
  %v317 = vrsqrt.pop %v238
  %v318 = vmul.f32 %v317, %v238
  %v319 = vmul.f32 %v318, %v317
  %v320 = vmul.f32 0.5, %v319
  %v321 = vsub.f32 1.5, %v320
  %v322 = vmul.f32 %v317, %v321
  %vm323 = vweird.f32 %v238
  %vm324 = vweird.f32 %v317
  %vm325 = vmor %vm323, %vm324
  %v326 = vsel %vm325, %v317, %v322
  %v327 = vrsqrt.pop %v239
  %v328 = vmul.f32 %v327, %v239
  %v329 = vmul.f32 %v328, %v327
  %v330 = vmul.f32 0.5, %v329
  %v331 = vsub.f32 1.5, %v330
  %v332 = vmul.f32 %v327, %v331
  %vm333 = vweird.f32 %v239
  %vm334 = vweird.f32 %v327
  %vm335 = vmor %vm333, %vm334
  %v336 = vsel %vm335, %v327, %v332
  %v337 = vrsqrt.pop %v240
  %v338 = vmul.f32 %v337, %v240
  %v339 = vmul.f32 %v338, %v337
  %v340 = vmul.f32 0.5, %v339
  %v341 = vsub.f32 1.5, %v340
  %v342 = vmul.f32 %v337, %v341
  %vm343 = vweird.f32 %v240
  %vm344 = vweird.f32 %v337
  %vm345 = vmor %vm343, %vm344
  %v346 = vsel %vm345, %v337, %v342
  %v347 = vrsqrt.pop %v241
  %v348 = vmul.f32 %v347, %v241
  %v349 = vmul.f32 %v348, %v347
  %v350 = vmul.f32 0.5, %v349
  %v351 = vsub.f32 1.5, %v350
  %v352 = vmul.f32 %v347, %v351
  %vm353 = vweird.f32 %v241
  %vm354 = vweird.f32 %v347
  %vm355 = vmor %vm353, %vm354
  %v356 = vsel %vm355, %v347, %v352
  %v357 = vrsqrt.pop %v242
  %v358 = vmul.f32 %v357, %v242
  %v359 = vmul.f32 %v358, %v357
  %v360 = vmul.f32 0.5, %v359
  %v361 = vsub.f32 1.5, %v360
  %v362 = vmul.f32 %v357, %v361
  %vm363 = vweird.f32 %v242
  %vm364 = vweird.f32 %v357
  %vm365 = vmor %vm363, %vm364
  %v366 = vsel %vm365, %v357, %v362
  %v367 = vrsqrt.pop %v243
  %v368 = vmul.f32 %v367, %v243
  %v369 = vmul.f32 %v368, %v367
  %v370 = vmul.f32 0.5, %v369
  %v371 = vsub.f32 1.5, %v370
  %v372 = vmul.f32 %v367, %v371
  %vm373 = vweird.f32 %v243
  %vm374 = vweird.f32 %v367
  %vm375 = vmor %vm373, %vm374
  %v376 = vsel %vm375, %v367, %v372
  %v377 = vrsqrt.pop %v244
  %v378 = vmul.f32 %v377, %v244
  %v379 = vmul.f32 %v378, %v377
  %v380 = vmul.f32 0.5, %v379
  %v381 = vsub.f32 1.5, %v380
  %v382 = vmul.f32 %v377, %v381
  %vm383 = vweird.f32 %v244
  %vm384 = vweird.f32 %v377
  %vm385 = vmor %vm383, %vm384
  %v386 = vsel %vm385, %v377, %v382
  %v387 = vrsqrt.pop %v245
  %v388 = vmul.f32 %v387, %v245
  %v389 = vmul.f32 %v388, %v387
  %v390 = vmul.f32 0.5, %v389
  %v391 = vsub.f32 1.5, %v390
  %v392 = vmul.f32 %v387, %v391
  %vm393 = vweird.f32 %v245
  %vm394 = vweird.f32 %v387
  %vm395 = vmor %vm393, %vm394
  %v396 = vsel %vm395, %v387, %v392
  %v397 = vrsqrt.pop %v246
  %v398 = vmul.f32 %v397, %v246
  %v399 = vmul.f32 %v398, %v397
  %v400 = vmul.f32 0.5, %v399
  %v401 = vsub.f32 1.5, %v400
  %v402 = vmul.f32 %v397, %v401
  %vm403 = vweird.f32 %v246
  %vm404 = vweird.f32 %v397
  %vm405 = vmor %vm403, %vm404
  %v406 = vsel %vm405, %v397, %v402
  %v407 = vmul.f32 %v135, %v256
  %v408 = vmul.f32 %v136, %v266
  %v409 = vmul.f32 %v137, %v276
  %v410 = vmul.f32 %v138, %v286
  %v411 = vmul.f32 %v139, %v296
  %v412 = vmul.f32 %v140, %v306
  %v413 = vmul.f32 %v141, %v316
  %v414 = vmul.f32 %v142, %v326
  %v415 = vmul.f32 %v143, %v336
  %v416 = vmul.f32 %v144, %v346
  %v417 = vmul.f32 %v145, %v356
  %v418 = vmul.f32 %v146, %v366
  %v419 = vmul.f32 %v147, %v376
  %v420 = vmul.f32 %v148, %v386
  %v421 = vmul.f32 %v149, %v396
  %v422 = vmul.f32 %v150, %v406
  %v423 = vld [vmem:[%s1] sm:$0x1]
  %v425 = vperm.slane %v423, 0
  %v427 = vmul.f32 %v407, %v425
  %v428 = vmul.f32 %v408, %v425
  %v429 = vmul.f32 %v409, %v425
  %v430 = vmul.f32 %v410, %v425
  %v431 = vmul.f32 %v411, %v425
  %v432 = vmul.f32 %v412, %v425
  %v433 = vmul.f32 %v413, %v425
  %v434 = vmul.f32 %v414, %v425
  %v435 = vmul.f32 %v415, %v425
  %v436 = vmul.f32 %v416, %v425
  %v437 = vmul.f32 %v417, %v425
  %v438 = vmul.f32 %v418, %v425
  %v439 = vmul.f32 %v419, %v425
  %v440 = vmul.f32 %v420, %v425
  %v441 = vmul.f32 %v421, %v425
  %v442 = vmul.f32 %v422, %v425
  %v443 = vld [vmem:[%s2] sm:$0x1]
  %v445 = vperm.slane %v443, 0
  %v447 = vadd.f32 %v427, %v445
  %v448 = vadd.f32 %v428, %v445
  %v449 = vadd.f32 %v429, %v445
  %v450 = vadd.f32 %v430, %v445
  %v451 = vadd.f32 %v431, %v445
  %v452 = vadd.f32 %v432, %v445
  %v453 = vadd.f32 %v433, %v445
  %v454 = vadd.f32 %v434, %v445
  %v455 = vadd.f32 %v435, %v445
  %v456 = vadd.f32 %v436, %v445
  %v457 = vadd.f32 %v437, %v445
  %v458 = vadd.f32 %v438, %v445
  %v459 = vadd.f32 %v439, %v445
  %v460 = vadd.f32 %v440, %v445
  %v461 = vadd.f32 %v441, %v445
  %v462 = vadd.f32 %v442, %v445
  %v463 = vld [vmem:[%s3] sm:$0xff]
  %v464 = vld [vmem:[%s3 + $0x8] sm:$0xff]
  %v465 = vld [vmem:[%s3 + $0x10] sm:$0xff]
  %v466 = vld [vmem:[%s3 + $0x18] sm:$0xff]
  %v467 = vld [vmem:[%s4] sm:$0x1]
  %v469 = vperm.slane %v467, 0
  %v472 = vsel %vm63, %v447, 0
  %v475 = vsel %vm63, %v448, 0
  %v478 = vsel %vm63, %v449, 0
  %v481 = vsel %vm63, %v450, 0
  %v484 = vsel %vm63, %v451, 0
  %v487 = vsel %vm63, %v452, 0
  %v490 = vsel %vm63, %v453, 0
  %v493 = vsel %vm63, %v454, 0
  %v496 = vsel %vm63, %v455, 0
  %v499 = vsel %vm63, %v456, 0
  %v502 = vsel %vm63, %v457, 0
  %v505 = vsel %vm63, %v458, 0
  %v508 = vsel %vm63, %v459, 0
  %v511 = vsel %vm63, %v460, 0
  %v514 = vsel %vm63, %v461, 0
  %v517 = vsel %vm63, %v462, 0
  %519 = vmatpush.msra.mxu0 0.0
  %520 = vmatpush.msra.mxu0 0.0
  %521 = vmatpush.msra.mxu0 0.0
  %522 = vmatpush.msra.mxu0 0.0
  %523 = vmatpush.msra.mxu0 0.0
  %524 = vmatpush.msra.mxu0 0.0
  %525 = vmatpush.msra.mxu0 0.0
  %526 = vmatpush.msra.mxu0 0.0
  %527 = vmatpush.msra.mxu0 0.0
  %528 = vmatpush.msra.mxu0 0.0
  %529 = vmatpush.msra.mxu0 0.0
  %530 = vmatpush.msra.mxu0 0.0
  %531 = vmatpush.msra.mxu0 %v466
  %532 = vmatpush.msra.mxu0 %v465
  %533 = vmatpush.msra.mxu0 %v464
  %534 = vmatpush.msra.mxu0 %v463
  %535 = vmatmul.f32.gmra.mxu0 %v472
  %v536 = vpop.f32.mrf.mxu0
  %v537 = vadd.f32 %v469, %v536
  %538 = vmatmul.f32.gmra.mxu0 %v475
  %v539 = vpop.f32.mrf.mxu0
  %v540 = vadd.f32 %v469, %v539
  %541 = vmatmul.f32.gmra.mxu0 %v478
  %v542 = vpop.f32.mrf.mxu0
  %v543 = vadd.f32 %v469, %v542
  %544 = vmatmul.f32.gmra.mxu0 %v481
  %v545 = vpop.f32.mrf.mxu0
  %v546 = vadd.f32 %v469, %v545
  %547 = vmatmul.f32.gmra.mxu0 %v484
  %v548 = vpop.f32.mrf.mxu0
  %v549 = vadd.f32 %v469, %v548
  %550 = vmatmul.f32.gmra.mxu0 %v487
  %v551 = vpop.f32.mrf.mxu0
  %v552 = vadd.f32 %v469, %v551
  %553 = vmatmul.f32.gmra.mxu0 %v490
  %v554 = vpop.f32.mrf.mxu0
  %v555 = vadd.f32 %v469, %v554
  %556 = vmatmul.f32.gmra.mxu0 %v493
  %v557 = vpop.f32.mrf.mxu0
  %v558 = vadd.f32 %v469, %v557
  %559 = vmatmul.f32.gmra.mxu0 %v496
  %v560 = vpop.f32.mrf.mxu0
  %v561 = vadd.f32 %v469, %v560
  %562 = vmatmul.f32.gmra.mxu0 %v499
  %v563 = vpop.f32.mrf.mxu0
  %v564 = vadd.f32 %v469, %v563
  %565 = vmatmul.f32.gmra.mxu0 %v502
  %v566 = vpop.f32.mrf.mxu0
  %v567 = vadd.f32 %v469, %v566
  %568 = vmatmul.f32.gmra.mxu0 %v505
  %v569 = vpop.f32.mrf.mxu0
  %v570 = vadd.f32 %v469, %v569
  %571 = vmatmul.f32.gmra.mxu0 %v508
  %v572 = vpop.f32.mrf.mxu0
  %v573 = vadd.f32 %v469, %v572
  %574 = vmatmul.f32.gmra.mxu0 %v511
  %v575 = vpop.f32.mrf.mxu0
  %v576 = vadd.f32 %v469, %v575
  %577 = vmatmul.f32.gmra.mxu0 %v514
  %v578 = vpop.f32.mrf.mxu0
  %v579 = vadd.f32 %v469, %v578
  %580 = vmatmul.f32.gmra.mxu0 %v517
  %v581 = vpop.f32.mrf.mxu0
  %v582 = vadd.f32 %v469, %v581
  %583 = vdwg.mxu0
  %v584 = vld [vmem:[%s5] sm:$0xff]
  %v585 = vld [vmem:[%s5 + $0x8] sm:$0xff]
  %v586 = vld [vmem:[%s5 + $0x10] sm:$0xff]
  %v587 = vld [vmem:[%s5 + $0x18] sm:$0xff]
  %v588 = vld [vmem:[%s5 + $0x20] sm:$0xff]
  %v589 = vld [vmem:[%s5 + $0x28] sm:$0xff]
  %v590 = vld [vmem:[%s5 + $0x30] sm:$0xff]
  %v591 = vld [vmem:[%s5 + $0x38] sm:$0xff]
  %v592 = vld [vmem:[%s5 + $0x40] sm:$0xff]
  %v593 = vld [vmem:[%s5 + $0x48] sm:$0xff]
  %v594 = vld [vmem:[%s5 + $0x50] sm:$0xff]
  %v595 = vld [vmem:[%s5 + $0x58] sm:$0xff]
  %v596 = vld [vmem:[%s5 + $0x60] sm:$0xff]
  %v597 = vld [vmem:[%s5 + $0x68] sm:$0xff]
  %v598 = vld [vmem:[%s5 + $0x70] sm:$0xff]
  %v599 = vld [vmem:[%s5 + $0x78] sm:$0xff]
  %602 = vrot.lane.b32.xlu0 %v537, 96
  %v603 = vpop.permute.xlu0 %602
  %604 = vrot.lane.b32.xlu0 %v540, 96
  %v605 = vpop.permute.xlu0 %604
  %vm606 = vcmask 64512
  %v607 = vsel %vm606, %v537, 0
  %v609 = vsel %vm606, %v540, 0
  %v611 = vsel %vm606, %v603, 0
  %v613 = vsel %vm606, %v605, 0
  %615 = vmatpush.xpose.msra.mxu0 0.0
  %616 = vmatpush.xpose.msra.mxu0 0.0
  %617 = vmatpush.xpose.msra.mxu0 0.0
  %618 = vmatpush.xpose.msra.mxu0 0.0
  %619 = vmatpush.xpose.msra.mxu0 0.0
  %620 = vmatpush.xpose.msra.mxu0 0.0
  %621 = vmatpush.xpose.msra.mxu0 0.0
  %622 = vmatpush.xpose.msra.mxu0 0.0
  %623 = vmatpush.xpose.msra.mxu0 0.0
  %624 = vmatpush.xpose.msra.mxu0 0.0
  %625 = vmatpush.xpose.msra.mxu0 0.0
  %626 = vmatpush.xpose.msra.mxu0 0.0
  %627 = vmatpush.xpose.msra.mxu0 0.0
  %628 = vmatpush.xpose.msra.mxu0 0.0
  %629 = vmatpush.xpose.msra.mxu0 %v613
  %630 = vmatpush.xpose.msra.mxu0 %v611
  %631 = vmatmul.f32.gmra.mxu0 %v607
  %v632 = vpop.f32.mrf.mxu0
  %v633 = vadd.f32 %v584, %v632
  %634 = vmatmul.f32.gmra.mxu0 %v609
  %v635 = vpop.f32.mrf.mxu0
  %v636 = vadd.f32 %v585, %v635
  %637 = vdwg.mxu0
  %640 = vrot.lane.b32.xlu0 %v543, 96
  %v641 = vpop.permute.xlu0 %640
  %642 = vrot.lane.b32.xlu0 %v546, 96
  %v643 = vpop.permute.xlu0 %642
  %v644 = vsel %vm606, %v543, 0
  %v646 = vsel %vm606, %v546, 0
  %v648 = vsel %vm606, %v641, 0
  %v650 = vsel %vm606, %v643, 0
  %652 = vmatpush.xpose.msra.mxu0 0.0
  %653 = vmatpush.xpose.msra.mxu0 0.0
  %654 = vmatpush.xpose.msra.mxu0 0.0
  %655 = vmatpush.xpose.msra.mxu0 0.0
  %656 = vmatpush.xpose.msra.mxu0 0.0
  %657 = vmatpush.xpose.msra.mxu0 0.0
  %658 = vmatpush.xpose.msra.mxu0 0.0
  %659 = vmatpush.xpose.msra.mxu0 0.0
  %660 = vmatpush.xpose.msra.mxu0 0.0
  %661 = vmatpush.xpose.msra.mxu0 0.0
  %662 = vmatpush.xpose.msra.mxu0 0.0
  %663 = vmatpush.xpose.msra.mxu0 0.0
  %664 = vmatpush.xpose.msra.mxu0 0.0
  %665 = vmatpush.xpose.msra.mxu0 0.0
  %666 = vmatpush.xpose.msra.mxu0 %v650
  %667 = vmatpush.xpose.msra.mxu0 %v648
  %668 = vmatmul.f32.gmra.mxu0 %v644
  %v669 = vpop.f32.mrf.mxu0
  %v670 = vadd.f32 %v586, %v669
  %671 = vmatmul.f32.gmra.mxu0 %v646
  %v672 = vpop.f32.mrf.mxu0
  %v673 = vadd.f32 %v587, %v672
  %674 = vdwg.mxu0
  %677 = vrot.lane.b32.xlu0 %v549, 96
  %v678 = vpop.permute.xlu0 %677
  %679 = vrot.lane.b32.xlu0 %v552, 96
  %v680 = vpop.permute.xlu0 %679
  %v681 = vsel %vm606, %v549, 0
  %v683 = vsel %vm606, %v552, 0
  %v685 = vsel %vm606, %v678, 0
  %v687 = vsel %vm606, %v680, 0
  %689 = vmatpush.xpose.msra.mxu0 0.0
  %690 = vmatpush.xpose.msra.mxu0 0.0
  %691 = vmatpush.xpose.msra.mxu0 0.0
  %692 = vmatpush.xpose.msra.mxu0 0.0
  %693 = vmatpush.xpose.msra.mxu0 0.0
  %694 = vmatpush.xpose.msra.mxu0 0.0
  %695 = vmatpush.xpose.msra.mxu0 0.0
  %696 = vmatpush.xpose.msra.mxu0 0.0
  %697 = vmatpush.xpose.msra.mxu0 0.0
  %698 = vmatpush.xpose.msra.mxu0 0.0
  %699 = vmatpush.xpose.msra.mxu0 0.0
  %700 = vmatpush.xpose.msra.mxu0 0.0
  %701 = vmatpush.xpose.msra.mxu0 0.0
  %702 = vmatpush.xpose.msra.mxu0 0.0
  %703 = vmatpush.xpose.msra.mxu0 %v687
  %704 = vmatpush.xpose.msra.mxu0 %v685
  %705 = vmatmul.f32.gmra.mxu0 %v681
  %v706 = vpop.f32.mrf.mxu0
  %v707 = vadd.f32 %v588, %v706
  %708 = vmatmul.f32.gmra.mxu0 %v683
  %v709 = vpop.f32.mrf.mxu0
  %v710 = vadd.f32 %v589, %v709
  %711 = vdwg.mxu0
  %714 = vrot.lane.b32.xlu0 %v555, 96
  %v715 = vpop.permute.xlu0 %714
  %716 = vrot.lane.b32.xlu0 %v558, 96
  %v717 = vpop.permute.xlu0 %716
  %v718 = vsel %vm606, %v555, 0
  %v720 = vsel %vm606, %v558, 0
  %v722 = vsel %vm606, %v715, 0
  %v724 = vsel %vm606, %v717, 0
  %726 = vmatpush.xpose.msra.mxu0 0.0
  %727 = vmatpush.xpose.msra.mxu0 0.0
  %728 = vmatpush.xpose.msra.mxu0 0.0
  %729 = vmatpush.xpose.msra.mxu0 0.0
  %730 = vmatpush.xpose.msra.mxu0 0.0
  %731 = vmatpush.xpose.msra.mxu0 0.0
  %732 = vmatpush.xpose.msra.mxu0 0.0
  %733 = vmatpush.xpose.msra.mxu0 0.0
  %734 = vmatpush.xpose.msra.mxu0 0.0
  %735 = vmatpush.xpose.msra.mxu0 0.0
  %736 = vmatpush.xpose.msra.mxu0 0.0
  %737 = vmatpush.xpose.msra.mxu0 0.0
  %738 = vmatpush.xpose.msra.mxu0 0.0
  %739 = vmatpush.xpose.msra.mxu0 0.0
  %740 = vmatpush.xpose.msra.mxu0 %v724
  %741 = vmatpush.xpose.msra.mxu0 %v722
  %742 = vmatmul.f32.gmra.mxu0 %v718
  %v743 = vpop.f32.mrf.mxu0
  %v744 = vadd.f32 %v590, %v743
  %745 = vmatmul.f32.gmra.mxu0 %v720
  %v746 = vpop.f32.mrf.mxu0
  %v747 = vadd.f32 %v591, %v746
  %748 = vdwg.mxu0
  %751 = vrot.lane.b32.xlu0 %v561, 96
  %v752 = vpop.permute.xlu0 %751
  %753 = vrot.lane.b32.xlu0 %v564, 96
  %v754 = vpop.permute.xlu0 %753
  %v755 = vsel %vm606, %v561, 0
  %v757 = vsel %vm606, %v564, 0
  %v759 = vsel %vm606, %v752, 0
  %v761 = vsel %vm606, %v754, 0
  %763 = vmatpush.xpose.msra.mxu0 0.0
  %764 = vmatpush.xpose.msra.mxu0 0.0
  %765 = vmatpush.xpose.msra.mxu0 0.0
  %766 = vmatpush.xpose.msra.mxu0 0.0
  %767 = vmatpush.xpose.msra.mxu0 0.0
  %768 = vmatpush.xpose.msra.mxu0 0.0
  %769 = vmatpush.xpose.msra.mxu0 0.0
  %770 = vmatpush.xpose.msra.mxu0 0.0
  %771 = vmatpush.xpose.msra.mxu0 0.0
  %772 = vmatpush.xpose.msra.mxu0 0.0
  %773 = vmatpush.xpose.msra.mxu0 0.0
  %774 = vmatpush.xpose.msra.mxu0 0.0
  %775 = vmatpush.xpose.msra.mxu0 0.0
  %776 = vmatpush.xpose.msra.mxu0 0.0
  %777 = vmatpush.xpose.msra.mxu0 %v761
  %778 = vmatpush.xpose.msra.mxu0 %v759
  %779 = vmatmul.f32.gmra.mxu0 %v755
  %v780 = vpop.f32.mrf.mxu0
  %v781 = vadd.f32 %v592, %v780
  %782 = vmatmul.f32.gmra.mxu0 %v757
  %v783 = vpop.f32.mrf.mxu0
  %v784 = vadd.f32 %v593, %v783
  %785 = vdwg.mxu0
  %788 = vrot.lane.b32.xlu0 %v567, 96
  %v789 = vpop.permute.xlu0 %788
  %790 = vrot.lane.b32.xlu0 %v570, 96
  %v791 = vpop.permute.xlu0 %790
  %v792 = vsel %vm606, %v567, 0
  %v794 = vsel %vm606, %v570, 0
  %v796 = vsel %vm606, %v789, 0
  %v798 = vsel %vm606, %v791, 0
  %800 = vmatpush.xpose.msra.mxu0 0.0
  %801 = vmatpush.xpose.msra.mxu0 0.0
  %802 = vmatpush.xpose.msra.mxu0 0.0
  %803 = vmatpush.xpose.msra.mxu0 0.0
  %804 = vmatpush.xpose.msra.mxu0 0.0
  %805 = vmatpush.xpose.msra.mxu0 0.0
  %806 = vmatpush.xpose.msra.mxu0 0.0
  %807 = vmatpush.xpose.msra.mxu0 0.0
  %808 = vmatpush.xpose.msra.mxu0 0.0
  %809 = vmatpush.xpose.msra.mxu0 0.0
  %810 = vmatpush.xpose.msra.mxu0 0.0
  %811 = vmatpush.xpose.msra.mxu0 0.0
  %812 = vmatpush.xpose.msra.mxu0 0.0
  %813 = vmatpush.xpose.msra.mxu0 0.0
  %814 = vmatpush.xpose.msra.mxu0 %v798
  %815 = vmatpush.xpose.msra.mxu0 %v796
  %816 = vmatmul.f32.gmra.mxu0 %v792
  %v817 = vpop.f32.mrf.mxu0
  %v818 = vadd.f32 %v594, %v817
  %819 = vmatmul.f32.gmra.mxu0 %v794
  %v820 = vpop.f32.mrf.mxu0
  %v821 = vadd.f32 %v595, %v820
  %822 = vdwg.mxu0
  %825 = vrot.lane.b32.xlu0 %v573, 96
  %v826 = vpop.permute.xlu0 %825
  %827 = vrot.lane.b32.xlu0 %v576, 96
  %v828 = vpop.permute.xlu0 %827
  %v829 = vsel %vm606, %v573, 0
  %v831 = vsel %vm606, %v576, 0
  %v833 = vsel %vm606, %v826, 0
  %v835 = vsel %vm606, %v828, 0
  %837 = vmatpush.xpose.msra.mxu0 0.0
  %838 = vmatpush.xpose.msra.mxu0 0.0
  %839 = vmatpush.xpose.msra.mxu0 0.0
  %840 = vmatpush.xpose.msra.mxu0 0.0
  %841 = vmatpush.xpose.msra.mxu0 0.0
  %842 = vmatpush.xpose.msra.mxu0 0.0
  %843 = vmatpush.xpose.msra.mxu0 0.0
  %844 = vmatpush.xpose.msra.mxu0 0.0
  %845 = vmatpush.xpose.msra.mxu0 0.0
  %846 = vmatpush.xpose.msra.mxu0 0.0
  %847 = vmatpush.xpose.msra.mxu0 0.0
  %848 = vmatpush.xpose.msra.mxu0 0.0
  %849 = vmatpush.xpose.msra.mxu0 0.0
  %850 = vmatpush.xpose.msra.mxu0 0.0
  %851 = vmatpush.xpose.msra.mxu0 %v835
  %852 = vmatpush.xpose.msra.mxu0 %v833
  %853 = vmatmul.f32.gmra.mxu0 %v829
  %v854 = vpop.f32.mrf.mxu0
  %v855 = vadd.f32 %v596, %v854
  %856 = vmatmul.f32.gmra.mxu0 %v831
  %v857 = vpop.f32.mrf.mxu0
  %v858 = vadd.f32 %v597, %v857
  %859 = vdwg.mxu0
  %862 = vrot.lane.b32.xlu0 %v579, 96
  %v863 = vpop.permute.xlu0 %862
  %864 = vrot.lane.b32.xlu0 %v582, 96
  %v865 = vpop.permute.xlu0 %864
  %v866 = vsel %vm606, %v579, 0
  %v868 = vsel %vm606, %v582, 0
  %v870 = vsel %vm606, %v863, 0
  %v872 = vsel %vm606, %v865, 0
  %874 = vmatpush.xpose.msra.mxu0 0.0
  %875 = vmatpush.xpose.msra.mxu0 0.0
  %876 = vmatpush.xpose.msra.mxu0 0.0
  %877 = vmatpush.xpose.msra.mxu0 0.0
  %878 = vmatpush.xpose.msra.mxu0 0.0
  %879 = vmatpush.xpose.msra.mxu0 0.0
  %880 = vmatpush.xpose.msra.mxu0 0.0
  %881 = vmatpush.xpose.msra.mxu0 0.0
  %882 = vmatpush.xpose.msra.mxu0 0.0
  %883 = vmatpush.xpose.msra.mxu0 0.0
  %884 = vmatpush.xpose.msra.mxu0 0.0
  %885 = vmatpush.xpose.msra.mxu0 0.0
  %886 = vmatpush.xpose.msra.mxu0 0.0
  %887 = vmatpush.xpose.msra.mxu0 0.0
  %888 = vmatpush.xpose.msra.mxu0 %v872
  %889 = vmatpush.xpose.msra.mxu0 %v870
  %890 = vmatmul.f32.gmra.mxu0 %v866
  %v891 = vpop.f32.mrf.mxu0
  %v892 = vadd.f32 %v598, %v891
  %893 = vmatmul.f32.gmra.mxu0 %v868
  %v894 = vpop.f32.mrf.mxu0
  %v895 = vadd.f32 %v599, %v894
  %896 = vdwg.mxu0
  %vm897 = vcmask 130048
  %v898 = vsel %vm897, %v633, -inf
  %899 = vmax.xlane.f32.xlu0 %v898
  %v900 = vpop.xlane.xlu0 %899
  %v901 = vsel %vm897, %v636, -inf
  %902 = vmax.xlane.f32.xlu0 %v901
  %v903 = vpop.xlane.xlu0 %902
  %v904 = vsel %vm897, %v670, -inf
  %905 = vmax.xlane.f32.xlu0 %v904
  %v906 = vpop.xlane.xlu0 %905
  %v907 = vsel %vm897, %v673, -inf
  %908 = vmax.xlane.f32.xlu0 %v907
  %v909 = vpop.xlane.xlu0 %908
  %v910 = vsel %vm897, %v707, -inf
  %911 = vmax.xlane.f32.xlu0 %v910
  %v912 = vpop.xlane.xlu0 %911
  %v913 = vsel %vm897, %v710, -inf
  %914 = vmax.xlane.f32.xlu0 %v913
  %v915 = vpop.xlane.xlu0 %914
  %v916 = vsel %vm897, %v744, -inf
  %917 = vmax.xlane.f32.xlu0 %v916
  %v918 = vpop.xlane.xlu0 %917
  %v919 = vsel %vm897, %v747, -inf
  %920 = vmax.xlane.f32.xlu0 %v919
  %v921 = vpop.xlane.xlu0 %920
  %v922 = vsel %vm897, %v781, -inf
  %923 = vmax.xlane.f32.xlu0 %v922
  %v924 = vpop.xlane.xlu0 %923
  %v925 = vsel %vm897, %v784, -inf
  %926 = vmax.xlane.f32.xlu0 %v925
  %v927 = vpop.xlane.xlu0 %926
  %v928 = vsel %vm897, %v818, -inf
  %929 = vmax.xlane.f32.xlu0 %v928
  %v930 = vpop.xlane.xlu0 %929
  %v931 = vsel %vm897, %v821, -inf
  %932 = vmax.xlane.f32.xlu0 %v931
  %v933 = vpop.xlane.xlu0 %932
  %v934 = vsel %vm897, %v855, -inf
  %935 = vmax.xlane.f32.xlu0 %v934
  %v936 = vpop.xlane.xlu0 %935
  %v937 = vsel %vm897, %v858, -inf
  %938 = vmax.xlane.f32.xlu0 %v937
  %v939 = vpop.xlane.xlu0 %938
  %v940 = vsel %vm897, %v892, -inf
  %941 = vmax.xlane.f32.xlu0 %v940
  %v942 = vpop.xlane.xlu0 %941
  %v943 = vsel %vm897, %v895, -inf
  %944 = vmax.xlane.f32.xlu0 %v943
  %v945 = vpop.xlane.xlu0 %944
  %v946 = vsub.f32 %v633, %v900
  %v947 = vsub.f32 %v636, %v903
  %v948 = vsub.f32 %v670, %v906
  %v949 = vsub.f32 %v673, %v909
  %v950 = vsub.f32 %v707, %v912
  %v951 = vsub.f32 %v710, %v915
  %v952 = vsub.f32 %v744, %v918
  %v953 = vsub.f32 %v747, %v921
  %v954 = vsub.f32 %v781, %v924
  %v955 = vsub.f32 %v784, %v927
  %v956 = vsub.f32 %v818, %v930
  %v957 = vsub.f32 %v821, %v933
  %v958 = vsub.f32 %v855, %v936
  %v959 = vsub.f32 %v858, %v939
  %v960 = vsub.f32 %v892, %v942
  %v961 = vsub.f32 %v895, %v945
  %v962 = vmul.f32 %v946, 1.442695
  %v963 = vpow.pop %v962
  %v964 = vmul.f32 %v947, 1.442695
  %v965 = vpow.pop %v964
  %v966 = vmul.f32 %v948, 1.442695
  %v967 = vpow.pop %v966
  %v968 = vmul.f32 %v949, 1.442695
  %v969 = vpow.pop %v968
  %v970 = vmul.f32 %v950, 1.442695
  %v971 = vpow.pop %v970
  %v972 = vmul.f32 %v951, 1.442695
  %v973 = vpow.pop %v972
  %v974 = vmul.f32 %v952, 1.442695
  %v975 = vpow.pop %v974
  %v976 = vmul.f32 %v953, 1.442695
  %v977 = vpow.pop %v976
  %v978 = vmul.f32 %v954, 1.442695
  %v979 = vpow.pop %v978
  %v980 = vmul.f32 %v955, 1.442695
  %v981 = vpow.pop %v980
  %v982 = vmul.f32 %v956, 1.442695
  %v983 = vpow.pop %v982
  %v984 = vmul.f32 %v957, 1.442695
  %v985 = vpow.pop %v984
  %v986 = vmul.f32 %v958, 1.442695
  %v987 = vpow.pop %v986
  %v988 = vmul.f32 %v959, 1.442695
  %v989 = vpow.pop %v988
  %v990 = vmul.f32 %v960, 1.442695
  %v991 = vpow.pop %v990
  %v992 = vmul.f32 %v961, 1.442695
  %v993 = vpow.pop %v992
  %v994 = vsel %vm897, %v963, 0.0
  %995 = vadd.xlane.f32.xlu0 %v994
  %v996 = vpop.xlane.xlu0 %995
  %v997 = vsel %vm897, %v965, 0.0
  %998 = vadd.xlane.f32.xlu0 %v997
  %v999 = vpop.xlane.xlu0 %998
  %v1000 = vsel %vm897, %v967, 0.0
  %1001 = vadd.xlane.f32.xlu0 %v1000
  %v1002 = vpop.xlane.xlu0 %1001
  %v1003 = vsel %vm897, %v969, 0.0
  %1004 = vadd.xlane.f32.xlu0 %v1003
  %v1005 = vpop.xlane.xlu0 %1004
  %v1006 = vsel %vm897, %v971, 0.0
  %1007 = vadd.xlane.f32.xlu0 %v1006
  %v1008 = vpop.xlane.xlu0 %1007
  %v1009 = vsel %vm897, %v973, 0.0
  %1010 = vadd.xlane.f32.xlu0 %v1009
  %v1011 = vpop.xlane.xlu0 %1010
  %v1012 = vsel %vm897, %v975, 0.0
  %1013 = vadd.xlane.f32.xlu0 %v1012
  %v1014 = vpop.xlane.xlu0 %1013
  %v1015 = vsel %vm897, %v977, 0.0
  %1016 = vadd.xlane.f32.xlu0 %v1015
  %v1017 = vpop.xlane.xlu0 %1016
  %v1018 = vsel %vm897, %v979, 0.0
  %1019 = vadd.xlane.f32.xlu0 %v1018
  %v1020 = vpop.xlane.xlu0 %1019
  %v1021 = vsel %vm897, %v981, 0.0
  %1022 = vadd.xlane.f32.xlu0 %v1021
  %v1023 = vpop.xlane.xlu0 %1022
  %v1024 = vsel %vm897, %v983, 0.0
  %1025 = vadd.xlane.f32.xlu0 %v1024
  %v1026 = vpop.xlane.xlu0 %1025
  %v1027 = vsel %vm897, %v985, 0.0
  %1028 = vadd.xlane.f32.xlu0 %v1027
  %v1029 = vpop.xlane.xlu0 %1028
  %v1030 = vsel %vm897, %v987, 0.0
  %1031 = vadd.xlane.f32.xlu0 %v1030
  %v1032 = vpop.xlane.xlu0 %1031
  %v1033 = vsel %vm897, %v989, 0.0
  %1034 = vadd.xlane.f32.xlu0 %v1033
  %v1035 = vpop.xlane.xlu0 %1034
  %v1036 = vsel %vm897, %v991, 0.0
  %1037 = vadd.xlane.f32.xlu0 %v1036
  %v1038 = vpop.xlane.xlu0 %1037
  %v1039 = vsel %vm897, %v993, 0.0
  %1040 = vadd.xlane.f32.xlu0 %v1039
  %v1041 = vpop.xlane.xlu0 %1040
  %v1042 = vrcp.pop %v996
  %v1043 = vmul.f32 %v996, %v1042
  %v1044 = vsub.f32 1.0, %v1043
  %v1045 = vmul.f32 %v1042, %v1044
  %v1046 = vadd.f32 %v1042, %v1045
  %vm1047 = vweird.f32 %v996
  %vm1048 = vweird.f32 %v1042
  %vm1049 = vmor %vm1047, %vm1048
  %v1050 = vsel %vm1049, %v1042, %v1046
  %v1051 = vand.u32 2147483647, %v996
  %vm1052 = vcmp.eq.f32.partialorder %v1051, 8.507059e+37
  %v1053 = vand.u32 %v996, 2147483648
  %v1054 = vor.u32 1.1754944e-38, %v1053
  %v1055 = vsel %vm1052, %v1054, %v1050
  %v1056 = vmul.f32 %v963, %v1055
  %v1057 = vrcp.pop %v999
  %v1058 = vmul.f32 %v999, %v1057
  %v1059 = vsub.f32 1.0, %v1058
  %v1060 = vmul.f32 %v1057, %v1059
  %v1061 = vadd.f32 %v1057, %v1060
  %vm1062 = vweird.f32 %v999
  %vm1063 = vweird.f32 %v1057
  %vm1064 = vmor %vm1062, %vm1063
  %v1065 = vsel %vm1064, %v1057, %v1061
  %v1066 = vand.u32 2147483647, %v999
  %vm1067 = vcmp.eq.f32.partialorder %v1066, 8.507059e+37
  %v1068 = vand.u32 %v999, 2147483648
  %v1069 = vor.u32 1.1754944e-38, %v1068
  %v1070 = vsel %vm1067, %v1069, %v1065
  %v1071 = vmul.f32 %v965, %v1070
  %v1072 = vrcp.pop %v1002
  %v1073 = vmul.f32 %v1002, %v1072
  %v1074 = vsub.f32 1.0, %v1073
  %v1075 = vmul.f32 %v1072, %v1074
  %v1076 = vadd.f32 %v1072, %v1075
  %vm1077 = vweird.f32 %v1002
  %vm1078 = vweird.f32 %v1072
  %vm1079 = vmor %vm1077, %vm1078
  %v1080 = vsel %vm1079, %v1072, %v1076
  %v1081 = vand.u32 2147483647, %v1002
  %vm1082 = vcmp.eq.f32.partialorder %v1081, 8.507059e+37
  %v1083 = vand.u32 %v1002, 2147483648
  %v1084 = vor.u32 1.1754944e-38, %v1083
  %v1085 = vsel %vm1082, %v1084, %v1080
  %v1086 = vmul.f32 %v967, %v1085
  %v1087 = vrcp.pop %v1005
  %v1088 = vmul.f32 %v1005, %v1087
  %v1089 = vsub.f32 1.0, %v1088
  %v1090 = vmul.f32 %v1087, %v1089
  %v1091 = vadd.f32 %v1087, %v1090
  %vm1092 = vweird.f32 %v1005
  %vm1093 = vweird.f32 %v1087
  %vm1094 = vmor %vm1092, %vm1093
  %v1095 = vsel %vm1094, %v1087, %v1091
  %v1096 = vand.u32 2147483647, %v1005
  %vm1097 = vcmp.eq.f32.partialorder %v1096, 8.507059e+37
  %v1098 = vand.u32 %v1005, 2147483648
  %v1099 = vor.u32 1.1754944e-38, %v1098
  %v1100 = vsel %vm1097, %v1099, %v1095
  %v1101 = vmul.f32 %v969, %v1100
  %v1102 = vrcp.pop %v1008
  %v1103 = vmul.f32 %v1008, %v1102
  %v1104 = vsub.f32 1.0, %v1103
  %v1105 = vmul.f32 %v1102, %v1104
  %v1106 = vadd.f32 %v1102, %v1105
  %vm1107 = vweird.f32 %v1008
  %vm1108 = vweird.f32 %v1102
  %vm1109 = vmor %vm1107, %vm1108
  %v1110 = vsel %vm1109, %v1102, %v1106
  %v1111 = vand.u32 2147483647, %v1008
  %vm1112 = vcmp.eq.f32.partialorder %v1111, 8.507059e+37
  %v1113 = vand.u32 %v1008, 2147483648
  %v1114 = vor.u32 1.1754944e-38, %v1113
  %v1115 = vsel %vm1112, %v1114, %v1110
  %v1116 = vmul.f32 %v971, %v1115
  %v1117 = vrcp.pop %v1011
  %v1118 = vmul.f32 %v1011, %v1117
  %v1119 = vsub.f32 1.0, %v1118
  %v1120 = vmul.f32 %v1117, %v1119
  %v1121 = vadd.f32 %v1117, %v1120
  %vm1122 = vweird.f32 %v1011
  %vm1123 = vweird.f32 %v1117
  %vm1124 = vmor %vm1122, %vm1123
  %v1125 = vsel %vm1124, %v1117, %v1121
  %v1126 = vand.u32 2147483647, %v1011
  %vm1127 = vcmp.eq.f32.partialorder %v1126, 8.507059e+37
  %v1128 = vand.u32 %v1011, 2147483648
  %v1129 = vor.u32 1.1754944e-38, %v1128
  %v1130 = vsel %vm1127, %v1129, %v1125
  %v1131 = vmul.f32 %v973, %v1130
  %v1132 = vrcp.pop %v1014
  %v1133 = vmul.f32 %v1014, %v1132
  %v1134 = vsub.f32 1.0, %v1133
  %v1135 = vmul.f32 %v1132, %v1134
  %v1136 = vadd.f32 %v1132, %v1135
  %vm1137 = vweird.f32 %v1014
  %vm1138 = vweird.f32 %v1132
  %vm1139 = vmor %vm1137, %vm1138
  %v1140 = vsel %vm1139, %v1132, %v1136
  %v1141 = vand.u32 2147483647, %v1014
  %vm1142 = vcmp.eq.f32.partialorder %v1141, 8.507059e+37
  %v1143 = vand.u32 %v1014, 2147483648
  %v1144 = vor.u32 1.1754944e-38, %v1143
  %v1145 = vsel %vm1142, %v1144, %v1140
  %v1146 = vmul.f32 %v975, %v1145
  %v1147 = vrcp.pop %v1017
  %v1148 = vmul.f32 %v1017, %v1147
  %v1149 = vsub.f32 1.0, %v1148
  %v1150 = vmul.f32 %v1147, %v1149
  %v1151 = vadd.f32 %v1147, %v1150
  %vm1152 = vweird.f32 %v1017
  %vm1153 = vweird.f32 %v1147
  %vm1154 = vmor %vm1152, %vm1153
  %v1155 = vsel %vm1154, %v1147, %v1151
  %v1156 = vand.u32 2147483647, %v1017
  %vm1157 = vcmp.eq.f32.partialorder %v1156, 8.507059e+37
  %v1158 = vand.u32 %v1017, 2147483648
  %v1159 = vor.u32 1.1754944e-38, %v1158
  %v1160 = vsel %vm1157, %v1159, %v1155
  %v1161 = vmul.f32 %v977, %v1160
  %v1162 = vrcp.pop %v1020
  %v1163 = vmul.f32 %v1020, %v1162
  %v1164 = vsub.f32 1.0, %v1163
  %v1165 = vmul.f32 %v1162, %v1164
  %v1166 = vadd.f32 %v1162, %v1165
  %vm1167 = vweird.f32 %v1020
  %vm1168 = vweird.f32 %v1162
  %vm1169 = vmor %vm1167, %vm1168
  %v1170 = vsel %vm1169, %v1162, %v1166
  %v1171 = vand.u32 2147483647, %v1020
  %vm1172 = vcmp.eq.f32.partialorder %v1171, 8.507059e+37
  %v1173 = vand.u32 %v1020, 2147483648
  %v1174 = vor.u32 1.1754944e-38, %v1173
  %v1175 = vsel %vm1172, %v1174, %v1170
  %v1176 = vmul.f32 %v979, %v1175
  %v1177 = vrcp.pop %v1023
  %v1178 = vmul.f32 %v1023, %v1177
  %v1179 = vsub.f32 1.0, %v1178
  %v1180 = vmul.f32 %v1177, %v1179
  %v1181 = vadd.f32 %v1177, %v1180
  %vm1182 = vweird.f32 %v1023
  %vm1183 = vweird.f32 %v1177
  %vm1184 = vmor %vm1182, %vm1183
  %v1185 = vsel %vm1184, %v1177, %v1181
  %v1186 = vand.u32 2147483647, %v1023
  %vm1187 = vcmp.eq.f32.partialorder %v1186, 8.507059e+37
  %v1188 = vand.u32 %v1023, 2147483648
  %v1189 = vor.u32 1.1754944e-38, %v1188
  %v1190 = vsel %vm1187, %v1189, %v1185
  %v1191 = vmul.f32 %v981, %v1190
  %v1192 = vrcp.pop %v1026
  %v1193 = vmul.f32 %v1026, %v1192
  %v1194 = vsub.f32 1.0, %v1193
  %v1195 = vmul.f32 %v1192, %v1194
  %v1196 = vadd.f32 %v1192, %v1195
  %vm1197 = vweird.f32 %v1026
  %vm1198 = vweird.f32 %v1192
  %vm1199 = vmor %vm1197, %vm1198
  %v1200 = vsel %vm1199, %v1192, %v1196
  %v1201 = vand.u32 2147483647, %v1026
  %vm1202 = vcmp.eq.f32.partialorder %v1201, 8.507059e+37
  %v1203 = vand.u32 %v1026, 2147483648
  %v1204 = vor.u32 1.1754944e-38, %v1203
  %v1205 = vsel %vm1202, %v1204, %v1200
  %v1206 = vmul.f32 %v983, %v1205
  %v1207 = vrcp.pop %v1029
  %v1208 = vmul.f32 %v1029, %v1207
  %v1209 = vsub.f32 1.0, %v1208
  %v1210 = vmul.f32 %v1207, %v1209
  %v1211 = vadd.f32 %v1207, %v1210
  %vm1212 = vweird.f32 %v1029
  %vm1213 = vweird.f32 %v1207
  %vm1214 = vmor %vm1212, %vm1213
  %v1215 = vsel %vm1214, %v1207, %v1211
  %v1216 = vand.u32 2147483647, %v1029
  %vm1217 = vcmp.eq.f32.partialorder %v1216, 8.507059e+37
  %v1218 = vand.u32 %v1029, 2147483648
  %v1219 = vor.u32 1.1754944e-38, %v1218
  %v1220 = vsel %vm1217, %v1219, %v1215
  %v1221 = vmul.f32 %v985, %v1220
  %v1222 = vrcp.pop %v1032
  %v1223 = vmul.f32 %v1032, %v1222
  %v1224 = vsub.f32 1.0, %v1223
  %v1225 = vmul.f32 %v1222, %v1224
  %v1226 = vadd.f32 %v1222, %v1225
  %vm1227 = vweird.f32 %v1032
  %vm1228 = vweird.f32 %v1222
  %vm1229 = vmor %vm1227, %vm1228
  %v1230 = vsel %vm1229, %v1222, %v1226
  %v1231 = vand.u32 2147483647, %v1032
  %vm1232 = vcmp.eq.f32.partialorder %v1231, 8.507059e+37
  %v1233 = vand.u32 %v1032, 2147483648
  %v1234 = vor.u32 1.1754944e-38, %v1233
  %v1235 = vsel %vm1232, %v1234, %v1230
  %v1236 = vmul.f32 %v987, %v1235
  %v1237 = vrcp.pop %v1035
  %v1238 = vmul.f32 %v1035, %v1237
  %v1239 = vsub.f32 1.0, %v1238
  %v1240 = vmul.f32 %v1237, %v1239
  %v1241 = vadd.f32 %v1237, %v1240
  %vm1242 = vweird.f32 %v1035
  %vm1243 = vweird.f32 %v1237
  %vm1244 = vmor %vm1242, %vm1243
  %v1245 = vsel %vm1244, %v1237, %v1241
  %v1246 = vand.u32 2147483647, %v1035
  %vm1247 = vcmp.eq.f32.partialorder %v1246, 8.507059e+37
  %v1248 = vand.u32 %v1035, 2147483648
  %v1249 = vor.u32 1.1754944e-38, %v1248
  %v1250 = vsel %vm1247, %v1249, %v1245
  %v1251 = vmul.f32 %v989, %v1250
  %v1252 = vrcp.pop %v1038
  %v1253 = vmul.f32 %v1038, %v1252
  %v1254 = vsub.f32 1.0, %v1253
  %v1255 = vmul.f32 %v1252, %v1254
  %v1256 = vadd.f32 %v1252, %v1255
  %vm1257 = vweird.f32 %v1038
  %vm1258 = vweird.f32 %v1252
  %vm1259 = vmor %vm1257, %vm1258
  %v1260 = vsel %vm1259, %v1252, %v1256
  %v1261 = vand.u32 2147483647, %v1038
  %vm1262 = vcmp.eq.f32.partialorder %v1261, 8.507059e+37
  %v1263 = vand.u32 %v1038, 2147483648
  %v1264 = vor.u32 1.1754944e-38, %v1263
  %v1265 = vsel %vm1262, %v1264, %v1260
  %v1266 = vmul.f32 %v991, %v1265
  %v1267 = vrcp.pop %v1041
  %v1268 = vmul.f32 %v1041, %v1267
  %v1269 = vsub.f32 1.0, %v1268
  %v1270 = vmul.f32 %v1267, %v1269
  %v1271 = vadd.f32 %v1267, %v1270
  %vm1272 = vweird.f32 %v1041
  %vm1273 = vweird.f32 %v1267
  %vm1274 = vmor %vm1272, %vm1273
  %v1275 = vsel %vm1274, %v1267, %v1271
  %v1276 = vand.u32 2147483647, %v1041
  %vm1277 = vcmp.eq.f32.partialorder %v1276, 8.507059e+37
  %v1278 = vand.u32 %v1041, 2147483648
  %v1279 = vor.u32 1.1754944e-38, %v1278
  %v1280 = vsel %vm1277, %v1279, %v1275
  %v1281 = vmul.f32 %v993, %v1280
  %1282 = vrot.lane.b32.xlu0 %v537, 64
  %v1283 = vpop.permute.xlu0 %1282
  %1284 = vrot.lane.b32.xlu0 %v540, 64
  %v1285 = vpop.permute.xlu0 %1284
  %v1289 = vsel %vm897, %v1056, 0
  %v1292 = vsel %vm897, %v1071, 0
  %1294 = vmatpush.msra.mxu0 0.0
  %1295 = vmatpush.msra.mxu0 0.0
  %1296 = vmatpush.msra.mxu0 0.0
  %1297 = vmatpush.msra.mxu0 0.0
  %1298 = vmatpush.msra.mxu0 0.0
  %1299 = vmatpush.msra.mxu0 0.0
  %1300 = vmatpush.msra.mxu0 0.0
  %1301 = vmatpush.msra.mxu0 0.0
  %1302 = vmatpush.msra.mxu0 0.0
  %1303 = vmatpush.msra.mxu0 0.0
  %1304 = vmatpush.msra.mxu0 0.0
  %1305 = vmatpush.msra.mxu0 0.0
  %1306 = vmatpush.msra.mxu0 0.0
  %1307 = vmatpush.msra.mxu0 0.0
  %1308 = vmatpush.msra.mxu0 %v1285
  %1309 = vmatpush.msra.mxu0 %v1283
  %1310 = vmatmul.f32.gmra.mxu0 %v1289
  %v1311 = vpop.f32.mrf.mxu0
  %v1312 = vadd.f32 0.0, %v1311
  %1313 = vmatmul.f32.gmra.mxu0 %v1292
  %v1314 = vpop.f32.mrf.mxu0
  %v1315 = vadd.f32 0.0, %v1314
  %1316 = vdwg.mxu0
  %1317 = vrot.lane.b32.xlu0 %v543, 64
  %v1318 = vpop.permute.xlu0 %1317
  %1319 = vrot.lane.b32.xlu0 %v546, 64
  %v1320 = vpop.permute.xlu0 %1319
  %v1324 = vsel %vm897, %v1086, 0
  %v1327 = vsel %vm897, %v1101, 0
  %1329 = vmatpush.msra.mxu0 0.0
  %1330 = vmatpush.msra.mxu0 0.0
  %1331 = vmatpush.msra.mxu0 0.0
  %1332 = vmatpush.msra.mxu0 0.0
  %1333 = vmatpush.msra.mxu0 0.0
  %1334 = vmatpush.msra.mxu0 0.0
  %1335 = vmatpush.msra.mxu0 0.0
  %1336 = vmatpush.msra.mxu0 0.0
  %1337 = vmatpush.msra.mxu0 0.0
  %1338 = vmatpush.msra.mxu0 0.0
  %1339 = vmatpush.msra.mxu0 0.0
  %1340 = vmatpush.msra.mxu0 0.0
  %1341 = vmatpush.msra.mxu0 0.0
  %1342 = vmatpush.msra.mxu0 0.0
  %1343 = vmatpush.msra.mxu0 %v1320
  %1344 = vmatpush.msra.mxu0 %v1318
  %1345 = vmatmul.f32.gmra.mxu0 %v1324
  %v1346 = vpop.f32.mrf.mxu0
  %v1347 = vadd.f32 0.0, %v1346
  %1348 = vmatmul.f32.gmra.mxu0 %v1327
  %v1349 = vpop.f32.mrf.mxu0
  %v1350 = vadd.f32 0.0, %v1349
  %1351 = vdwg.mxu0
  %1352 = vrot.lane.b32.xlu0 %v549, 64
  %v1353 = vpop.permute.xlu0 %1352
  %1354 = vrot.lane.b32.xlu0 %v552, 64
  %v1355 = vpop.permute.xlu0 %1354
  %v1359 = vsel %vm897, %v1116, 0
  %v1362 = vsel %vm897, %v1131, 0
  %1364 = vmatpush.msra.mxu0 0.0
  %1365 = vmatpush.msra.mxu0 0.0
  %1366 = vmatpush.msra.mxu0 0.0
  %1367 = vmatpush.msra.mxu0 0.0
  %1368 = vmatpush.msra.mxu0 0.0
  %1369 = vmatpush.msra.mxu0 0.0
  %1370 = vmatpush.msra.mxu0 0.0
  %1371 = vmatpush.msra.mxu0 0.0
  %1372 = vmatpush.msra.mxu0 0.0
  %1373 = vmatpush.msra.mxu0 0.0
  %1374 = vmatpush.msra.mxu0 0.0
  %1375 = vmatpush.msra.mxu0 0.0
  %1376 = vmatpush.msra.mxu0 0.0
  %1377 = vmatpush.msra.mxu0 0.0
  %1378 = vmatpush.msra.mxu0 %v1355
  %1379 = vmatpush.msra.mxu0 %v1353
  %1380 = vmatmul.f32.gmra.mxu0 %v1359
  %v1381 = vpop.f32.mrf.mxu0
  %v1382 = vadd.f32 0.0, %v1381
  %1383 = vmatmul.f32.gmra.mxu0 %v1362
  %v1384 = vpop.f32.mrf.mxu0
  %v1385 = vadd.f32 0.0, %v1384
  %1386 = vdwg.mxu0
  %1387 = vrot.lane.b32.xlu0 %v555, 64
  %v1388 = vpop.permute.xlu0 %1387
  %1389 = vrot.lane.b32.xlu0 %v558, 64
  %v1390 = vpop.permute.xlu0 %1389
  %v1394 = vsel %vm897, %v1146, 0
  %v1397 = vsel %vm897, %v1161, 0
  %1399 = vmatpush.msra.mxu0 0.0
  %1400 = vmatpush.msra.mxu0 0.0
  %1401 = vmatpush.msra.mxu0 0.0
  %1402 = vmatpush.msra.mxu0 0.0
  %1403 = vmatpush.msra.mxu0 0.0
  %1404 = vmatpush.msra.mxu0 0.0
  %1405 = vmatpush.msra.mxu0 0.0
  %1406 = vmatpush.msra.mxu0 0.0
  %1407 = vmatpush.msra.mxu0 0.0
  %1408 = vmatpush.msra.mxu0 0.0
  %1409 = vmatpush.msra.mxu0 0.0
  %1410 = vmatpush.msra.mxu0 0.0
  %1411 = vmatpush.msra.mxu0 0.0
  %1412 = vmatpush.msra.mxu0 0.0
  %1413 = vmatpush.msra.mxu0 %v1390
  %1414 = vmatpush.msra.mxu0 %v1388
  %1415 = vmatmul.f32.gmra.mxu0 %v1394
  %v1416 = vpop.f32.mrf.mxu0
  %v1417 = vadd.f32 0.0, %v1416
  %1418 = vmatmul.f32.gmra.mxu0 %v1397
  %v1419 = vpop.f32.mrf.mxu0
  %v1420 = vadd.f32 0.0, %v1419
  %1421 = vdwg.mxu0
  %1422 = vrot.lane.b32.xlu0 %v561, 64
  %v1423 = vpop.permute.xlu0 %1422
  %1424 = vrot.lane.b32.xlu0 %v564, 64
  %v1425 = vpop.permute.xlu0 %1424
  %v1429 = vsel %vm897, %v1176, 0
  %v1432 = vsel %vm897, %v1191, 0
  %1434 = vmatpush.msra.mxu0 0.0
  %1435 = vmatpush.msra.mxu0 0.0
  %1436 = vmatpush.msra.mxu0 0.0
  %1437 = vmatpush.msra.mxu0 0.0
  %1438 = vmatpush.msra.mxu0 0.0
  %1439 = vmatpush.msra.mxu0 0.0
  %1440 = vmatpush.msra.mxu0 0.0
  %1441 = vmatpush.msra.mxu0 0.0
  %1442 = vmatpush.msra.mxu0 0.0
  %1443 = vmatpush.msra.mxu0 0.0
  %1444 = vmatpush.msra.mxu0 0.0
  %1445 = vmatpush.msra.mxu0 0.0
  %1446 = vmatpush.msra.mxu0 0.0
  %1447 = vmatpush.msra.mxu0 0.0
  %1448 = vmatpush.msra.mxu0 %v1425
  %1449 = vmatpush.msra.mxu0 %v1423
  %1450 = vmatmul.f32.gmra.mxu0 %v1429
  %v1451 = vpop.f32.mrf.mxu0
  %v1452 = vadd.f32 0.0, %v1451
  %1453 = vmatmul.f32.gmra.mxu0 %v1432
  %v1454 = vpop.f32.mrf.mxu0
  %v1455 = vadd.f32 0.0, %v1454
  %1456 = vdwg.mxu0
  %1457 = vrot.lane.b32.xlu0 %v567, 64
  %v1458 = vpop.permute.xlu0 %1457
  %1459 = vrot.lane.b32.xlu0 %v570, 64
  %v1460 = vpop.permute.xlu0 %1459
  %v1464 = vsel %vm897, %v1206, 0
  %v1467 = vsel %vm897, %v1221, 0
  %1469 = vmatpush.msra.mxu0 0.0
  %1470 = vmatpush.msra.mxu0 0.0
  %1471 = vmatpush.msra.mxu0 0.0
  %1472 = vmatpush.msra.mxu0 0.0
  %1473 = vmatpush.msra.mxu0 0.0
  %1474 = vmatpush.msra.mxu0 0.0
  %1475 = vmatpush.msra.mxu0 0.0
  %1476 = vmatpush.msra.mxu0 0.0
  %1477 = vmatpush.msra.mxu0 0.0
  %1478 = vmatpush.msra.mxu0 0.0
  %1479 = vmatpush.msra.mxu0 0.0
  %1480 = vmatpush.msra.mxu0 0.0
  %1481 = vmatpush.msra.mxu0 0.0
  %1482 = vmatpush.msra.mxu0 0.0
  %1483 = vmatpush.msra.mxu0 %v1460
  %1484 = vmatpush.msra.mxu0 %v1458
  %1485 = vmatmul.f32.gmra.mxu0 %v1464
  %v1486 = vpop.f32.mrf.mxu0
  %v1487 = vadd.f32 0.0, %v1486
  %1488 = vmatmul.f32.gmra.mxu0 %v1467
  %v1489 = vpop.f32.mrf.mxu0
  %v1490 = vadd.f32 0.0, %v1489
  %1491 = vdwg.mxu0
  %1492 = vrot.lane.b32.xlu0 %v573, 64
  %v1493 = vpop.permute.xlu0 %1492
  %1494 = vrot.lane.b32.xlu0 %v576, 64
  %v1495 = vpop.permute.xlu0 %1494
  %v1499 = vsel %vm897, %v1236, 0
  %v1502 = vsel %vm897, %v1251, 0
  %1504 = vmatpush.msra.mxu0 0.0
  %1505 = vmatpush.msra.mxu0 0.0
  %1506 = vmatpush.msra.mxu0 0.0
  %1507 = vmatpush.msra.mxu0 0.0
  %1508 = vmatpush.msra.mxu0 0.0
  %1509 = vmatpush.msra.mxu0 0.0
  %1510 = vmatpush.msra.mxu0 0.0
  %1511 = vmatpush.msra.mxu0 0.0
  %1512 = vmatpush.msra.mxu0 0.0
  %1513 = vmatpush.msra.mxu0 0.0
  %1514 = vmatpush.msra.mxu0 0.0
  %1515 = vmatpush.msra.mxu0 0.0
  %1516 = vmatpush.msra.mxu0 0.0
  %1517 = vmatpush.msra.mxu0 0.0
  %1518 = vmatpush.msra.mxu0 %v1495
  %1519 = vmatpush.msra.mxu0 %v1493
  %1520 = vmatmul.f32.gmra.mxu0 %v1499
  %v1521 = vpop.f32.mrf.mxu0
  %v1522 = vadd.f32 0.0, %v1521
  %1523 = vmatmul.f32.gmra.mxu0 %v1502
  %v1524 = vpop.f32.mrf.mxu0
  %v1525 = vadd.f32 0.0, %v1524
  %1526 = vdwg.mxu0
  %1527 = vrot.lane.b32.xlu0 %v579, 64
  %v1528 = vpop.permute.xlu0 %1527
  %1529 = vrot.lane.b32.xlu0 %v582, 64
  %v1530 = vpop.permute.xlu0 %1529
  %v1534 = vsel %vm897, %v1266, 0
  %v1537 = vsel %vm897, %v1281, 0
  %1539 = vmatpush.msra.mxu0 0.0
  %1540 = vmatpush.msra.mxu0 0.0
  %1541 = vmatpush.msra.mxu0 0.0
  %1542 = vmatpush.msra.mxu0 0.0
  %1543 = vmatpush.msra.mxu0 0.0
  %1544 = vmatpush.msra.mxu0 0.0
  %1545 = vmatpush.msra.mxu0 0.0
  %1546 = vmatpush.msra.mxu0 0.0
  %1547 = vmatpush.msra.mxu0 0.0
  %1548 = vmatpush.msra.mxu0 0.0
  %1549 = vmatpush.msra.mxu0 0.0
  %1550 = vmatpush.msra.mxu0 0.0
  %1551 = vmatpush.msra.mxu0 0.0
  %1552 = vmatpush.msra.mxu0 0.0
  %1553 = vmatpush.msra.mxu0 %v1530
  %1554 = vmatpush.msra.mxu0 %v1528
  %1555 = vmatmul.f32.gmra.mxu0 %v1534
  %v1556 = vpop.f32.mrf.mxu0
  %v1557 = vadd.f32 0.0, %v1556
  %1558 = vmatmul.f32.gmra.mxu0 %v1537
  %v1559 = vpop.f32.mrf.mxu0
  %v1560 = vadd.f32 0.0, %v1559
  %1561 = vdwg.mxu0
  %v1562 = vld [vmem:[%s6] sm:$0xff]
  %s1563 = scalar_lea.vmem %s5, 128
  %v1564 = vld [vmem:[%s1563] sm:$0xff]
  %v1565 = vld [vmem:[%s1563 + $0x8] sm:$0xff]
  %v1566 = vld [vmem:[%s1563 + $0x10] sm:$0xff]
  %v1567 = vld [vmem:[%s1563 + $0x18] sm:$0xff]
  %v1568 = vld [vmem:[%s1563 + $0x20] sm:$0xff]
  %v1569 = vld [vmem:[%s1563 + $0x28] sm:$0xff]
  %v1570 = vld [vmem:[%s1563 + $0x30] sm:$0xff]
  %v1571 = vld [vmem:[%s1563 + $0x38] sm:$0xff]
  %v1572 = vld [vmem:[%s1563 + $0x40] sm:$0xff]
  %v1573 = vld [vmem:[%s1563 + $0x48] sm:$0xff]
  %v1574 = vld [vmem:[%s1563 + $0x50] sm:$0xff]
  %v1575 = vld [vmem:[%s1563 + $0x58] sm:$0xff]
  %v1576 = vld [vmem:[%s1563 + $0x60] sm:$0xff]
  %v1577 = vld [vmem:[%s1563 + $0x68] sm:$0xff]
  %v1578 = vld [vmem:[%s1563 + $0x70] sm:$0xff]
  %v1579 = vld [vmem:[%s1563 + $0x78] sm:$0xff]
  %1580 = vrot.lane.b32.xlu0 %v537, 120
  %v1581 = vpop.permute.xlu0 %1580
  %1582 = vrot.lane.b32.xlu0 %v540, 120
  %v1583 = vpop.permute.xlu0 %1582
  %1584 = vrot.lane.b32.xlu0 %v537, 88
  %v1585 = vpop.permute.xlu0 %1584
  %1586 = vrot.lane.b32.xlu0 %v540, 88
  %v1587 = vpop.permute.xlu0 %1586
  %v1588 = vsel %vm606, %v1581, 0
  %v1590 = vsel %vm606, %v1583, 0
  %v1592 = vsel %vm606, %v1585, 0
  %v1594 = vsel %vm606, %v1587, 0
  %1596 = vmatpush.xpose.msra.mxu0 0.0
  %1597 = vmatpush.xpose.msra.mxu0 0.0
  %1598 = vmatpush.xpose.msra.mxu0 0.0
  %1599 = vmatpush.xpose.msra.mxu0 0.0
  %1600 = vmatpush.xpose.msra.mxu0 0.0
  %1601 = vmatpush.xpose.msra.mxu0 0.0
  %1602 = vmatpush.xpose.msra.mxu0 0.0
  %1603 = vmatpush.xpose.msra.mxu0 0.0
  %1604 = vmatpush.xpose.msra.mxu0 0.0
  %1605 = vmatpush.xpose.msra.mxu0 0.0
  %1606 = vmatpush.xpose.msra.mxu0 0.0
  %1607 = vmatpush.xpose.msra.mxu0 0.0
  %1608 = vmatpush.xpose.msra.mxu0 0.0
  %1609 = vmatpush.xpose.msra.mxu0 0.0
  %1610 = vmatpush.xpose.msra.mxu0 %v1594
  %1611 = vmatpush.xpose.msra.mxu0 %v1592
  %1612 = vmatmul.f32.gmra.mxu0 %v1588
  %v1613 = vpop.f32.mrf.mxu0
  %v1614 = vadd.f32 %v1564, %v1613
  %1615 = vmatmul.f32.gmra.mxu0 %v1590
  %v1616 = vpop.f32.mrf.mxu0
  %v1617 = vadd.f32 %v1565, %v1616
  %1618 = vdwg.mxu0
  %1619 = vrot.lane.b32.xlu0 %v543, 120
  %v1620 = vpop.permute.xlu0 %1619
  %1621 = vrot.lane.b32.xlu0 %v546, 120
  %v1622 = vpop.permute.xlu0 %1621
  %1623 = vrot.lane.b32.xlu0 %v543, 88
  %v1624 = vpop.permute.xlu0 %1623
  %1625 = vrot.lane.b32.xlu0 %v546, 88
  %v1626 = vpop.permute.xlu0 %1625
  %v1627 = vsel %vm606, %v1620, 0
  %v1629 = vsel %vm606, %v1622, 0
  %v1631 = vsel %vm606, %v1624, 0
  %v1633 = vsel %vm606, %v1626, 0
  %1635 = vmatpush.xpose.msra.mxu0 0.0
  %1636 = vmatpush.xpose.msra.mxu0 0.0
  %1637 = vmatpush.xpose.msra.mxu0 0.0
  %1638 = vmatpush.xpose.msra.mxu0 0.0
  %1639 = vmatpush.xpose.msra.mxu0 0.0
  %1640 = vmatpush.xpose.msra.mxu0 0.0
  %1641 = vmatpush.xpose.msra.mxu0 0.0
  %1642 = vmatpush.xpose.msra.mxu0 0.0
  %1643 = vmatpush.xpose.msra.mxu0 0.0
  %1644 = vmatpush.xpose.msra.mxu0 0.0
  %1645 = vmatpush.xpose.msra.mxu0 0.0
  %1646 = vmatpush.xpose.msra.mxu0 0.0
  %1647 = vmatpush.xpose.msra.mxu0 0.0
  %1648 = vmatpush.xpose.msra.mxu0 0.0
  %1649 = vmatpush.xpose.msra.mxu0 %v1633
  %1650 = vmatpush.xpose.msra.mxu0 %v1631
  %1651 = vmatmul.f32.gmra.mxu0 %v1627
  %v1652 = vpop.f32.mrf.mxu0
  %v1653 = vadd.f32 %v1566, %v1652
  %1654 = vmatmul.f32.gmra.mxu0 %v1629
  %v1655 = vpop.f32.mrf.mxu0
  %v1656 = vadd.f32 %v1567, %v1655
  %1657 = vdwg.mxu0
  %1658 = vrot.lane.b32.xlu0 %v549, 120
  %v1659 = vpop.permute.xlu0 %1658
  %1660 = vrot.lane.b32.xlu0 %v552, 120
  %v1661 = vpop.permute.xlu0 %1660
  %1662 = vrot.lane.b32.xlu0 %v549, 88
  %v1663 = vpop.permute.xlu0 %1662
  %1664 = vrot.lane.b32.xlu0 %v552, 88
  %v1665 = vpop.permute.xlu0 %1664
  %v1666 = vsel %vm606, %v1659, 0
  %v1668 = vsel %vm606, %v1661, 0
  %v1670 = vsel %vm606, %v1663, 0
  %v1672 = vsel %vm606, %v1665, 0
  %1674 = vmatpush.xpose.msra.mxu0 0.0
  %1675 = vmatpush.xpose.msra.mxu0 0.0
  %1676 = vmatpush.xpose.msra.mxu0 0.0
  %1677 = vmatpush.xpose.msra.mxu0 0.0
  %1678 = vmatpush.xpose.msra.mxu0 0.0
  %1679 = vmatpush.xpose.msra.mxu0 0.0
  %1680 = vmatpush.xpose.msra.mxu0 0.0
  %1681 = vmatpush.xpose.msra.mxu0 0.0
  %1682 = vmatpush.xpose.msra.mxu0 0.0
  %1683 = vmatpush.xpose.msra.mxu0 0.0
  %1684 = vmatpush.xpose.msra.mxu0 0.0
  %1685 = vmatpush.xpose.msra.mxu0 0.0
  %1686 = vmatpush.xpose.msra.mxu0 0.0
  %1687 = vmatpush.xpose.msra.mxu0 0.0
  %1688 = vmatpush.xpose.msra.mxu0 %v1672
  %1689 = vmatpush.xpose.msra.mxu0 %v1670
  %1690 = vmatmul.f32.gmra.mxu0 %v1666
  %v1691 = vpop.f32.mrf.mxu0
  %v1692 = vadd.f32 %v1568, %v1691
  %1693 = vmatmul.f32.gmra.mxu0 %v1668
  %v1694 = vpop.f32.mrf.mxu0
  %v1695 = vadd.f32 %v1569, %v1694
  %1696 = vdwg.mxu0
  %1697 = vrot.lane.b32.xlu0 %v555, 120
  %v1698 = vpop.permute.xlu0 %1697
  %1699 = vrot.lane.b32.xlu0 %v558, 120
  %v1700 = vpop.permute.xlu0 %1699
  %1701 = vrot.lane.b32.xlu0 %v555, 88
  %v1702 = vpop.permute.xlu0 %1701
  %1703 = vrot.lane.b32.xlu0 %v558, 88
  %v1704 = vpop.permute.xlu0 %1703
  %v1705 = vsel %vm606, %v1698, 0
  %v1707 = vsel %vm606, %v1700, 0
  %v1709 = vsel %vm606, %v1702, 0
  %v1711 = vsel %vm606, %v1704, 0
  %1713 = vmatpush.xpose.msra.mxu0 0.0
  %1714 = vmatpush.xpose.msra.mxu0 0.0
  %1715 = vmatpush.xpose.msra.mxu0 0.0
  %1716 = vmatpush.xpose.msra.mxu0 0.0
  %1717 = vmatpush.xpose.msra.mxu0 0.0
  %1718 = vmatpush.xpose.msra.mxu0 0.0
  %1719 = vmatpush.xpose.msra.mxu0 0.0
  %1720 = vmatpush.xpose.msra.mxu0 0.0
  %1721 = vmatpush.xpose.msra.mxu0 0.0
  %1722 = vmatpush.xpose.msra.mxu0 0.0
  %1723 = vmatpush.xpose.msra.mxu0 0.0
  %1724 = vmatpush.xpose.msra.mxu0 0.0
  %1725 = vmatpush.xpose.msra.mxu0 0.0
  %1726 = vmatpush.xpose.msra.mxu0 0.0
  %1727 = vmatpush.xpose.msra.mxu0 %v1711
  %1728 = vmatpush.xpose.msra.mxu0 %v1709
  %1729 = vmatmul.f32.gmra.mxu0 %v1705
  %v1730 = vpop.f32.mrf.mxu0
  %v1731 = vadd.f32 %v1570, %v1730
  %1732 = vmatmul.f32.gmra.mxu0 %v1707
  %v1733 = vpop.f32.mrf.mxu0
  %v1734 = vadd.f32 %v1571, %v1733
  %1735 = vdwg.mxu0
  %1736 = vrot.lane.b32.xlu0 %v561, 120
  %v1737 = vpop.permute.xlu0 %1736
  %1738 = vrot.lane.b32.xlu0 %v564, 120
  %v1739 = vpop.permute.xlu0 %1738
  %1740 = vrot.lane.b32.xlu0 %v561, 88
  %v1741 = vpop.permute.xlu0 %1740
  %1742 = vrot.lane.b32.xlu0 %v564, 88
  %v1743 = vpop.permute.xlu0 %1742
  %v1744 = vsel %vm606, %v1737, 0
  %v1746 = vsel %vm606, %v1739, 0
  %v1748 = vsel %vm606, %v1741, 0
  %v1750 = vsel %vm606, %v1743, 0
  %1752 = vmatpush.xpose.msra.mxu0 0.0
  %1753 = vmatpush.xpose.msra.mxu0 0.0
  %1754 = vmatpush.xpose.msra.mxu0 0.0
  %1755 = vmatpush.xpose.msra.mxu0 0.0
  %1756 = vmatpush.xpose.msra.mxu0 0.0
  %1757 = vmatpush.xpose.msra.mxu0 0.0
  %1758 = vmatpush.xpose.msra.mxu0 0.0
  %1759 = vmatpush.xpose.msra.mxu0 0.0
  %1760 = vmatpush.xpose.msra.mxu0 0.0
  %1761 = vmatpush.xpose.msra.mxu0 0.0
  %1762 = vmatpush.xpose.msra.mxu0 0.0
  %1763 = vmatpush.xpose.msra.mxu0 0.0
  %1764 = vmatpush.xpose.msra.mxu0 0.0
  %1765 = vmatpush.xpose.msra.mxu0 0.0
  %1766 = vmatpush.xpose.msra.mxu0 %v1750
  %1767 = vmatpush.xpose.msra.mxu0 %v1748
  %1768 = vmatmul.f32.gmra.mxu0 %v1744
  %v1769 = vpop.f32.mrf.mxu0
  %v1770 = vadd.f32 %v1572, %v1769
  %1771 = vmatmul.f32.gmra.mxu0 %v1746
  %v1772 = vpop.f32.mrf.mxu0
  %v1773 = vadd.f32 %v1573, %v1772
  %1774 = vdwg.mxu0
  %1775 = vrot.lane.b32.xlu0 %v567, 120
  %v1776 = vpop.permute.xlu0 %1775
  %1777 = vrot.lane.b32.xlu0 %v570, 120
  %v1778 = vpop.permute.xlu0 %1777
  %1779 = vrot.lane.b32.xlu0 %v567, 88
  %v1780 = vpop.permute.xlu0 %1779
  %1781 = vrot.lane.b32.xlu0 %v570, 88
  %v1782 = vpop.permute.xlu0 %1781
  %v1783 = vsel %vm606, %v1776, 0
  %v1785 = vsel %vm606, %v1778, 0
  %v1787 = vsel %vm606, %v1780, 0
  %v1789 = vsel %vm606, %v1782, 0
  %1791 = vmatpush.xpose.msra.mxu0 0.0
  %1792 = vmatpush.xpose.msra.mxu0 0.0
  %1793 = vmatpush.xpose.msra.mxu0 0.0
  %1794 = vmatpush.xpose.msra.mxu0 0.0
  %1795 = vmatpush.xpose.msra.mxu0 0.0
  %1796 = vmatpush.xpose.msra.mxu0 0.0
  %1797 = vmatpush.xpose.msra.mxu0 0.0
  %1798 = vmatpush.xpose.msra.mxu0 0.0
  %1799 = vmatpush.xpose.msra.mxu0 0.0
  %1800 = vmatpush.xpose.msra.mxu0 0.0
  %1801 = vmatpush.xpose.msra.mxu0 0.0
  %1802 = vmatpush.xpose.msra.mxu0 0.0
  %1803 = vmatpush.xpose.msra.mxu0 0.0
  %1804 = vmatpush.xpose.msra.mxu0 0.0
  %1805 = vmatpush.xpose.msra.mxu0 %v1789
  %1806 = vmatpush.xpose.msra.mxu0 %v1787
  %1807 = vmatmul.f32.gmra.mxu0 %v1783
  %v1808 = vpop.f32.mrf.mxu0
  %v1809 = vadd.f32 %v1574, %v1808
  %1810 = vmatmul.f32.gmra.mxu0 %v1785
  %v1811 = vpop.f32.mrf.mxu0
  %v1812 = vadd.f32 %v1575, %v1811
  %1813 = vdwg.mxu0
  %1814 = vrot.lane.b32.xlu0 %v573, 120
  %v1815 = vpop.permute.xlu0 %1814
  %1816 = vrot.lane.b32.xlu0 %v576, 120
  %v1817 = vpop.permute.xlu0 %1816
  %1818 = vrot.lane.b32.xlu0 %v573, 88
  %v1819 = vpop.permute.xlu0 %1818
  %1820 = vrot.lane.b32.xlu0 %v576, 88
  %v1821 = vpop.permute.xlu0 %1820
  %v1822 = vsel %vm606, %v1815, 0
  %v1824 = vsel %vm606, %v1817, 0
  %v1826 = vsel %vm606, %v1819, 0
  %v1828 = vsel %vm606, %v1821, 0
  %1830 = vmatpush.xpose.msra.mxu0 0.0
  %1831 = vmatpush.xpose.msra.mxu0 0.0
  %1832 = vmatpush.xpose.msra.mxu0 0.0
  %1833 = vmatpush.xpose.msra.mxu0 0.0
  %1834 = vmatpush.xpose.msra.mxu0 0.0
  %1835 = vmatpush.xpose.msra.mxu0 0.0
  %1836 = vmatpush.xpose.msra.mxu0 0.0
  %1837 = vmatpush.xpose.msra.mxu0 0.0
  %1838 = vmatpush.xpose.msra.mxu0 0.0
  %1839 = vmatpush.xpose.msra.mxu0 0.0
  %1840 = vmatpush.xpose.msra.mxu0 0.0
  %1841 = vmatpush.xpose.msra.mxu0 0.0
  %1842 = vmatpush.xpose.msra.mxu0 0.0
  %1843 = vmatpush.xpose.msra.mxu0 0.0
  %1844 = vmatpush.xpose.msra.mxu0 %v1828
  %1845 = vmatpush.xpose.msra.mxu0 %v1826
  %1846 = vmatmul.f32.gmra.mxu0 %v1822
  %v1847 = vpop.f32.mrf.mxu0
  %v1848 = vadd.f32 %v1576, %v1847
  %1849 = vmatmul.f32.gmra.mxu0 %v1824
  %v1850 = vpop.f32.mrf.mxu0
  %v1851 = vadd.f32 %v1577, %v1850
  %1852 = vdwg.mxu0
  %1853 = vrot.lane.b32.xlu0 %v579, 120
  %v1854 = vpop.permute.xlu0 %1853
  %1855 = vrot.lane.b32.xlu0 %v582, 120
  %v1856 = vpop.permute.xlu0 %1855
  %1857 = vrot.lane.b32.xlu0 %v579, 88
  %v1858 = vpop.permute.xlu0 %1857
  %1859 = vrot.lane.b32.xlu0 %v582, 88
  %v1860 = vpop.permute.xlu0 %1859
  %v1861 = vsel %vm606, %v1854, 0
  %v1863 = vsel %vm606, %v1856, 0
  %v1865 = vsel %vm606, %v1858, 0
  %v1867 = vsel %vm606, %v1860, 0
  %1869 = vmatpush.xpose.msra.mxu0 0.0
  %1870 = vmatpush.xpose.msra.mxu0 0.0
  %1871 = vmatpush.xpose.msra.mxu0 0.0
  %1872 = vmatpush.xpose.msra.mxu0 0.0
  %1873 = vmatpush.xpose.msra.mxu0 0.0
  %1874 = vmatpush.xpose.msra.mxu0 0.0
  %1875 = vmatpush.xpose.msra.mxu0 0.0
  %1876 = vmatpush.xpose.msra.mxu0 0.0
  %1877 = vmatpush.xpose.msra.mxu0 0.0
  %1878 = vmatpush.xpose.msra.mxu0 0.0
  %1879 = vmatpush.xpose.msra.mxu0 0.0
  %1880 = vmatpush.xpose.msra.mxu0 0.0
  %1881 = vmatpush.xpose.msra.mxu0 0.0
  %1882 = vmatpush.xpose.msra.mxu0 0.0
  %1883 = vmatpush.xpose.msra.mxu0 %v1867
  %1884 = vmatpush.xpose.msra.mxu0 %v1865
  %1885 = vmatmul.f32.gmra.mxu0 %v1861
  %v1886 = vpop.f32.mrf.mxu0
  %v1887 = vadd.f32 %v1578, %v1886
  %1888 = vmatmul.f32.gmra.mxu0 %v1863
  %v1889 = vpop.f32.mrf.mxu0
  %v1890 = vadd.f32 %v1579, %v1889
  %1891 = vdwg.mxu0
  %v1892 = vsel %vm897, %v1614, -inf
  %1893 = vmax.xlane.f32.xlu0 %v1892
  %v1894 = vpop.xlane.xlu0 %1893
  %v1895 = vsel %vm897, %v1617, -inf
  %1896 = vmax.xlane.f32.xlu0 %v1895
  %v1897 = vpop.xlane.xlu0 %1896
  %v1898 = vsel %vm897, %v1653, -inf
  %1899 = vmax.xlane.f32.xlu0 %v1898
  %v1900 = vpop.xlane.xlu0 %1899
  %v1901 = vsel %vm897, %v1656, -inf
  %1902 = vmax.xlane.f32.xlu0 %v1901
  %v1903 = vpop.xlane.xlu0 %1902
  %v1904 = vsel %vm897, %v1692, -inf
  %1905 = vmax.xlane.f32.xlu0 %v1904
  %v1906 = vpop.xlane.xlu0 %1905
  %v1907 = vsel %vm897, %v1695, -inf
  %1908 = vmax.xlane.f32.xlu0 %v1907
  %v1909 = vpop.xlane.xlu0 %1908
  %v1910 = vsel %vm897, %v1731, -inf
  %1911 = vmax.xlane.f32.xlu0 %v1910
  %v1912 = vpop.xlane.xlu0 %1911
  %v1913 = vsel %vm897, %v1734, -inf
  %1914 = vmax.xlane.f32.xlu0 %v1913
  %v1915 = vpop.xlane.xlu0 %1914
  %v1916 = vsel %vm897, %v1770, -inf
  %1917 = vmax.xlane.f32.xlu0 %v1916
  %v1918 = vpop.xlane.xlu0 %1917
  %v1919 = vsel %vm897, %v1773, -inf
  %1920 = vmax.xlane.f32.xlu0 %v1919
  %v1921 = vpop.xlane.xlu0 %1920
  %v1922 = vsel %vm897, %v1809, -inf
  %1923 = vmax.xlane.f32.xlu0 %v1922
  %v1924 = vpop.xlane.xlu0 %1923
  %v1925 = vsel %vm897, %v1812, -inf
  %1926 = vmax.xlane.f32.xlu0 %v1925
  %v1927 = vpop.xlane.xlu0 %1926
  %v1928 = vsel %vm897, %v1848, -inf
  %1929 = vmax.xlane.f32.xlu0 %v1928
  %v1930 = vpop.xlane.xlu0 %1929
  %v1931 = vsel %vm897, %v1851, -inf
  %1932 = vmax.xlane.f32.xlu0 %v1931
  %v1933 = vpop.xlane.xlu0 %1932
  %v1934 = vsel %vm897, %v1887, -inf
  %1935 = vmax.xlane.f32.xlu0 %v1934
  %v1936 = vpop.xlane.xlu0 %1935
  %v1937 = vsel %vm897, %v1890, -inf
  %1938 = vmax.xlane.f32.xlu0 %v1937
  %v1939 = vpop.xlane.xlu0 %1938
  %v1940 = vsub.f32 %v1614, %v1894
  %v1941 = vsub.f32 %v1617, %v1897
  %v1942 = vsub.f32 %v1653, %v1900
  %v1943 = vsub.f32 %v1656, %v1903
  %v1944 = vsub.f32 %v1692, %v1906
  %v1945 = vsub.f32 %v1695, %v1909
  %v1946 = vsub.f32 %v1731, %v1912
  %v1947 = vsub.f32 %v1734, %v1915
  %v1948 = vsub.f32 %v1770, %v1918
  %v1949 = vsub.f32 %v1773, %v1921
  %v1950 = vsub.f32 %v1809, %v1924
  %v1951 = vsub.f32 %v1812, %v1927
  %v1952 = vsub.f32 %v1848, %v1930
  %v1953 = vsub.f32 %v1851, %v1933
  %v1954 = vsub.f32 %v1887, %v1936
  %v1955 = vsub.f32 %v1890, %v1939
  %v1956 = vmul.f32 %v1940, 1.442695
  %v1957 = vpow.pop %v1956
  %v1958 = vmul.f32 %v1941, 1.442695
  %v1959 = vpow.pop %v1958
  %v1960 = vmul.f32 %v1942, 1.442695
  %v1961 = vpow.pop %v1960
  %v1962 = vmul.f32 %v1943, 1.442695
  %v1963 = vpow.pop %v1962
  %v1964 = vmul.f32 %v1944, 1.442695
  %v1965 = vpow.pop %v1964
  %v1966 = vmul.f32 %v1945, 1.442695
  %v1967 = vpow.pop %v1966
  %v1968 = vmul.f32 %v1946, 1.442695
  %v1969 = vpow.pop %v1968
  %v1970 = vmul.f32 %v1947, 1.442695
  %v1971 = vpow.pop %v1970
  %v1972 = vmul.f32 %v1948, 1.442695
  %v1973 = vpow.pop %v1972
  %v1974 = vmul.f32 %v1949, 1.442695
  %v1975 = vpow.pop %v1974
  %v1976 = vmul.f32 %v1950, 1.442695
  %v1977 = vpow.pop %v1976
  %v1978 = vmul.f32 %v1951, 1.442695
  %v1979 = vpow.pop %v1978
  %v1980 = vmul.f32 %v1952, 1.442695
  %v1981 = vpow.pop %v1980
  %v1982 = vmul.f32 %v1953, 1.442695
  %v1983 = vpow.pop %v1982
  %v1984 = vmul.f32 %v1954, 1.442695
  %v1985 = vpow.pop %v1984
  %v1986 = vmul.f32 %v1955, 1.442695
  %v1987 = vpow.pop %v1986
  %v1988 = vsel %vm897, %v1957, 0.0
  %1989 = vadd.xlane.f32.xlu0 %v1988
  %v1990 = vpop.xlane.xlu0 %1989
  %v1991 = vsel %vm897, %v1959, 0.0
  %1992 = vadd.xlane.f32.xlu0 %v1991
  %v1993 = vpop.xlane.xlu0 %1992
  %v1994 = vsel %vm897, %v1961, 0.0
  %1995 = vadd.xlane.f32.xlu0 %v1994
  %v1996 = vpop.xlane.xlu0 %1995
  %v1997 = vsel %vm897, %v1963, 0.0
  %1998 = vadd.xlane.f32.xlu0 %v1997
  %v1999 = vpop.xlane.xlu0 %1998
  %v2000 = vsel %vm897, %v1965, 0.0
  %2001 = vadd.xlane.f32.xlu0 %v2000
  %v2002 = vpop.xlane.xlu0 %2001
  %v2003 = vsel %vm897, %v1967, 0.0
  %2004 = vadd.xlane.f32.xlu0 %v2003
  %v2005 = vpop.xlane.xlu0 %2004
  %v2006 = vsel %vm897, %v1969, 0.0
  %2007 = vadd.xlane.f32.xlu0 %v2006
  %v2008 = vpop.xlane.xlu0 %2007
  %v2009 = vsel %vm897, %v1971, 0.0
  %2010 = vadd.xlane.f32.xlu0 %v2009
  %v2011 = vpop.xlane.xlu0 %2010
  %v2012 = vsel %vm897, %v1973, 0.0
  %2013 = vadd.xlane.f32.xlu0 %v2012
  %v2014 = vpop.xlane.xlu0 %2013
  %v2015 = vsel %vm897, %v1975, 0.0
  %2016 = vadd.xlane.f32.xlu0 %v2015
  %v2017 = vpop.xlane.xlu0 %2016
  %v2018 = vsel %vm897, %v1977, 0.0
  %2019 = vadd.xlane.f32.xlu0 %v2018
  %v2020 = vpop.xlane.xlu0 %2019
  %v2021 = vsel %vm897, %v1979, 0.0
  %2022 = vadd.xlane.f32.xlu0 %v2021
  %v2023 = vpop.xlane.xlu0 %2022
  %v2024 = vsel %vm897, %v1981, 0.0
  %2025 = vadd.xlane.f32.xlu0 %v2024
  %v2026 = vpop.xlane.xlu0 %2025
  %v2027 = vsel %vm897, %v1983, 0.0
  %2028 = vadd.xlane.f32.xlu0 %v2027
  %v2029 = vpop.xlane.xlu0 %2028
  %v2030 = vsel %vm897, %v1985, 0.0
  %2031 = vadd.xlane.f32.xlu0 %v2030
  %v2032 = vpop.xlane.xlu0 %2031
  %v2033 = vsel %vm897, %v1987, 0.0
  %2034 = vadd.xlane.f32.xlu0 %v2033
  %v2035 = vpop.xlane.xlu0 %2034
  %v2036 = vrcp.pop %v1990
  %v2037 = vmul.f32 %v1990, %v2036
  %v2038 = vsub.f32 1.0, %v2037
  %v2039 = vmul.f32 %v2036, %v2038
  %v2040 = vadd.f32 %v2036, %v2039
  %vm2041 = vweird.f32 %v1990
  %vm2042 = vweird.f32 %v2036
  %vm2043 = vmor %vm2041, %vm2042
  %v2044 = vsel %vm2043, %v2036, %v2040
  %v2045 = vand.u32 2147483647, %v1990
  %vm2046 = vcmp.eq.f32.partialorder %v2045, 8.507059e+37
  %v2047 = vand.u32 %v1990, 2147483648
  %v2048 = vor.u32 1.1754944e-38, %v2047
  %v2049 = vsel %vm2046, %v2048, %v2044
  %v2050 = vmul.f32 %v1957, %v2049
  %v2051 = vrcp.pop %v1993
  %v2052 = vmul.f32 %v1993, %v2051
  %v2053 = vsub.f32 1.0, %v2052
  %v2054 = vmul.f32 %v2051, %v2053
  %v2055 = vadd.f32 %v2051, %v2054
  %vm2056 = vweird.f32 %v1993
  %vm2057 = vweird.f32 %v2051
  %vm2058 = vmor %vm2056, %vm2057
  %v2059 = vsel %vm2058, %v2051, %v2055
  %v2060 = vand.u32 2147483647, %v1993
  %vm2061 = vcmp.eq.f32.partialorder %v2060, 8.507059e+37
  %v2062 = vand.u32 %v1993, 2147483648
  %v2063 = vor.u32 1.1754944e-38, %v2062
  %v2064 = vsel %vm2061, %v2063, %v2059
  %v2065 = vmul.f32 %v1959, %v2064
  %v2066 = vrcp.pop %v1996
  %v2067 = vmul.f32 %v1996, %v2066
  %v2068 = vsub.f32 1.0, %v2067
  %v2069 = vmul.f32 %v2066, %v2068
  %v2070 = vadd.f32 %v2066, %v2069
  %vm2071 = vweird.f32 %v1996
  %vm2072 = vweird.f32 %v2066
  %vm2073 = vmor %vm2071, %vm2072
  %v2074 = vsel %vm2073, %v2066, %v2070
  %v2075 = vand.u32 2147483647, %v1996
  %vm2076 = vcmp.eq.f32.partialorder %v2075, 8.507059e+37
  %v2077 = vand.u32 %v1996, 2147483648
  %v2078 = vor.u32 1.1754944e-38, %v2077
  %v2079 = vsel %vm2076, %v2078, %v2074
  %v2080 = vmul.f32 %v1961, %v2079
  %v2081 = vrcp.pop %v1999
  %v2082 = vmul.f32 %v1999, %v2081
  %v2083 = vsub.f32 1.0, %v2082
  %v2084 = vmul.f32 %v2081, %v2083
  %v2085 = vadd.f32 %v2081, %v2084
  %vm2086 = vweird.f32 %v1999
  %vm2087 = vweird.f32 %v2081
  %vm2088 = vmor %vm2086, %vm2087
  %v2089 = vsel %vm2088, %v2081, %v2085
  %v2090 = vand.u32 2147483647, %v1999
  %vm2091 = vcmp.eq.f32.partialorder %v2090, 8.507059e+37
  %v2092 = vand.u32 %v1999, 2147483648
  %v2093 = vor.u32 1.1754944e-38, %v2092
  %v2094 = vsel %vm2091, %v2093, %v2089
  %v2095 = vmul.f32 %v1963, %v2094
  %v2096 = vrcp.pop %v2002
  %v2097 = vmul.f32 %v2002, %v2096
  %v2098 = vsub.f32 1.0, %v2097
  %v2099 = vmul.f32 %v2096, %v2098
  %v2100 = vadd.f32 %v2096, %v2099
  %vm2101 = vweird.f32 %v2002
  %vm2102 = vweird.f32 %v2096
  %vm2103 = vmor %vm2101, %vm2102
  %v2104 = vsel %vm2103, %v2096, %v2100
  %v2105 = vand.u32 2147483647, %v2002
  %vm2106 = vcmp.eq.f32.partialorder %v2105, 8.507059e+37
  %v2107 = vand.u32 %v2002, 2147483648
  %v2108 = vor.u32 1.1754944e-38, %v2107
  %v2109 = vsel %vm2106, %v2108, %v2104
  %v2110 = vmul.f32 %v1965, %v2109
  %v2111 = vrcp.pop %v2005
  %v2112 = vmul.f32 %v2005, %v2111
  %v2113 = vsub.f32 1.0, %v2112
  %v2114 = vmul.f32 %v2111, %v2113
  %v2115 = vadd.f32 %v2111, %v2114
  %vm2116 = vweird.f32 %v2005
  %vm2117 = vweird.f32 %v2111
  %vm2118 = vmor %vm2116, %vm2117
  %v2119 = vsel %vm2118, %v2111, %v2115
  %v2120 = vand.u32 2147483647, %v2005
  %vm2121 = vcmp.eq.f32.partialorder %v2120, 8.507059e+37
  %v2122 = vand.u32 %v2005, 2147483648
  %v2123 = vor.u32 1.1754944e-38, %v2122
  %v2124 = vsel %vm2121, %v2123, %v2119
  %v2125 = vmul.f32 %v1967, %v2124
  %v2126 = vrcp.pop %v2008
  %v2127 = vmul.f32 %v2008, %v2126
  %v2128 = vsub.f32 1.0, %v2127
  %v2129 = vmul.f32 %v2126, %v2128
  %v2130 = vadd.f32 %v2126, %v2129
  %vm2131 = vweird.f32 %v2008
  %vm2132 = vweird.f32 %v2126
  %vm2133 = vmor %vm2131, %vm2132
  %v2134 = vsel %vm2133, %v2126, %v2130
  %v2135 = vand.u32 2147483647, %v2008
  %vm2136 = vcmp.eq.f32.partialorder %v2135, 8.507059e+37
  %v2137 = vand.u32 %v2008, 2147483648
  %v2138 = vor.u32 1.1754944e-38, %v2137
  %v2139 = vsel %vm2136, %v2138, %v2134
  %v2140 = vmul.f32 %v1969, %v2139
  %v2141 = vrcp.pop %v2011
  %v2142 = vmul.f32 %v2011, %v2141
  %v2143 = vsub.f32 1.0, %v2142
  %v2144 = vmul.f32 %v2141, %v2143
  %v2145 = vadd.f32 %v2141, %v2144
  %vm2146 = vweird.f32 %v2011
  %vm2147 = vweird.f32 %v2141
  %vm2148 = vmor %vm2146, %vm2147
  %v2149 = vsel %vm2148, %v2141, %v2145
  %v2150 = vand.u32 2147483647, %v2011
  %vm2151 = vcmp.eq.f32.partialorder %v2150, 8.507059e+37
  %v2152 = vand.u32 %v2011, 2147483648
  %v2153 = vor.u32 1.1754944e-38, %v2152
  %v2154 = vsel %vm2151, %v2153, %v2149
  %v2155 = vmul.f32 %v1971, %v2154
  %v2156 = vrcp.pop %v2014
  %v2157 = vmul.f32 %v2014, %v2156
  %v2158 = vsub.f32 1.0, %v2157
  %v2159 = vmul.f32 %v2156, %v2158
  %v2160 = vadd.f32 %v2156, %v2159
  %vm2161 = vweird.f32 %v2014
  %vm2162 = vweird.f32 %v2156
  %vm2163 = vmor %vm2161, %vm2162
  %v2164 = vsel %vm2163, %v2156, %v2160
  %v2165 = vand.u32 2147483647, %v2014
  %vm2166 = vcmp.eq.f32.partialorder %v2165, 8.507059e+37
  %v2167 = vand.u32 %v2014, 2147483648
  %v2168 = vor.u32 1.1754944e-38, %v2167
  %v2169 = vsel %vm2166, %v2168, %v2164
  %v2170 = vmul.f32 %v1973, %v2169
  %v2171 = vrcp.pop %v2017
  %v2172 = vmul.f32 %v2017, %v2171
  %v2173 = vsub.f32 1.0, %v2172
  %v2174 = vmul.f32 %v2171, %v2173
  %v2175 = vadd.f32 %v2171, %v2174
  %vm2176 = vweird.f32 %v2017
  %vm2177 = vweird.f32 %v2171
  %vm2178 = vmor %vm2176, %vm2177
  %v2179 = vsel %vm2178, %v2171, %v2175
  %v2180 = vand.u32 2147483647, %v2017
  %vm2181 = vcmp.eq.f32.partialorder %v2180, 8.507059e+37
  %v2182 = vand.u32 %v2017, 2147483648
  %v2183 = vor.u32 1.1754944e-38, %v2182
  %v2184 = vsel %vm2181, %v2183, %v2179
  %v2185 = vmul.f32 %v1975, %v2184
  %v2186 = vrcp.pop %v2020
  %v2187 = vmul.f32 %v2020, %v2186
  %v2188 = vsub.f32 1.0, %v2187
  %v2189 = vmul.f32 %v2186, %v2188
  %v2190 = vadd.f32 %v2186, %v2189
  %vm2191 = vweird.f32 %v2020
  %vm2192 = vweird.f32 %v2186
  %vm2193 = vmor %vm2191, %vm2192
  %v2194 = vsel %vm2193, %v2186, %v2190
  %v2195 = vand.u32 2147483647, %v2020
  %vm2196 = vcmp.eq.f32.partialorder %v2195, 8.507059e+37
  %v2197 = vand.u32 %v2020, 2147483648
  %v2198 = vor.u32 1.1754944e-38, %v2197
  %v2199 = vsel %vm2196, %v2198, %v2194
  %v2200 = vmul.f32 %v1977, %v2199
  %v2201 = vrcp.pop %v2023
  %v2202 = vmul.f32 %v2023, %v2201
  %v2203 = vsub.f32 1.0, %v2202
  %v2204 = vmul.f32 %v2201, %v2203
  %v2205 = vadd.f32 %v2201, %v2204
  %vm2206 = vweird.f32 %v2023
  %vm2207 = vweird.f32 %v2201
  %vm2208 = vmor %vm2206, %vm2207
  %v2209 = vsel %vm2208, %v2201, %v2205
  %v2210 = vand.u32 2147483647, %v2023
  %vm2211 = vcmp.eq.f32.partialorder %v2210, 8.507059e+37
  %v2212 = vand.u32 %v2023, 2147483648
  %v2213 = vor.u32 1.1754944e-38, %v2212
  %v2214 = vsel %vm2211, %v2213, %v2209
  %v2215 = vmul.f32 %v1979, %v2214
  %v2216 = vrcp.pop %v2026
  %v2217 = vmul.f32 %v2026, %v2216
  %v2218 = vsub.f32 1.0, %v2217
  %v2219 = vmul.f32 %v2216, %v2218
  %v2220 = vadd.f32 %v2216, %v2219
  %vm2221 = vweird.f32 %v2026
  %vm2222 = vweird.f32 %v2216
  %vm2223 = vmor %vm2221, %vm2222
  %v2224 = vsel %vm2223, %v2216, %v2220
  %v2225 = vand.u32 2147483647, %v2026
  %vm2226 = vcmp.eq.f32.partialorder %v2225, 8.507059e+37
  %v2227 = vand.u32 %v2026, 2147483648
  %v2228 = vor.u32 1.1754944e-38, %v2227
  %v2229 = vsel %vm2226, %v2228, %v2224
  %v2230 = vmul.f32 %v1981, %v2229
  %v2231 = vrcp.pop %v2029
  %v2232 = vmul.f32 %v2029, %v2231
  %v2233 = vsub.f32 1.0, %v2232
  %v2234 = vmul.f32 %v2231, %v2233
  %v2235 = vadd.f32 %v2231, %v2234
  %vm2236 = vweird.f32 %v2029
  %vm2237 = vweird.f32 %v2231
  %vm2238 = vmor %vm2236, %vm2237
  %v2239 = vsel %vm2238, %v2231, %v2235
  %v2240 = vand.u32 2147483647, %v2029
  %vm2241 = vcmp.eq.f32.partialorder %v2240, 8.507059e+37
  %v2242 = vand.u32 %v2029, 2147483648
  %v2243 = vor.u32 1.1754944e-38, %v2242
  %v2244 = vsel %vm2241, %v2243, %v2239
  %v2245 = vmul.f32 %v1983, %v2244
  %v2246 = vrcp.pop %v2032
  %v2247 = vmul.f32 %v2032, %v2246
  %v2248 = vsub.f32 1.0, %v2247
  %v2249 = vmul.f32 %v2246, %v2248
  %v2250 = vadd.f32 %v2246, %v2249
  %vm2251 = vweird.f32 %v2032
  %vm2252 = vweird.f32 %v2246
  %vm2253 = vmor %vm2251, %vm2252
  %v2254 = vsel %vm2253, %v2246, %v2250
  %v2255 = vand.u32 2147483647, %v2032
  %vm2256 = vcmp.eq.f32.partialorder %v2255, 8.507059e+37
  %v2257 = vand.u32 %v2032, 2147483648
  %v2258 = vor.u32 1.1754944e-38, %v2257
  %v2259 = vsel %vm2256, %v2258, %v2254
  %v2260 = vmul.f32 %v1985, %v2259
  %v2261 = vrcp.pop %v2035
  %v2262 = vmul.f32 %v2035, %v2261
  %v2263 = vsub.f32 1.0, %v2262
  %v2264 = vmul.f32 %v2261, %v2263
  %v2265 = vadd.f32 %v2261, %v2264
  %vm2266 = vweird.f32 %v2035
  %vm2267 = vweird.f32 %v2261
  %vm2268 = vmor %vm2266, %vm2267
  %v2269 = vsel %vm2268, %v2261, %v2265
  %v2270 = vand.u32 2147483647, %v2035
  %vm2271 = vcmp.eq.f32.partialorder %v2270, 8.507059e+37
  %v2272 = vand.u32 %v2035, 2147483648
  %v2273 = vor.u32 1.1754944e-38, %v2272
  %v2274 = vsel %vm2271, %v2273, %v2269
  %v2275 = vmul.f32 %v1987, %v2274
  %2276 = vrot.lane.b32.xlu0 %v537, 56
  %v2277 = vpop.permute.xlu0 %2276
  %2278 = vrot.lane.b32.xlu0 %v540, 56
  %v2279 = vpop.permute.xlu0 %2278
  %v2283 = vsel %vm897, %v2050, 0
  %v2286 = vsel %vm897, %v2065, 0
  %2288 = vmatpush.msra.mxu0 0.0
  %2289 = vmatpush.msra.mxu0 0.0
  %2290 = vmatpush.msra.mxu0 0.0
  %2291 = vmatpush.msra.mxu0 0.0
  %2292 = vmatpush.msra.mxu0 0.0
  %2293 = vmatpush.msra.mxu0 0.0
  %2294 = vmatpush.msra.mxu0 0.0
  %2295 = vmatpush.msra.mxu0 0.0
  %2296 = vmatpush.msra.mxu0 0.0
  %2297 = vmatpush.msra.mxu0 0.0
  %2298 = vmatpush.msra.mxu0 0.0
  %2299 = vmatpush.msra.mxu0 0.0
  %2300 = vmatpush.msra.mxu0 0.0
  %2301 = vmatpush.msra.mxu0 0.0
  %2302 = vmatpush.msra.mxu0 %v2279
  %2303 = vmatpush.msra.mxu0 %v2277
  %2304 = vmatmul.f32.gmra.mxu0 %v2283
  %v2305 = vpop.f32.mrf.mxu0
  %v2306 = vadd.f32 0.0, %v2305
  %2307 = vmatmul.f32.gmra.mxu0 %v2286
  %v2308 = vpop.f32.mrf.mxu0
  %v2309 = vadd.f32 0.0, %v2308
  %2310 = vdwg.mxu0
  %2311 = vrot.lane.b32.xlu0 %v543, 56
  %v2312 = vpop.permute.xlu0 %2311
  %2313 = vrot.lane.b32.xlu0 %v546, 56
  %v2314 = vpop.permute.xlu0 %2313
  %v2318 = vsel %vm897, %v2080, 0
  %v2321 = vsel %vm897, %v2095, 0
  %2323 = vmatpush.msra.mxu0 0.0
  %2324 = vmatpush.msra.mxu0 0.0
  %2325 = vmatpush.msra.mxu0 0.0
  %2326 = vmatpush.msra.mxu0 0.0
  %2327 = vmatpush.msra.mxu0 0.0
  %2328 = vmatpush.msra.mxu0 0.0
  %2329 = vmatpush.msra.mxu0 0.0
  %2330 = vmatpush.msra.mxu0 0.0
  %2331 = vmatpush.msra.mxu0 0.0
  %2332 = vmatpush.msra.mxu0 0.0
  %2333 = vmatpush.msra.mxu0 0.0
  %2334 = vmatpush.msra.mxu0 0.0
  %2335 = vmatpush.msra.mxu0 0.0
  %2336 = vmatpush.msra.mxu0 0.0
  %2337 = vmatpush.msra.mxu0 %v2314
  %2338 = vmatpush.msra.mxu0 %v2312
  %2339 = vmatmul.f32.gmra.mxu0 %v2318
  %v2340 = vpop.f32.mrf.mxu0
  %v2341 = vadd.f32 0.0, %v2340
  %2342 = vmatmul.f32.gmra.mxu0 %v2321
  %v2343 = vpop.f32.mrf.mxu0
  %v2344 = vadd.f32 0.0, %v2343
  %2345 = vdwg.mxu0
  %2346 = vrot.lane.b32.xlu0 %v549, 56
  %v2347 = vpop.permute.xlu0 %2346
  %2348 = vrot.lane.b32.xlu0 %v552, 56
  %v2349 = vpop.permute.xlu0 %2348
  %v2353 = vsel %vm897, %v2110, 0
  %v2356 = vsel %vm897, %v2125, 0
  %2358 = vmatpush.msra.mxu0 0.0
  %2359 = vmatpush.msra.mxu0 0.0
  %2360 = vmatpush.msra.mxu0 0.0
  %2361 = vmatpush.msra.mxu0 0.0
  %2362 = vmatpush.msra.mxu0 0.0
  %2363 = vmatpush.msra.mxu0 0.0
  %2364 = vmatpush.msra.mxu0 0.0
  %2365 = vmatpush.msra.mxu0 0.0
  %2366 = vmatpush.msra.mxu0 0.0
  %2367 = vmatpush.msra.mxu0 0.0
  %2368 = vmatpush.msra.mxu0 0.0
  %2369 = vmatpush.msra.mxu0 0.0
  %2370 = vmatpush.msra.mxu0 0.0
  %2371 = vmatpush.msra.mxu0 0.0
  %2372 = vmatpush.msra.mxu0 %v2349
  %2373 = vmatpush.msra.mxu0 %v2347
  %2374 = vmatmul.f32.gmra.mxu0 %v2353
  %v2375 = vpop.f32.mrf.mxu0
  %v2376 = vadd.f32 0.0, %v2375
  %2377 = vmatmul.f32.gmra.mxu0 %v2356
  %v2378 = vpop.f32.mrf.mxu0
  %v2379 = vadd.f32 0.0, %v2378
  %2380 = vdwg.mxu0
  %2381 = vrot.lane.b32.xlu0 %v555, 56
  %v2382 = vpop.permute.xlu0 %2381
  %2383 = vrot.lane.b32.xlu0 %v558, 56
  %v2384 = vpop.permute.xlu0 %2383
  %v2388 = vsel %vm897, %v2140, 0
  %v2391 = vsel %vm897, %v2155, 0
  %2393 = vmatpush.msra.mxu0 0.0
  %2394 = vmatpush.msra.mxu0 0.0
  %2395 = vmatpush.msra.mxu0 0.0
  %2396 = vmatpush.msra.mxu0 0.0
  %2397 = vmatpush.msra.mxu0 0.0
  %2398 = vmatpush.msra.mxu0 0.0
  %2399 = vmatpush.msra.mxu0 0.0
  %2400 = vmatpush.msra.mxu0 0.0
  %2401 = vmatpush.msra.mxu0 0.0
  %2402 = vmatpush.msra.mxu0 0.0
  %2403 = vmatpush.msra.mxu0 0.0
  %2404 = vmatpush.msra.mxu0 0.0
  %2405 = vmatpush.msra.mxu0 0.0
  %2406 = vmatpush.msra.mxu0 0.0
  %2407 = vmatpush.msra.mxu0 %v2384
  %2408 = vmatpush.msra.mxu0 %v2382
  %2409 = vmatmul.f32.gmra.mxu0 %v2388
  %v2410 = vpop.f32.mrf.mxu0
  %v2411 = vadd.f32 0.0, %v2410
  %2412 = vmatmul.f32.gmra.mxu0 %v2391
  %v2413 = vpop.f32.mrf.mxu0
  %v2414 = vadd.f32 0.0, %v2413
  %2415 = vdwg.mxu0
  %2416 = vrot.lane.b32.xlu0 %v561, 56
  %v2417 = vpop.permute.xlu0 %2416
  %2418 = vrot.lane.b32.xlu0 %v564, 56
  %v2419 = vpop.permute.xlu0 %2418
  %v2423 = vsel %vm897, %v2170, 0
  %v2426 = vsel %vm897, %v2185, 0
  %2428 = vmatpush.msra.mxu0 0.0
  %2429 = vmatpush.msra.mxu0 0.0
  %2430 = vmatpush.msra.mxu0 0.0
  %2431 = vmatpush.msra.mxu0 0.0
  %2432 = vmatpush.msra.mxu0 0.0
  %2433 = vmatpush.msra.mxu0 0.0
  %2434 = vmatpush.msra.mxu0 0.0
  %2435 = vmatpush.msra.mxu0 0.0
  %2436 = vmatpush.msra.mxu0 0.0
  %2437 = vmatpush.msra.mxu0 0.0
  %2438 = vmatpush.msra.mxu0 0.0
  %2439 = vmatpush.msra.mxu0 0.0
  %2440 = vmatpush.msra.mxu0 0.0
  %2441 = vmatpush.msra.mxu0 0.0
  %2442 = vmatpush.msra.mxu0 %v2419
  %2443 = vmatpush.msra.mxu0 %v2417
  %2444 = vmatmul.f32.gmra.mxu0 %v2423
  %v2445 = vpop.f32.mrf.mxu0
  %v2446 = vadd.f32 0.0, %v2445
  %2447 = vmatmul.f32.gmra.mxu0 %v2426
  %v2448 = vpop.f32.mrf.mxu0
  %v2449 = vadd.f32 0.0, %v2448
  %2450 = vdwg.mxu0
  %2451 = vrot.lane.b32.xlu0 %v567, 56
  %v2452 = vpop.permute.xlu0 %2451
  %2453 = vrot.lane.b32.xlu0 %v570, 56
  %v2454 = vpop.permute.xlu0 %2453
  %v2458 = vsel %vm897, %v2200, 0
  %v2461 = vsel %vm897, %v2215, 0
  %2463 = vmatpush.msra.mxu0 0.0
  %2464 = vmatpush.msra.mxu0 0.0
  %2465 = vmatpush.msra.mxu0 0.0
  %2466 = vmatpush.msra.mxu0 0.0
  %2467 = vmatpush.msra.mxu0 0.0
  %2468 = vmatpush.msra.mxu0 0.0
  %2469 = vmatpush.msra.mxu0 0.0
  %2470 = vmatpush.msra.mxu0 0.0
  %2471 = vmatpush.msra.mxu0 0.0
  %2472 = vmatpush.msra.mxu0 0.0
  %2473 = vmatpush.msra.mxu0 0.0
  %2474 = vmatpush.msra.mxu0 0.0
  %2475 = vmatpush.msra.mxu0 0.0
  %2476 = vmatpush.msra.mxu0 0.0
  %2477 = vmatpush.msra.mxu0 %v2454
  %2478 = vmatpush.msra.mxu0 %v2452
  %2479 = vmatmul.f32.gmra.mxu0 %v2458
  %v2480 = vpop.f32.mrf.mxu0
  %v2481 = vadd.f32 0.0, %v2480
  %2482 = vmatmul.f32.gmra.mxu0 %v2461
  %v2483 = vpop.f32.mrf.mxu0
  %v2484 = vadd.f32 0.0, %v2483
  %2485 = vdwg.mxu0
  %2486 = vrot.lane.b32.xlu0 %v573, 56
  %v2487 = vpop.permute.xlu0 %2486
  %2488 = vrot.lane.b32.xlu0 %v576, 56
  %v2489 = vpop.permute.xlu0 %2488
  %v2493 = vsel %vm897, %v2230, 0
  %v2496 = vsel %vm897, %v2245, 0
  %2498 = vmatpush.msra.mxu0 0.0
  %2499 = vmatpush.msra.mxu0 0.0
  %2500 = vmatpush.msra.mxu0 0.0
  %2501 = vmatpush.msra.mxu0 0.0
  %2502 = vmatpush.msra.mxu0 0.0
  %2503 = vmatpush.msra.mxu0 0.0
  %2504 = vmatpush.msra.mxu0 0.0
  %2505 = vmatpush.msra.mxu0 0.0
  %2506 = vmatpush.msra.mxu0 0.0
  %2507 = vmatpush.msra.mxu0 0.0
  %2508 = vmatpush.msra.mxu0 0.0
  %2509 = vmatpush.msra.mxu0 0.0
  %2510 = vmatpush.msra.mxu0 0.0
  %2511 = vmatpush.msra.mxu0 0.0
  %2512 = vmatpush.msra.mxu0 %v2489
  %2513 = vmatpush.msra.mxu0 %v2487
  %2514 = vmatmul.f32.gmra.mxu0 %v2493
  %v2515 = vpop.f32.mrf.mxu0
  %v2516 = vadd.f32 0.0, %v2515
  %2517 = vmatmul.f32.gmra.mxu0 %v2496
  %v2518 = vpop.f32.mrf.mxu0
  %v2519 = vadd.f32 0.0, %v2518
  %2520 = vdwg.mxu0
  %2521 = vrot.lane.b32.xlu0 %v579, 56
  %v2522 = vpop.permute.xlu0 %2521
  %2523 = vrot.lane.b32.xlu0 %v582, 56
  %v2524 = vpop.permute.xlu0 %2523
  %v2528 = vsel %vm897, %v2260, 0
  %v2531 = vsel %vm897, %v2275, 0
  %2533 = vmatpush.msra.mxu0 0.0
  %2534 = vmatpush.msra.mxu0 0.0
  %2535 = vmatpush.msra.mxu0 0.0
  %2536 = vmatpush.msra.mxu0 0.0
  %2537 = vmatpush.msra.mxu0 0.0
  %2538 = vmatpush.msra.mxu0 0.0
  %2539 = vmatpush.msra.mxu0 0.0
  %2540 = vmatpush.msra.mxu0 0.0
  %2541 = vmatpush.msra.mxu0 0.0
  %2542 = vmatpush.msra.mxu0 0.0
  %2543 = vmatpush.msra.mxu0 0.0
  %2544 = vmatpush.msra.mxu0 0.0
  %2545 = vmatpush.msra.mxu0 0.0
  %2546 = vmatpush.msra.mxu0 0.0
  %2547 = vmatpush.msra.mxu0 %v2524
  %2548 = vmatpush.msra.mxu0 %v2522
  %2549 = vmatmul.f32.gmra.mxu0 %v2528
  %v2550 = vpop.f32.mrf.mxu0
  %v2551 = vadd.f32 0.0, %v2550
  %2552 = vmatmul.f32.gmra.mxu0 %v2531
  %v2553 = vpop.f32.mrf.mxu0
  %v2554 = vadd.f32 0.0, %v2553
  %2555 = vdwg.mxu0
  %v2556 = vld [vmem:[%s6 + $0x8] sm:$0xff]
  %v2558 = vsel %vm606, %v2306, 0
  %v2561 = vsel %vm606, %v2309, 0
  %v2564 = vsel %vm606, %v2341, 0
  %v2567 = vsel %vm606, %v2344, 0
  %v2570 = vsel %vm606, %v2376, 0
  %v2573 = vsel %vm606, %v2379, 0
  %v2576 = vsel %vm606, %v2411, 0
  %v2579 = vsel %vm606, %v2414, 0
  %v2582 = vsel %vm606, %v2446, 0
  %v2585 = vsel %vm606, %v2449, 0
  %v2588 = vsel %vm606, %v2481, 0
  %v2591 = vsel %vm606, %v2484, 0
  %v2594 = vsel %vm606, %v2516, 0
  %v2597 = vsel %vm606, %v2519, 0
  %v2600 = vsel %vm606, %v2551, 0
  %v2603 = vsel %vm606, %v2554, 0
  %2605 = vmatpush.msra.mxu0 0.0
  %2606 = vmatpush.msra.mxu0 0.0
  %2607 = vmatpush.msra.mxu0 0.0
  %2608 = vmatpush.msra.mxu0 0.0
  %2609 = vmatpush.msra.mxu0 0.0
  %2610 = vmatpush.msra.mxu0 0.0
  %2611 = vmatpush.msra.mxu0 0.0
  %2612 = vmatpush.msra.mxu0 0.0
  %2613 = vmatpush.msra.mxu0 0.0
  %2614 = vmatpush.msra.mxu0 0.0
  %2615 = vmatpush.msra.mxu0 0.0
  %2616 = vmatpush.msra.mxu0 0.0
  %2617 = vmatpush.msra.mxu0 0.0
  %2618 = vmatpush.msra.mxu0 0.0
  %2619 = vmatpush.msra.mxu0 0.0
  %2620 = vmatpush.msra.mxu0 %v2556
  %2621 = vmatmul.f32.gmra.mxu0 %v2558
  %v2622 = vpop.f32.mrf.mxu0
  %v2623 = vadd.f32 0.0, %v2622
  %2624 = vmatmul.f32.gmra.mxu0 %v2561
  %v2625 = vpop.f32.mrf.mxu0
  %v2626 = vadd.f32 0.0, %v2625
  %2627 = vmatmul.f32.gmra.mxu0 %v2564
  %v2628 = vpop.f32.mrf.mxu0
  %v2629 = vadd.f32 0.0, %v2628
  %2630 = vmatmul.f32.gmra.mxu0 %v2567
  %v2631 = vpop.f32.mrf.mxu0
  %v2632 = vadd.f32 0.0, %v2631
  %2633 = vmatmul.f32.gmra.mxu0 %v2570
  %v2634 = vpop.f32.mrf.mxu0
  %v2635 = vadd.f32 0.0, %v2634
  %2636 = vmatmul.f32.gmra.mxu0 %v2573
  %v2637 = vpop.f32.mrf.mxu0
  %v2638 = vadd.f32 0.0, %v2637
  %2639 = vmatmul.f32.gmra.mxu0 %v2576
  %v2640 = vpop.f32.mrf.mxu0
  %v2641 = vadd.f32 0.0, %v2640
  %2642 = vmatmul.f32.gmra.mxu0 %v2579
  %v2643 = vpop.f32.mrf.mxu0
  %v2644 = vadd.f32 0.0, %v2643
  %2645 = vmatmul.f32.gmra.mxu0 %v2582
  %v2646 = vpop.f32.mrf.mxu0
  %v2647 = vadd.f32 0.0, %v2646
  %2648 = vmatmul.f32.gmra.mxu0 %v2585
  %v2649 = vpop.f32.mrf.mxu0
  %v2650 = vadd.f32 0.0, %v2649
  %2651 = vmatmul.f32.gmra.mxu0 %v2588
  %v2652 = vpop.f32.mrf.mxu0
  %v2653 = vadd.f32 0.0, %v2652
  %2654 = vmatmul.f32.gmra.mxu0 %v2591
  %v2655 = vpop.f32.mrf.mxu0
  %v2656 = vadd.f32 0.0, %v2655
  %2657 = vmatmul.f32.gmra.mxu0 %v2594
  %v2658 = vpop.f32.mrf.mxu0
  %v2659 = vadd.f32 0.0, %v2658
  %2660 = vmatmul.f32.gmra.mxu0 %v2597
  %v2661 = vpop.f32.mrf.mxu0
  %v2662 = vadd.f32 0.0, %v2661
  %2663 = vmatmul.f32.gmra.mxu0 %v2600
  %v2664 = vpop.f32.mrf.mxu0
  %v2665 = vadd.f32 0.0, %v2664
  %2666 = vmatmul.f32.gmra.mxu0 %v2603
  %v2667 = vpop.f32.mrf.mxu0
  %v2668 = vadd.f32 0.0, %v2667
  %2669 = vdwg.mxu0
  %v2671 = vsel %vm606, %v1312, 0
  %v2674 = vsel %vm606, %v1315, 0
  %v2677 = vsel %vm606, %v1347, 0
  %v2680 = vsel %vm606, %v1350, 0
  %v2683 = vsel %vm606, %v1382, 0
  %v2686 = vsel %vm606, %v1385, 0
  %v2689 = vsel %vm606, %v1417, 0
  %v2692 = vsel %vm606, %v1420, 0
  %v2695 = vsel %vm606, %v1452, 0
  %v2698 = vsel %vm606, %v1455, 0
  %v2701 = vsel %vm606, %v1487, 0
  %v2704 = vsel %vm606, %v1490, 0
  %v2707 = vsel %vm606, %v1522, 0
  %v2710 = vsel %vm606, %v1525, 0
  %v2713 = vsel %vm606, %v1557, 0
  %v2716 = vsel %vm606, %v1560, 0
  %2718 = vmatpush.msra.mxu0 0.0
  %2719 = vmatpush.msra.mxu0 0.0
  %2720 = vmatpush.msra.mxu0 0.0
  %2721 = vmatpush.msra.mxu0 0.0
  %2722 = vmatpush.msra.mxu0 0.0
  %2723 = vmatpush.msra.mxu0 0.0
  %2724 = vmatpush.msra.mxu0 0.0
  %2725 = vmatpush.msra.mxu0 0.0
  %2726 = vmatpush.msra.mxu0 0.0
  %2727 = vmatpush.msra.mxu0 0.0
  %2728 = vmatpush.msra.mxu0 0.0
  %2729 = vmatpush.msra.mxu0 0.0
  %2730 = vmatpush.msra.mxu0 0.0
  %2731 = vmatpush.msra.mxu0 0.0
  %2732 = vmatpush.msra.mxu0 0.0
  %2733 = vmatpush.msra.mxu0 %v1562
  %2734 = vmatmul.f32.gmra.mxu0 %v2671
  %v2735 = vpop.f32.mrf.mxu0
  %v2736 = vadd.f32 %v2623, %v2735
  %2737 = vmatmul.f32.gmra.mxu0 %v2674
  %v2738 = vpop.f32.mrf.mxu0
  %v2739 = vadd.f32 %v2626, %v2738
  %2740 = vmatmul.f32.gmra.mxu0 %v2677
  %v2741 = vpop.f32.mrf.mxu0
  %v2742 = vadd.f32 %v2629, %v2741
  %2743 = vmatmul.f32.gmra.mxu0 %v2680
  %v2744 = vpop.f32.mrf.mxu0
  %v2745 = vadd.f32 %v2632, %v2744
  %2746 = vmatmul.f32.gmra.mxu0 %v2683
  %v2747 = vpop.f32.mrf.mxu0
  %v2748 = vadd.f32 %v2635, %v2747
  %2749 = vmatmul.f32.gmra.mxu0 %v2686
  %v2750 = vpop.f32.mrf.mxu0
  %v2751 = vadd.f32 %v2638, %v2750
  %2752 = vmatmul.f32.gmra.mxu0 %v2689
  %v2753 = vpop.f32.mrf.mxu0
  %v2754 = vadd.f32 %v2641, %v2753
  %2755 = vmatmul.f32.gmra.mxu0 %v2692
  %v2756 = vpop.f32.mrf.mxu0
  %v2757 = vadd.f32 %v2644, %v2756
  %2758 = vmatmul.f32.gmra.mxu0 %v2695
  %v2759 = vpop.f32.mrf.mxu0
  %v2760 = vadd.f32 %v2647, %v2759
  %2761 = vmatmul.f32.gmra.mxu0 %v2698
  %v2762 = vpop.f32.mrf.mxu0
  %v2763 = vadd.f32 %v2650, %v2762
  %2764 = vmatmul.f32.gmra.mxu0 %v2701
  %v2765 = vpop.f32.mrf.mxu0
  %v2766 = vadd.f32 %v2653, %v2765
  %2767 = vmatmul.f32.gmra.mxu0 %v2704
  %v2768 = vpop.f32.mrf.mxu0
  %v2769 = vadd.f32 %v2656, %v2768
  %2770 = vmatmul.f32.gmra.mxu0 %v2707
  %v2771 = vpop.f32.mrf.mxu0
  %v2772 = vadd.f32 %v2659, %v2771
  %2773 = vmatmul.f32.gmra.mxu0 %v2710
  %v2774 = vpop.f32.mrf.mxu0
  %v2775 = vadd.f32 %v2662, %v2774
  %2776 = vmatmul.f32.gmra.mxu0 %v2713
  %v2777 = vpop.f32.mrf.mxu0
  %v2778 = vadd.f32 %v2665, %v2777
  %2779 = vmatmul.f32.gmra.mxu0 %v2716
  %v2780 = vpop.f32.mrf.mxu0
  %v2781 = vadd.f32 %v2668, %v2780
  %2782 = vdwg.mxu0
  %s2783 = scalar_lea.vmem %s5, 256
  %v2784 = vld [vmem:[%s2783] sm:$0xff]
  %v2785 = vld [vmem:[%s2783 + $0x8] sm:$0xff]
  %v2786 = vld [vmem:[%s2783 + $0x10] sm:$0xff]
  %v2787 = vld [vmem:[%s2783 + $0x18] sm:$0xff]
  %v2788 = vld [vmem:[%s2783 + $0x20] sm:$0xff]
  %v2789 = vld [vmem:[%s2783 + $0x28] sm:$0xff]
  %v2790 = vld [vmem:[%s2783 + $0x30] sm:$0xff]
  %v2791 = vld [vmem:[%s2783 + $0x38] sm:$0xff]
  %v2792 = vld [vmem:[%s2783 + $0x40] sm:$0xff]
  %v2793 = vld [vmem:[%s2783 + $0x48] sm:$0xff]
  %v2794 = vld [vmem:[%s2783 + $0x50] sm:$0xff]
  %v2795 = vld [vmem:[%s2783 + $0x58] sm:$0xff]
  %v2796 = vld [vmem:[%s2783 + $0x60] sm:$0xff]
  %v2797 = vld [vmem:[%s2783 + $0x68] sm:$0xff]
  %v2798 = vld [vmem:[%s2783 + $0x70] sm:$0xff]
  %v2799 = vld [vmem:[%s2783 + $0x78] sm:$0xff]
  %2800 = vrot.lane.b32.xlu0 %v537, 112
  %v2801 = vpop.permute.xlu0 %2800
  %2802 = vrot.lane.b32.xlu0 %v540, 112
  %v2803 = vpop.permute.xlu0 %2802
  %2804 = vrot.lane.b32.xlu0 %v537, 80
  %v2805 = vpop.permute.xlu0 %2804
  %2806 = vrot.lane.b32.xlu0 %v540, 80
  %v2807 = vpop.permute.xlu0 %2806
  %v2808 = vsel %vm606, %v2801, 0
  %v2810 = vsel %vm606, %v2803, 0
  %v2812 = vsel %vm606, %v2805, 0
  %v2814 = vsel %vm606, %v2807, 0
  %2816 = vmatpush.xpose.msra.mxu0 0.0
  %2817 = vmatpush.xpose.msra.mxu0 0.0
  %2818 = vmatpush.xpose.msra.mxu0 0.0
  %2819 = vmatpush.xpose.msra.mxu0 0.0
  %2820 = vmatpush.xpose.msra.mxu0 0.0
  %2821 = vmatpush.xpose.msra.mxu0 0.0
  %2822 = vmatpush.xpose.msra.mxu0 0.0
  %2823 = vmatpush.xpose.msra.mxu0 0.0
  %2824 = vmatpush.xpose.msra.mxu0 0.0
  %2825 = vmatpush.xpose.msra.mxu0 0.0
  %2826 = vmatpush.xpose.msra.mxu0 0.0
  %2827 = vmatpush.xpose.msra.mxu0 0.0
  %2828 = vmatpush.xpose.msra.mxu0 0.0
  %2829 = vmatpush.xpose.msra.mxu0 0.0
  %2830 = vmatpush.xpose.msra.mxu0 %v2814
  %2831 = vmatpush.xpose.msra.mxu0 %v2812
  %2832 = vmatmul.f32.gmra.mxu0 %v2808
  %v2833 = vpop.f32.mrf.mxu0
  %v2834 = vadd.f32 %v2784, %v2833
  %2835 = vmatmul.f32.gmra.mxu0 %v2810
  %v2836 = vpop.f32.mrf.mxu0
  %v2837 = vadd.f32 %v2785, %v2836
  %2838 = vdwg.mxu0
  %2839 = vrot.lane.b32.xlu0 %v543, 112
  %v2840 = vpop.permute.xlu0 %2839
  %2841 = vrot.lane.b32.xlu0 %v546, 112
  %v2842 = vpop.permute.xlu0 %2841
  %2843 = vrot.lane.b32.xlu0 %v543, 80
  %v2844 = vpop.permute.xlu0 %2843
  %2845 = vrot.lane.b32.xlu0 %v546, 80
  %v2846 = vpop.permute.xlu0 %2845
  %v2847 = vsel %vm606, %v2840, 0
  %v2849 = vsel %vm606, %v2842, 0
  %v2851 = vsel %vm606, %v2844, 0
  %v2853 = vsel %vm606, %v2846, 0
  %2855 = vmatpush.xpose.msra.mxu0 0.0
  %2856 = vmatpush.xpose.msra.mxu0 0.0
  %2857 = vmatpush.xpose.msra.mxu0 0.0
  %2858 = vmatpush.xpose.msra.mxu0 0.0
  %2859 = vmatpush.xpose.msra.mxu0 0.0
  %2860 = vmatpush.xpose.msra.mxu0 0.0
  %2861 = vmatpush.xpose.msra.mxu0 0.0
  %2862 = vmatpush.xpose.msra.mxu0 0.0
  %2863 = vmatpush.xpose.msra.mxu0 0.0
  %2864 = vmatpush.xpose.msra.mxu0 0.0
  %2865 = vmatpush.xpose.msra.mxu0 0.0
  %2866 = vmatpush.xpose.msra.mxu0 0.0
  %2867 = vmatpush.xpose.msra.mxu0 0.0
  %2868 = vmatpush.xpose.msra.mxu0 0.0
  %2869 = vmatpush.xpose.msra.mxu0 %v2853
  %2870 = vmatpush.xpose.msra.mxu0 %v2851
  %2871 = vmatmul.f32.gmra.mxu0 %v2847
  %v2872 = vpop.f32.mrf.mxu0
  %v2873 = vadd.f32 %v2786, %v2872
  %2874 = vmatmul.f32.gmra.mxu0 %v2849
  %v2875 = vpop.f32.mrf.mxu0
  %v2876 = vadd.f32 %v2787, %v2875
  %2877 = vdwg.mxu0
  %2878 = vrot.lane.b32.xlu0 %v549, 112
  %v2879 = vpop.permute.xlu0 %2878
  %2880 = vrot.lane.b32.xlu0 %v552, 112
  %v2881 = vpop.permute.xlu0 %2880
  %2882 = vrot.lane.b32.xlu0 %v549, 80
  %v2883 = vpop.permute.xlu0 %2882
  %2884 = vrot.lane.b32.xlu0 %v552, 80
  %v2885 = vpop.permute.xlu0 %2884
  %v2886 = vsel %vm606, %v2879, 0
  %v2888 = vsel %vm606, %v2881, 0
  %v2890 = vsel %vm606, %v2883, 0
  %v2892 = vsel %vm606, %v2885, 0
  %2894 = vmatpush.xpose.msra.mxu0 0.0
  %2895 = vmatpush.xpose.msra.mxu0 0.0
  %2896 = vmatpush.xpose.msra.mxu0 0.0
  %2897 = vmatpush.xpose.msra.mxu0 0.0
  %2898 = vmatpush.xpose.msra.mxu0 0.0
  %2899 = vmatpush.xpose.msra.mxu0 0.0
  %2900 = vmatpush.xpose.msra.mxu0 0.0
  %2901 = vmatpush.xpose.msra.mxu0 0.0
  %2902 = vmatpush.xpose.msra.mxu0 0.0
  %2903 = vmatpush.xpose.msra.mxu0 0.0
  %2904 = vmatpush.xpose.msra.mxu0 0.0
  %2905 = vmatpush.xpose.msra.mxu0 0.0
  %2906 = vmatpush.xpose.msra.mxu0 0.0
  %2907 = vmatpush.xpose.msra.mxu0 0.0
  %2908 = vmatpush.xpose.msra.mxu0 %v2892
  %2909 = vmatpush.xpose.msra.mxu0 %v2890
  %2910 = vmatmul.f32.gmra.mxu0 %v2886
  %v2911 = vpop.f32.mrf.mxu0
  %v2912 = vadd.f32 %v2788, %v2911
  %2913 = vmatmul.f32.gmra.mxu0 %v2888
  %v2914 = vpop.f32.mrf.mxu0
  %v2915 = vadd.f32 %v2789, %v2914
  %2916 = vdwg.mxu0
  %2917 = vrot.lane.b32.xlu0 %v555, 112
  %v2918 = vpop.permute.xlu0 %2917
  %2919 = vrot.lane.b32.xlu0 %v558, 112
  %v2920 = vpop.permute.xlu0 %2919
  %2921 = vrot.lane.b32.xlu0 %v555, 80
  %v2922 = vpop.permute.xlu0 %2921
  %2923 = vrot.lane.b32.xlu0 %v558, 80
  %v2924 = vpop.permute.xlu0 %2923
  %v2925 = vsel %vm606, %v2918, 0
  %v2927 = vsel %vm606, %v2920, 0
  %v2929 = vsel %vm606, %v2922, 0
  %v2931 = vsel %vm606, %v2924, 0
  %2933 = vmatpush.xpose.msra.mxu0 0.0
  %2934 = vmatpush.xpose.msra.mxu0 0.0
  %2935 = vmatpush.xpose.msra.mxu0 0.0
  %2936 = vmatpush.xpose.msra.mxu0 0.0
  %2937 = vmatpush.xpose.msra.mxu0 0.0
  %2938 = vmatpush.xpose.msra.mxu0 0.0
  %2939 = vmatpush.xpose.msra.mxu0 0.0
  %2940 = vmatpush.xpose.msra.mxu0 0.0
  %2941 = vmatpush.xpose.msra.mxu0 0.0
  %2942 = vmatpush.xpose.msra.mxu0 0.0
  %2943 = vmatpush.xpose.msra.mxu0 0.0
  %2944 = vmatpush.xpose.msra.mxu0 0.0
  %2945 = vmatpush.xpose.msra.mxu0 0.0
  %2946 = vmatpush.xpose.msra.mxu0 0.0
  %2947 = vmatpush.xpose.msra.mxu0 %v2931
  %2948 = vmatpush.xpose.msra.mxu0 %v2929
  %2949 = vmatmul.f32.gmra.mxu0 %v2925
  %v2950 = vpop.f32.mrf.mxu0
  %v2951 = vadd.f32 %v2790, %v2950
  %2952 = vmatmul.f32.gmra.mxu0 %v2927
  %v2953 = vpop.f32.mrf.mxu0
  %v2954 = vadd.f32 %v2791, %v2953
  %2955 = vdwg.mxu0
  %2956 = vrot.lane.b32.xlu0 %v561, 112
  %v2957 = vpop.permute.xlu0 %2956
  %2958 = vrot.lane.b32.xlu0 %v564, 112
  %v2959 = vpop.permute.xlu0 %2958
  %2960 = vrot.lane.b32.xlu0 %v561, 80
  %v2961 = vpop.permute.xlu0 %2960
  %2962 = vrot.lane.b32.xlu0 %v564, 80
  %v2963 = vpop.permute.xlu0 %2962
  %v2964 = vsel %vm606, %v2957, 0
  %v2966 = vsel %vm606, %v2959, 0
  %v2968 = vsel %vm606, %v2961, 0
  %v2970 = vsel %vm606, %v2963, 0
  %2972 = vmatpush.xpose.msra.mxu0 0.0
  %2973 = vmatpush.xpose.msra.mxu0 0.0
  %2974 = vmatpush.xpose.msra.mxu0 0.0
  %2975 = vmatpush.xpose.msra.mxu0 0.0
  %2976 = vmatpush.xpose.msra.mxu0 0.0
  %2977 = vmatpush.xpose.msra.mxu0 0.0
  %2978 = vmatpush.xpose.msra.mxu0 0.0
  %2979 = vmatpush.xpose.msra.mxu0 0.0
  %2980 = vmatpush.xpose.msra.mxu0 0.0
  %2981 = vmatpush.xpose.msra.mxu0 0.0
  %2982 = vmatpush.xpose.msra.mxu0 0.0
  %2983 = vmatpush.xpose.msra.mxu0 0.0
  %2984 = vmatpush.xpose.msra.mxu0 0.0
  %2985 = vmatpush.xpose.msra.mxu0 0.0
  %2986 = vmatpush.xpose.msra.mxu0 %v2970
  %2987 = vmatpush.xpose.msra.mxu0 %v2968
  %2988 = vmatmul.f32.gmra.mxu0 %v2964
  %v2989 = vpop.f32.mrf.mxu0
  %v2990 = vadd.f32 %v2792, %v2989
  %2991 = vmatmul.f32.gmra.mxu0 %v2966
  %v2992 = vpop.f32.mrf.mxu0
  %v2993 = vadd.f32 %v2793, %v2992
  %2994 = vdwg.mxu0
  %2995 = vrot.lane.b32.xlu0 %v567, 112
  %v2996 = vpop.permute.xlu0 %2995
  %2997 = vrot.lane.b32.xlu0 %v570, 112
  %v2998 = vpop.permute.xlu0 %2997
  %2999 = vrot.lane.b32.xlu0 %v567, 80
  %v3000 = vpop.permute.xlu0 %2999
  %3001 = vrot.lane.b32.xlu0 %v570, 80
  %v3002 = vpop.permute.xlu0 %3001
  %v3003 = vsel %vm606, %v2996, 0
  %v3005 = vsel %vm606, %v2998, 0
  %v3007 = vsel %vm606, %v3000, 0
  %v3009 = vsel %vm606, %v3002, 0
  %3011 = vmatpush.xpose.msra.mxu0 0.0
  %3012 = vmatpush.xpose.msra.mxu0 0.0
  %3013 = vmatpush.xpose.msra.mxu0 0.0
  %3014 = vmatpush.xpose.msra.mxu0 0.0
  %3015 = vmatpush.xpose.msra.mxu0 0.0
  %3016 = vmatpush.xpose.msra.mxu0 0.0
  %3017 = vmatpush.xpose.msra.mxu0 0.0
  %3018 = vmatpush.xpose.msra.mxu0 0.0
  %3019 = vmatpush.xpose.msra.mxu0 0.0
  %3020 = vmatpush.xpose.msra.mxu0 0.0
  %3021 = vmatpush.xpose.msra.mxu0 0.0
  %3022 = vmatpush.xpose.msra.mxu0 0.0
  %3023 = vmatpush.xpose.msra.mxu0 0.0
  %3024 = vmatpush.xpose.msra.mxu0 0.0
  %3025 = vmatpush.xpose.msra.mxu0 %v3009
  %3026 = vmatpush.xpose.msra.mxu0 %v3007
  %3027 = vmatmul.f32.gmra.mxu0 %v3003
  %v3028 = vpop.f32.mrf.mxu0
  %v3029 = vadd.f32 %v2794, %v3028
  %3030 = vmatmul.f32.gmra.mxu0 %v3005
  %v3031 = vpop.f32.mrf.mxu0
  %v3032 = vadd.f32 %v2795, %v3031
  %3033 = vdwg.mxu0
  %3034 = vrot.lane.b32.xlu0 %v573, 112
  %v3035 = vpop.permute.xlu0 %3034
  %3036 = vrot.lane.b32.xlu0 %v576, 112
  %v3037 = vpop.permute.xlu0 %3036
  %3038 = vrot.lane.b32.xlu0 %v573, 80
  %v3039 = vpop.permute.xlu0 %3038
  %3040 = vrot.lane.b32.xlu0 %v576, 80
  %v3041 = vpop.permute.xlu0 %3040
  %v3042 = vsel %vm606, %v3035, 0
  %v3044 = vsel %vm606, %v3037, 0
  %v3046 = vsel %vm606, %v3039, 0
  %v3048 = vsel %vm606, %v3041, 0
  %3050 = vmatpush.xpose.msra.mxu0 0.0
  %3051 = vmatpush.xpose.msra.mxu0 0.0
  %3052 = vmatpush.xpose.msra.mxu0 0.0
  %3053 = vmatpush.xpose.msra.mxu0 0.0
  %3054 = vmatpush.xpose.msra.mxu0 0.0
  %3055 = vmatpush.xpose.msra.mxu0 0.0
  %3056 = vmatpush.xpose.msra.mxu0 0.0
  %3057 = vmatpush.xpose.msra.mxu0 0.0
  %3058 = vmatpush.xpose.msra.mxu0 0.0
  %3059 = vmatpush.xpose.msra.mxu0 0.0
  %3060 = vmatpush.xpose.msra.mxu0 0.0
  %3061 = vmatpush.xpose.msra.mxu0 0.0
  %3062 = vmatpush.xpose.msra.mxu0 0.0
  %3063 = vmatpush.xpose.msra.mxu0 0.0
  %3064 = vmatpush.xpose.msra.mxu0 %v3048
  %3065 = vmatpush.xpose.msra.mxu0 %v3046
  %3066 = vmatmul.f32.gmra.mxu0 %v3042
  %v3067 = vpop.f32.mrf.mxu0
  %v3068 = vadd.f32 %v2796, %v3067
  %3069 = vmatmul.f32.gmra.mxu0 %v3044
  %v3070 = vpop.f32.mrf.mxu0
  %v3071 = vadd.f32 %v2797, %v3070
  %3072 = vdwg.mxu0
  %3073 = vrot.lane.b32.xlu0 %v579, 112
  %v3074 = vpop.permute.xlu0 %3073
  %3075 = vrot.lane.b32.xlu0 %v582, 112
  %v3076 = vpop.permute.xlu0 %3075
  %3077 = vrot.lane.b32.xlu0 %v579, 80
  %v3078 = vpop.permute.xlu0 %3077
  %3079 = vrot.lane.b32.xlu0 %v582, 80
  %v3080 = vpop.permute.xlu0 %3079
  %v3081 = vsel %vm606, %v3074, 0
  %v3083 = vsel %vm606, %v3076, 0
  %v3085 = vsel %vm606, %v3078, 0
  %v3087 = vsel %vm606, %v3080, 0
  %3089 = vmatpush.xpose.msra.mxu0 0.0
  %3090 = vmatpush.xpose.msra.mxu0 0.0
  %3091 = vmatpush.xpose.msra.mxu0 0.0
  %3092 = vmatpush.xpose.msra.mxu0 0.0
  %3093 = vmatpush.xpose.msra.mxu0 0.0
  %3094 = vmatpush.xpose.msra.mxu0 0.0
  %3095 = vmatpush.xpose.msra.mxu0 0.0
  %3096 = vmatpush.xpose.msra.mxu0 0.0
  %3097 = vmatpush.xpose.msra.mxu0 0.0
  %3098 = vmatpush.xpose.msra.mxu0 0.0
  %3099 = vmatpush.xpose.msra.mxu0 0.0
  %3100 = vmatpush.xpose.msra.mxu0 0.0
  %3101 = vmatpush.xpose.msra.mxu0 0.0
  %3102 = vmatpush.xpose.msra.mxu0 0.0
  %3103 = vmatpush.xpose.msra.mxu0 %v3087
  %3104 = vmatpush.xpose.msra.mxu0 %v3085
  %3105 = vmatmul.f32.gmra.mxu0 %v3081
  %v3106 = vpop.f32.mrf.mxu0
  %v3107 = vadd.f32 %v2798, %v3106
  %3108 = vmatmul.f32.gmra.mxu0 %v3083
  %v3109 = vpop.f32.mrf.mxu0
  %v3110 = vadd.f32 %v2799, %v3109
  %3111 = vdwg.mxu0
  %v3112 = vsel %vm897, %v2834, -inf
  %3113 = vmax.xlane.f32.xlu0 %v3112
  %v3114 = vpop.xlane.xlu0 %3113
  %v3115 = vsel %vm897, %v2837, -inf
  %3116 = vmax.xlane.f32.xlu0 %v3115
  %v3117 = vpop.xlane.xlu0 %3116
  %v3118 = vsel %vm897, %v2873, -inf
  %3119 = vmax.xlane.f32.xlu0 %v3118
  %v3120 = vpop.xlane.xlu0 %3119
  %v3121 = vsel %vm897, %v2876, -inf
  %3122 = vmax.xlane.f32.xlu0 %v3121
  %v3123 = vpop.xlane.xlu0 %3122
  %v3124 = vsel %vm897, %v2912, -inf
  %3125 = vmax.xlane.f32.xlu0 %v3124
  %v3126 = vpop.xlane.xlu0 %3125
  %v3127 = vsel %vm897, %v2915, -inf
  %3128 = vmax.xlane.f32.xlu0 %v3127
  %v3129 = vpop.xlane.xlu0 %3128
  %v3130 = vsel %vm897, %v2951, -inf
  %3131 = vmax.xlane.f32.xlu0 %v3130
  %v3132 = vpop.xlane.xlu0 %3131
  %v3133 = vsel %vm897, %v2954, -inf
  %3134 = vmax.xlane.f32.xlu0 %v3133
  %v3135 = vpop.xlane.xlu0 %3134
  %v3136 = vsel %vm897, %v2990, -inf
  %3137 = vmax.xlane.f32.xlu0 %v3136
  %v3138 = vpop.xlane.xlu0 %3137
  %v3139 = vsel %vm897, %v2993, -inf
  %3140 = vmax.xlane.f32.xlu0 %v3139
  %v3141 = vpop.xlane.xlu0 %3140
  %v3142 = vsel %vm897, %v3029, -inf
  %3143 = vmax.xlane.f32.xlu0 %v3142
  %v3144 = vpop.xlane.xlu0 %3143
  %v3145 = vsel %vm897, %v3032, -inf
  %3146 = vmax.xlane.f32.xlu0 %v3145
  %v3147 = vpop.xlane.xlu0 %3146
  %v3148 = vsel %vm897, %v3068, -inf
  %3149 = vmax.xlane.f32.xlu0 %v3148
  %v3150 = vpop.xlane.xlu0 %3149
  %v3151 = vsel %vm897, %v3071, -inf
  %3152 = vmax.xlane.f32.xlu0 %v3151
  %v3153 = vpop.xlane.xlu0 %3152
  %v3154 = vsel %vm897, %v3107, -inf
  %3155 = vmax.xlane.f32.xlu0 %v3154
  %v3156 = vpop.xlane.xlu0 %3155
  %v3157 = vsel %vm897, %v3110, -inf
  %3158 = vmax.xlane.f32.xlu0 %v3157
  %v3159 = vpop.xlane.xlu0 %3158
  %v3160 = vsub.f32 %v2834, %v3114
  %v3161 = vsub.f32 %v2837, %v3117
  %v3162 = vsub.f32 %v2873, %v3120
  %v3163 = vsub.f32 %v2876, %v3123
  %v3164 = vsub.f32 %v2912, %v3126
  %v3165 = vsub.f32 %v2915, %v3129
  %v3166 = vsub.f32 %v2951, %v3132
  %v3167 = vsub.f32 %v2954, %v3135
  %v3168 = vsub.f32 %v2990, %v3138
  %v3169 = vsub.f32 %v2993, %v3141
  %v3170 = vsub.f32 %v3029, %v3144
  %v3171 = vsub.f32 %v3032, %v3147
  %v3172 = vsub.f32 %v3068, %v3150
  %v3173 = vsub.f32 %v3071, %v3153
  %v3174 = vsub.f32 %v3107, %v3156
  %v3175 = vsub.f32 %v3110, %v3159
  %v3176 = vmul.f32 %v3160, 1.442695
  %v3177 = vpow.pop %v3176
  %v3178 = vmul.f32 %v3161, 1.442695
  %v3179 = vpow.pop %v3178
  %v3180 = vmul.f32 %v3162, 1.442695
  %v3181 = vpow.pop %v3180
  %v3182 = vmul.f32 %v3163, 1.442695
  %v3183 = vpow.pop %v3182
  %v3184 = vmul.f32 %v3164, 1.442695
  %v3185 = vpow.pop %v3184
  %v3186 = vmul.f32 %v3165, 1.442695
  %v3187 = vpow.pop %v3186
  %v3188 = vmul.f32 %v3166, 1.442695
  %v3189 = vpow.pop %v3188
  %v3190 = vmul.f32 %v3167, 1.442695
  %v3191 = vpow.pop %v3190
  %v3192 = vmul.f32 %v3168, 1.442695
  %v3193 = vpow.pop %v3192
  %v3194 = vmul.f32 %v3169, 1.442695
  %v3195 = vpow.pop %v3194
  %v3196 = vmul.f32 %v3170, 1.442695
  %v3197 = vpow.pop %v3196
  %v3198 = vmul.f32 %v3171, 1.442695
  %v3199 = vpow.pop %v3198
  %v3200 = vmul.f32 %v3172, 1.442695
  %v3201 = vpow.pop %v3200
  %v3202 = vmul.f32 %v3173, 1.442695
  %v3203 = vpow.pop %v3202
  %v3204 = vmul.f32 %v3174, 1.442695
  %v3205 = vpow.pop %v3204
  %v3206 = vmul.f32 %v3175, 1.442695
  %v3207 = vpow.pop %v3206
  %v3208 = vsel %vm897, %v3177, 0.0
  %3209 = vadd.xlane.f32.xlu0 %v3208
  %v3210 = vpop.xlane.xlu0 %3209
  %v3211 = vsel %vm897, %v3179, 0.0
  %3212 = vadd.xlane.f32.xlu0 %v3211
  %v3213 = vpop.xlane.xlu0 %3212
  %v3214 = vsel %vm897, %v3181, 0.0
  %3215 = vadd.xlane.f32.xlu0 %v3214
  %v3216 = vpop.xlane.xlu0 %3215
  %v3217 = vsel %vm897, %v3183, 0.0
  %3218 = vadd.xlane.f32.xlu0 %v3217
  %v3219 = vpop.xlane.xlu0 %3218
  %v3220 = vsel %vm897, %v3185, 0.0
  %3221 = vadd.xlane.f32.xlu0 %v3220
  %v3222 = vpop.xlane.xlu0 %3221
  %v3223 = vsel %vm897, %v3187, 0.0
  %3224 = vadd.xlane.f32.xlu0 %v3223
  %v3225 = vpop.xlane.xlu0 %3224
  %v3226 = vsel %vm897, %v3189, 0.0
  %3227 = vadd.xlane.f32.xlu0 %v3226
  %v3228 = vpop.xlane.xlu0 %3227
  %v3229 = vsel %vm897, %v3191, 0.0
  %3230 = vadd.xlane.f32.xlu0 %v3229
  %v3231 = vpop.xlane.xlu0 %3230
  %v3232 = vsel %vm897, %v3193, 0.0
  %3233 = vadd.xlane.f32.xlu0 %v3232
  %v3234 = vpop.xlane.xlu0 %3233
  %v3235 = vsel %vm897, %v3195, 0.0
  %3236 = vadd.xlane.f32.xlu0 %v3235
  %v3237 = vpop.xlane.xlu0 %3236
  %v3238 = vsel %vm897, %v3197, 0.0
  %3239 = vadd.xlane.f32.xlu0 %v3238
  %v3240 = vpop.xlane.xlu0 %3239
  %v3241 = vsel %vm897, %v3199, 0.0
  %3242 = vadd.xlane.f32.xlu0 %v3241
  %v3243 = vpop.xlane.xlu0 %3242
  %v3244 = vsel %vm897, %v3201, 0.0
  %3245 = vadd.xlane.f32.xlu0 %v3244
  %v3246 = vpop.xlane.xlu0 %3245
  %v3247 = vsel %vm897, %v3203, 0.0
  %3248 = vadd.xlane.f32.xlu0 %v3247
  %v3249 = vpop.xlane.xlu0 %3248
  %v3250 = vsel %vm897, %v3205, 0.0
  %3251 = vadd.xlane.f32.xlu0 %v3250
  %v3252 = vpop.xlane.xlu0 %3251
  %v3253 = vsel %vm897, %v3207, 0.0
  %3254 = vadd.xlane.f32.xlu0 %v3253
  %v3255 = vpop.xlane.xlu0 %3254
  %v3256 = vrcp.pop %v3210
  %v3257 = vmul.f32 %v3210, %v3256
  %v3258 = vsub.f32 1.0, %v3257
  %v3259 = vmul.f32 %v3256, %v3258
  %v3260 = vadd.f32 %v3256, %v3259
  %vm3261 = vweird.f32 %v3210
  %vm3262 = vweird.f32 %v3256
  %vm3263 = vmor %vm3261, %vm3262
  %v3264 = vsel %vm3263, %v3256, %v3260
  %v3265 = vand.u32 2147483647, %v3210
  %vm3266 = vcmp.eq.f32.partialorder %v3265, 8.507059e+37
  %v3267 = vand.u32 %v3210, 2147483648
  %v3268 = vor.u32 1.1754944e-38, %v3267
  %v3269 = vsel %vm3266, %v3268, %v3264
  %v3270 = vmul.f32 %v3177, %v3269
  %v3271 = vrcp.pop %v3213
  %v3272 = vmul.f32 %v3213, %v3271
  %v3273 = vsub.f32 1.0, %v3272
  %v3274 = vmul.f32 %v3271, %v3273
  %v3275 = vadd.f32 %v3271, %v3274
  %vm3276 = vweird.f32 %v3213
  %vm3277 = vweird.f32 %v3271
  %vm3278 = vmor %vm3276, %vm3277
  %v3279 = vsel %vm3278, %v3271, %v3275
  %v3280 = vand.u32 2147483647, %v3213
  %vm3281 = vcmp.eq.f32.partialorder %v3280, 8.507059e+37
  %v3282 = vand.u32 %v3213, 2147483648
  %v3283 = vor.u32 1.1754944e-38, %v3282
  %v3284 = vsel %vm3281, %v3283, %v3279
  %v3285 = vmul.f32 %v3179, %v3284
  %v3286 = vrcp.pop %v3216
  %v3287 = vmul.f32 %v3216, %v3286
  %v3288 = vsub.f32 1.0, %v3287
  %v3289 = vmul.f32 %v3286, %v3288
  %v3290 = vadd.f32 %v3286, %v3289
  %vm3291 = vweird.f32 %v3216
  %vm3292 = vweird.f32 %v3286
  %vm3293 = vmor %vm3291, %vm3292
  %v3294 = vsel %vm3293, %v3286, %v3290
  %v3295 = vand.u32 2147483647, %v3216
  %vm3296 = vcmp.eq.f32.partialorder %v3295, 8.507059e+37
  %v3297 = vand.u32 %v3216, 2147483648
  %v3298 = vor.u32 1.1754944e-38, %v3297
  %v3299 = vsel %vm3296, %v3298, %v3294
  %v3300 = vmul.f32 %v3181, %v3299
  %v3301 = vrcp.pop %v3219
  %v3302 = vmul.f32 %v3219, %v3301
  %v3303 = vsub.f32 1.0, %v3302
  %v3304 = vmul.f32 %v3301, %v3303
  %v3305 = vadd.f32 %v3301, %v3304
  %vm3306 = vweird.f32 %v3219
  %vm3307 = vweird.f32 %v3301
  %vm3308 = vmor %vm3306, %vm3307
  %v3309 = vsel %vm3308, %v3301, %v3305
  %v3310 = vand.u32 2147483647, %v3219
  %vm3311 = vcmp.eq.f32.partialorder %v3310, 8.507059e+37
  %v3312 = vand.u32 %v3219, 2147483648
  %v3313 = vor.u32 1.1754944e-38, %v3312
  %v3314 = vsel %vm3311, %v3313, %v3309
  %v3315 = vmul.f32 %v3183, %v3314
  %v3316 = vrcp.pop %v3222
  %v3317 = vmul.f32 %v3222, %v3316
  %v3318 = vsub.f32 1.0, %v3317
  %v3319 = vmul.f32 %v3316, %v3318
  %v3320 = vadd.f32 %v3316, %v3319
  %vm3321 = vweird.f32 %v3222
  %vm3322 = vweird.f32 %v3316
  %vm3323 = vmor %vm3321, %vm3322
  %v3324 = vsel %vm3323, %v3316, %v3320
  %v3325 = vand.u32 2147483647, %v3222
  %vm3326 = vcmp.eq.f32.partialorder %v3325, 8.507059e+37
  %v3327 = vand.u32 %v3222, 2147483648
  %v3328 = vor.u32 1.1754944e-38, %v3327
  %v3329 = vsel %vm3326, %v3328, %v3324
  %v3330 = vmul.f32 %v3185, %v3329
  %v3331 = vrcp.pop %v3225
  %v3332 = vmul.f32 %v3225, %v3331
  %v3333 = vsub.f32 1.0, %v3332
  %v3334 = vmul.f32 %v3331, %v3333
  %v3335 = vadd.f32 %v3331, %v3334
  %vm3336 = vweird.f32 %v3225
  %vm3337 = vweird.f32 %v3331
  %vm3338 = vmor %vm3336, %vm3337
  %v3339 = vsel %vm3338, %v3331, %v3335
  %v3340 = vand.u32 2147483647, %v3225
  %vm3341 = vcmp.eq.f32.partialorder %v3340, 8.507059e+37
  %v3342 = vand.u32 %v3225, 2147483648
  %v3343 = vor.u32 1.1754944e-38, %v3342
  %v3344 = vsel %vm3341, %v3343, %v3339
  %v3345 = vmul.f32 %v3187, %v3344
  %v3346 = vrcp.pop %v3228
  %v3347 = vmul.f32 %v3228, %v3346
  %v3348 = vsub.f32 1.0, %v3347
  %v3349 = vmul.f32 %v3346, %v3348
  %v3350 = vadd.f32 %v3346, %v3349
  %vm3351 = vweird.f32 %v3228
  %vm3352 = vweird.f32 %v3346
  %vm3353 = vmor %vm3351, %vm3352
  %v3354 = vsel %vm3353, %v3346, %v3350
  %v3355 = vand.u32 2147483647, %v3228
  %vm3356 = vcmp.eq.f32.partialorder %v3355, 8.507059e+37
  %v3357 = vand.u32 %v3228, 2147483648
  %v3358 = vor.u32 1.1754944e-38, %v3357
  %v3359 = vsel %vm3356, %v3358, %v3354
  %v3360 = vmul.f32 %v3189, %v3359
  %v3361 = vrcp.pop %v3231
  %v3362 = vmul.f32 %v3231, %v3361
  %v3363 = vsub.f32 1.0, %v3362
  %v3364 = vmul.f32 %v3361, %v3363
  %v3365 = vadd.f32 %v3361, %v3364
  %vm3366 = vweird.f32 %v3231
  %vm3367 = vweird.f32 %v3361
  %vm3368 = vmor %vm3366, %vm3367
  %v3369 = vsel %vm3368, %v3361, %v3365
  %v3370 = vand.u32 2147483647, %v3231
  %vm3371 = vcmp.eq.f32.partialorder %v3370, 8.507059e+37
  %v3372 = vand.u32 %v3231, 2147483648
  %v3373 = vor.u32 1.1754944e-38, %v3372
  %v3374 = vsel %vm3371, %v3373, %v3369
  %v3375 = vmul.f32 %v3191, %v3374
  %v3376 = vrcp.pop %v3234
  %v3377 = vmul.f32 %v3234, %v3376
  %v3378 = vsub.f32 1.0, %v3377
  %v3379 = vmul.f32 %v3376, %v3378
  %v3380 = vadd.f32 %v3376, %v3379
  %vm3381 = vweird.f32 %v3234
  %vm3382 = vweird.f32 %v3376
  %vm3383 = vmor %vm3381, %vm3382
  %v3384 = vsel %vm3383, %v3376, %v3380
  %v3385 = vand.u32 2147483647, %v3234
  %vm3386 = vcmp.eq.f32.partialorder %v3385, 8.507059e+37
  %v3387 = vand.u32 %v3234, 2147483648
  %v3388 = vor.u32 1.1754944e-38, %v3387
  %v3389 = vsel %vm3386, %v3388, %v3384
  %v3390 = vmul.f32 %v3193, %v3389
  %v3391 = vrcp.pop %v3237
  %v3392 = vmul.f32 %v3237, %v3391
  %v3393 = vsub.f32 1.0, %v3392
  %v3394 = vmul.f32 %v3391, %v3393
  %v3395 = vadd.f32 %v3391, %v3394
  %vm3396 = vweird.f32 %v3237
  %vm3397 = vweird.f32 %v3391
  %vm3398 = vmor %vm3396, %vm3397
  %v3399 = vsel %vm3398, %v3391, %v3395
  %v3400 = vand.u32 2147483647, %v3237
  %vm3401 = vcmp.eq.f32.partialorder %v3400, 8.507059e+37
  %v3402 = vand.u32 %v3237, 2147483648
  %v3403 = vor.u32 1.1754944e-38, %v3402
  %v3404 = vsel %vm3401, %v3403, %v3399
  %v3405 = vmul.f32 %v3195, %v3404
  %v3406 = vrcp.pop %v3240
  %v3407 = vmul.f32 %v3240, %v3406
  %v3408 = vsub.f32 1.0, %v3407
  %v3409 = vmul.f32 %v3406, %v3408
  %v3410 = vadd.f32 %v3406, %v3409
  %vm3411 = vweird.f32 %v3240
  %vm3412 = vweird.f32 %v3406
  %vm3413 = vmor %vm3411, %vm3412
  %v3414 = vsel %vm3413, %v3406, %v3410
  %v3415 = vand.u32 2147483647, %v3240
  %vm3416 = vcmp.eq.f32.partialorder %v3415, 8.507059e+37
  %v3417 = vand.u32 %v3240, 2147483648
  %v3418 = vor.u32 1.1754944e-38, %v3417
  %v3419 = vsel %vm3416, %v3418, %v3414
  %v3420 = vmul.f32 %v3197, %v3419
  %v3421 = vrcp.pop %v3243
  %v3422 = vmul.f32 %v3243, %v3421
  %v3423 = vsub.f32 1.0, %v3422
  %v3424 = vmul.f32 %v3421, %v3423
  %v3425 = vadd.f32 %v3421, %v3424
  %vm3426 = vweird.f32 %v3243
  %vm3427 = vweird.f32 %v3421
  %vm3428 = vmor %vm3426, %vm3427
  %v3429 = vsel %vm3428, %v3421, %v3425
  %v3430 = vand.u32 2147483647, %v3243
  %vm3431 = vcmp.eq.f32.partialorder %v3430, 8.507059e+37
  %v3432 = vand.u32 %v3243, 2147483648
  %v3433 = vor.u32 1.1754944e-38, %v3432
  %v3434 = vsel %vm3431, %v3433, %v3429
  %v3435 = vmul.f32 %v3199, %v3434
  %v3436 = vrcp.pop %v3246
  %v3437 = vmul.f32 %v3246, %v3436
  %v3438 = vsub.f32 1.0, %v3437
  %v3439 = vmul.f32 %v3436, %v3438
  %v3440 = vadd.f32 %v3436, %v3439
  %vm3441 = vweird.f32 %v3246
  %vm3442 = vweird.f32 %v3436
  %vm3443 = vmor %vm3441, %vm3442
  %v3444 = vsel %vm3443, %v3436, %v3440
  %v3445 = vand.u32 2147483647, %v3246
  %vm3446 = vcmp.eq.f32.partialorder %v3445, 8.507059e+37
  %v3447 = vand.u32 %v3246, 2147483648
  %v3448 = vor.u32 1.1754944e-38, %v3447
  %v3449 = vsel %vm3446, %v3448, %v3444
  %v3450 = vmul.f32 %v3201, %v3449
  %v3451 = vrcp.pop %v3249
  %v3452 = vmul.f32 %v3249, %v3451
  %v3453 = vsub.f32 1.0, %v3452
  %v3454 = vmul.f32 %v3451, %v3453
  %v3455 = vadd.f32 %v3451, %v3454
  %vm3456 = vweird.f32 %v3249
  %vm3457 = vweird.f32 %v3451
  %vm3458 = vmor %vm3456, %vm3457
  %v3459 = vsel %vm3458, %v3451, %v3455
  %v3460 = vand.u32 2147483647, %v3249
  %vm3461 = vcmp.eq.f32.partialorder %v3460, 8.507059e+37
  %v3462 = vand.u32 %v3249, 2147483648
  %v3463 = vor.u32 1.1754944e-38, %v3462
  %v3464 = vsel %vm3461, %v3463, %v3459
  %v3465 = vmul.f32 %v3203, %v3464
  %v3466 = vrcp.pop %v3252
  %v3467 = vmul.f32 %v3252, %v3466
  %v3468 = vsub.f32 1.0, %v3467
  %v3469 = vmul.f32 %v3466, %v3468
  %v3470 = vadd.f32 %v3466, %v3469
  %vm3471 = vweird.f32 %v3252
  %vm3472 = vweird.f32 %v3466
  %vm3473 = vmor %vm3471, %vm3472
  %v3474 = vsel %vm3473, %v3466, %v3470
  %v3475 = vand.u32 2147483647, %v3252
  %vm3476 = vcmp.eq.f32.partialorder %v3475, 8.507059e+37
  %v3477 = vand.u32 %v3252, 2147483648
  %v3478 = vor.u32 1.1754944e-38, %v3477
  %v3479 = vsel %vm3476, %v3478, %v3474
  %v3480 = vmul.f32 %v3205, %v3479
  %v3481 = vrcp.pop %v3255
  %v3482 = vmul.f32 %v3255, %v3481
  %v3483 = vsub.f32 1.0, %v3482
  %v3484 = vmul.f32 %v3481, %v3483
  %v3485 = vadd.f32 %v3481, %v3484
  %vm3486 = vweird.f32 %v3255
  %vm3487 = vweird.f32 %v3481
  %vm3488 = vmor %vm3486, %vm3487
  %v3489 = vsel %vm3488, %v3481, %v3485
  %v3490 = vand.u32 2147483647, %v3255
  %vm3491 = vcmp.eq.f32.partialorder %v3490, 8.507059e+37
  %v3492 = vand.u32 %v3255, 2147483648
  %v3493 = vor.u32 1.1754944e-38, %v3492
  %v3494 = vsel %vm3491, %v3493, %v3489
  %v3495 = vmul.f32 %v3207, %v3494
  %3496 = vrot.lane.b32.xlu0 %v537, 48
  %v3497 = vpop.permute.xlu0 %3496
  %3498 = vrot.lane.b32.xlu0 %v540, 48
  %v3499 = vpop.permute.xlu0 %3498
  %v3503 = vsel %vm897, %v3270, 0
  %v3506 = vsel %vm897, %v3285, 0
  %3508 = vmatpush.msra.mxu0 0.0
  %3509 = vmatpush.msra.mxu0 0.0
  %3510 = vmatpush.msra.mxu0 0.0
  %3511 = vmatpush.msra.mxu0 0.0
  %3512 = vmatpush.msra.mxu0 0.0
  %3513 = vmatpush.msra.mxu0 0.0
  %3514 = vmatpush.msra.mxu0 0.0
  %3515 = vmatpush.msra.mxu0 0.0
  %3516 = vmatpush.msra.mxu0 0.0
  %3517 = vmatpush.msra.mxu0 0.0
  %3518 = vmatpush.msra.mxu0 0.0
  %3519 = vmatpush.msra.mxu0 0.0
  %3520 = vmatpush.msra.mxu0 0.0
  %3521 = vmatpush.msra.mxu0 0.0
  %3522 = vmatpush.msra.mxu0 %v3499
  %3523 = vmatpush.msra.mxu0 %v3497
  %3524 = vmatmul.f32.gmra.mxu0 %v3503
  %v3525 = vpop.f32.mrf.mxu0
  %v3526 = vadd.f32 0.0, %v3525
  %3527 = vmatmul.f32.gmra.mxu0 %v3506
  %v3528 = vpop.f32.mrf.mxu0
  %v3529 = vadd.f32 0.0, %v3528
  %3530 = vdwg.mxu0
  %3531 = vrot.lane.b32.xlu0 %v543, 48
  %v3532 = vpop.permute.xlu0 %3531
  %3533 = vrot.lane.b32.xlu0 %v546, 48
  %v3534 = vpop.permute.xlu0 %3533
  %v3538 = vsel %vm897, %v3300, 0
  %v3541 = vsel %vm897, %v3315, 0
  %3543 = vmatpush.msra.mxu0 0.0
  %3544 = vmatpush.msra.mxu0 0.0
  %3545 = vmatpush.msra.mxu0 0.0
  %3546 = vmatpush.msra.mxu0 0.0
  %3547 = vmatpush.msra.mxu0 0.0
  %3548 = vmatpush.msra.mxu0 0.0
  %3549 = vmatpush.msra.mxu0 0.0
  %3550 = vmatpush.msra.mxu0 0.0
  %3551 = vmatpush.msra.mxu0 0.0
  %3552 = vmatpush.msra.mxu0 0.0
  %3553 = vmatpush.msra.mxu0 0.0
  %3554 = vmatpush.msra.mxu0 0.0
  %3555 = vmatpush.msra.mxu0 0.0
  %3556 = vmatpush.msra.mxu0 0.0
  %3557 = vmatpush.msra.mxu0 %v3534
  %3558 = vmatpush.msra.mxu0 %v3532
  %3559 = vmatmul.f32.gmra.mxu0 %v3538
  %v3560 = vpop.f32.mrf.mxu0
  %v3561 = vadd.f32 0.0, %v3560
  %3562 = vmatmul.f32.gmra.mxu0 %v3541
  %v3563 = vpop.f32.mrf.mxu0
  %v3564 = vadd.f32 0.0, %v3563
  %3565 = vdwg.mxu0
  %3566 = vrot.lane.b32.xlu0 %v549, 48
  %v3567 = vpop.permute.xlu0 %3566
  %3568 = vrot.lane.b32.xlu0 %v552, 48
  %v3569 = vpop.permute.xlu0 %3568
  %v3573 = vsel %vm897, %v3330, 0
  %v3576 = vsel %vm897, %v3345, 0
  %3578 = vmatpush.msra.mxu0 0.0
  %3579 = vmatpush.msra.mxu0 0.0
  %3580 = vmatpush.msra.mxu0 0.0
  %3581 = vmatpush.msra.mxu0 0.0
  %3582 = vmatpush.msra.mxu0 0.0
  %3583 = vmatpush.msra.mxu0 0.0
  %3584 = vmatpush.msra.mxu0 0.0
  %3585 = vmatpush.msra.mxu0 0.0
  %3586 = vmatpush.msra.mxu0 0.0
  %3587 = vmatpush.msra.mxu0 0.0
  %3588 = vmatpush.msra.mxu0 0.0
  %3589 = vmatpush.msra.mxu0 0.0
  %3590 = vmatpush.msra.mxu0 0.0
  %3591 = vmatpush.msra.mxu0 0.0
  %3592 = vmatpush.msra.mxu0 %v3569
  %3593 = vmatpush.msra.mxu0 %v3567
  %3594 = vmatmul.f32.gmra.mxu0 %v3573
  %v3595 = vpop.f32.mrf.mxu0
  %v3596 = vadd.f32 0.0, %v3595
  %3597 = vmatmul.f32.gmra.mxu0 %v3576
  %v3598 = vpop.f32.mrf.mxu0
  %v3599 = vadd.f32 0.0, %v3598
  %3600 = vdwg.mxu0
  %3601 = vrot.lane.b32.xlu0 %v555, 48
  %v3602 = vpop.permute.xlu0 %3601
  %3603 = vrot.lane.b32.xlu0 %v558, 48
  %v3604 = vpop.permute.xlu0 %3603
  %v3608 = vsel %vm897, %v3360, 0
  %v3611 = vsel %vm897, %v3375, 0
  %3613 = vmatpush.msra.mxu0 0.0
  %3614 = vmatpush.msra.mxu0 0.0
  %3615 = vmatpush.msra.mxu0 0.0
  %3616 = vmatpush.msra.mxu0 0.0
  %3617 = vmatpush.msra.mxu0 0.0
  %3618 = vmatpush.msra.mxu0 0.0
  %3619 = vmatpush.msra.mxu0 0.0
  %3620 = vmatpush.msra.mxu0 0.0
  %3621 = vmatpush.msra.mxu0 0.0
  %3622 = vmatpush.msra.mxu0 0.0
  %3623 = vmatpush.msra.mxu0 0.0
  %3624 = vmatpush.msra.mxu0 0.0
  %3625 = vmatpush.msra.mxu0 0.0
  %3626 = vmatpush.msra.mxu0 0.0
  %3627 = vmatpush.msra.mxu0 %v3604
  %3628 = vmatpush.msra.mxu0 %v3602
  %3629 = vmatmul.f32.gmra.mxu0 %v3608
  %v3630 = vpop.f32.mrf.mxu0
  %v3631 = vadd.f32 0.0, %v3630
  %3632 = vmatmul.f32.gmra.mxu0 %v3611
  %v3633 = vpop.f32.mrf.mxu0
  %v3634 = vadd.f32 0.0, %v3633
  %3635 = vdwg.mxu0
  %3636 = vrot.lane.b32.xlu0 %v561, 48
  %v3637 = vpop.permute.xlu0 %3636
  %3638 = vrot.lane.b32.xlu0 %v564, 48
  %v3639 = vpop.permute.xlu0 %3638
  %v3643 = vsel %vm897, %v3390, 0
  %v3646 = vsel %vm897, %v3405, 0
  %3648 = vmatpush.msra.mxu0 0.0
  %3649 = vmatpush.msra.mxu0 0.0
  %3650 = vmatpush.msra.mxu0 0.0
  %3651 = vmatpush.msra.mxu0 0.0
  %3652 = vmatpush.msra.mxu0 0.0
  %3653 = vmatpush.msra.mxu0 0.0
  %3654 = vmatpush.msra.mxu0 0.0
  %3655 = vmatpush.msra.mxu0 0.0
  %3656 = vmatpush.msra.mxu0 0.0
  %3657 = vmatpush.msra.mxu0 0.0
  %3658 = vmatpush.msra.mxu0 0.0
  %3659 = vmatpush.msra.mxu0 0.0
  %3660 = vmatpush.msra.mxu0 0.0
  %3661 = vmatpush.msra.mxu0 0.0
  %3662 = vmatpush.msra.mxu0 %v3639
  %3663 = vmatpush.msra.mxu0 %v3637
  %3664 = vmatmul.f32.gmra.mxu0 %v3643
  %v3665 = vpop.f32.mrf.mxu0
  %v3666 = vadd.f32 0.0, %v3665
  %3667 = vmatmul.f32.gmra.mxu0 %v3646
  %v3668 = vpop.f32.mrf.mxu0
  %v3669 = vadd.f32 0.0, %v3668
  %3670 = vdwg.mxu0
  %3671 = vrot.lane.b32.xlu0 %v567, 48
  %v3672 = vpop.permute.xlu0 %3671
  %3673 = vrot.lane.b32.xlu0 %v570, 48
  %v3674 = vpop.permute.xlu0 %3673
  %v3678 = vsel %vm897, %v3420, 0
  %v3681 = vsel %vm897, %v3435, 0
  %3683 = vmatpush.msra.mxu0 0.0
  %3684 = vmatpush.msra.mxu0 0.0
  %3685 = vmatpush.msra.mxu0 0.0
  %3686 = vmatpush.msra.mxu0 0.0
  %3687 = vmatpush.msra.mxu0 0.0
  %3688 = vmatpush.msra.mxu0 0.0
  %3689 = vmatpush.msra.mxu0 0.0
  %3690 = vmatpush.msra.mxu0 0.0
  %3691 = vmatpush.msra.mxu0 0.0
  %3692 = vmatpush.msra.mxu0 0.0
  %3693 = vmatpush.msra.mxu0 0.0
  %3694 = vmatpush.msra.mxu0 0.0
  %3695 = vmatpush.msra.mxu0 0.0
  %3696 = vmatpush.msra.mxu0 0.0
  %3697 = vmatpush.msra.mxu0 %v3674
  %3698 = vmatpush.msra.mxu0 %v3672
  %3699 = vmatmul.f32.gmra.mxu0 %v3678
  %v3700 = vpop.f32.mrf.mxu0
  %v3701 = vadd.f32 0.0, %v3700
  %3702 = vmatmul.f32.gmra.mxu0 %v3681
  %v3703 = vpop.f32.mrf.mxu0
  %v3704 = vadd.f32 0.0, %v3703
  %3705 = vdwg.mxu0
  %3706 = vrot.lane.b32.xlu0 %v573, 48
  %v3707 = vpop.permute.xlu0 %3706
  %3708 = vrot.lane.b32.xlu0 %v576, 48
  %v3709 = vpop.permute.xlu0 %3708
  %v3713 = vsel %vm897, %v3450, 0
  %v3716 = vsel %vm897, %v3465, 0
  %3718 = vmatpush.msra.mxu0 0.0
  %3719 = vmatpush.msra.mxu0 0.0
  %3720 = vmatpush.msra.mxu0 0.0
  %3721 = vmatpush.msra.mxu0 0.0
  %3722 = vmatpush.msra.mxu0 0.0
  %3723 = vmatpush.msra.mxu0 0.0
  %3724 = vmatpush.msra.mxu0 0.0
  %3725 = vmatpush.msra.mxu0 0.0
  %3726 = vmatpush.msra.mxu0 0.0
  %3727 = vmatpush.msra.mxu0 0.0
  %3728 = vmatpush.msra.mxu0 0.0
  %3729 = vmatpush.msra.mxu0 0.0
  %3730 = vmatpush.msra.mxu0 0.0
  %3731 = vmatpush.msra.mxu0 0.0
  %3732 = vmatpush.msra.mxu0 %v3709
  %3733 = vmatpush.msra.mxu0 %v3707
  %3734 = vmatmul.f32.gmra.mxu0 %v3713
  %v3735 = vpop.f32.mrf.mxu0
  %v3736 = vadd.f32 0.0, %v3735
  %3737 = vmatmul.f32.gmra.mxu0 %v3716
  %v3738 = vpop.f32.mrf.mxu0
  %v3739 = vadd.f32 0.0, %v3738
  %3740 = vdwg.mxu0
  %3741 = vrot.lane.b32.xlu0 %v579, 48
  %v3742 = vpop.permute.xlu0 %3741
  %3743 = vrot.lane.b32.xlu0 %v582, 48
  %v3744 = vpop.permute.xlu0 %3743
  %v3748 = vsel %vm897, %v3480, 0
  %v3751 = vsel %vm897, %v3495, 0
  %3753 = vmatpush.msra.mxu0 0.0
  %3754 = vmatpush.msra.mxu0 0.0
  %3755 = vmatpush.msra.mxu0 0.0
  %3756 = vmatpush.msra.mxu0 0.0
  %3757 = vmatpush.msra.mxu0 0.0
  %3758 = vmatpush.msra.mxu0 0.0
  %3759 = vmatpush.msra.mxu0 0.0
  %3760 = vmatpush.msra.mxu0 0.0
  %3761 = vmatpush.msra.mxu0 0.0
  %3762 = vmatpush.msra.mxu0 0.0
  %3763 = vmatpush.msra.mxu0 0.0
  %3764 = vmatpush.msra.mxu0 0.0
  %3765 = vmatpush.msra.mxu0 0.0
  %3766 = vmatpush.msra.mxu0 0.0
  %3767 = vmatpush.msra.mxu0 %v3744
  %3768 = vmatpush.msra.mxu0 %v3742
  %3769 = vmatmul.f32.gmra.mxu0 %v3748
  %v3770 = vpop.f32.mrf.mxu0
  %v3771 = vadd.f32 0.0, %v3770
  %3772 = vmatmul.f32.gmra.mxu0 %v3751
  %v3773 = vpop.f32.mrf.mxu0
  %v3774 = vadd.f32 0.0, %v3773
  %3775 = vdwg.mxu0
  %v3776 = vld [vmem:[%s6 + $0x10] sm:$0xff]
  %v3778 = vsel %vm606, %v3526, 0
  %v3781 = vsel %vm606, %v3529, 0
  %v3784 = vsel %vm606, %v3561, 0
  %v3787 = vsel %vm606, %v3564, 0
  %v3790 = vsel %vm606, %v3596, 0
  %v3793 = vsel %vm606, %v3599, 0
  %v3796 = vsel %vm606, %v3631, 0
  %v3799 = vsel %vm606, %v3634, 0
  %v3802 = vsel %vm606, %v3666, 0
  %v3805 = vsel %vm606, %v3669, 0
  %v3808 = vsel %vm606, %v3701, 0
  %v3811 = vsel %vm606, %v3704, 0
  %v3814 = vsel %vm606, %v3736, 0
  %v3817 = vsel %vm606, %v3739, 0
  %v3820 = vsel %vm606, %v3771, 0
  %v3823 = vsel %vm606, %v3774, 0
  %3825 = vmatpush.msra.mxu0 0.0
  %3826 = vmatpush.msra.mxu0 0.0
  %3827 = vmatpush.msra.mxu0 0.0
  %3828 = vmatpush.msra.mxu0 0.0
  %3829 = vmatpush.msra.mxu0 0.0
  %3830 = vmatpush.msra.mxu0 0.0
  %3831 = vmatpush.msra.mxu0 0.0
  %3832 = vmatpush.msra.mxu0 0.0
  %3833 = vmatpush.msra.mxu0 0.0
  %3834 = vmatpush.msra.mxu0 0.0
  %3835 = vmatpush.msra.mxu0 0.0
  %3836 = vmatpush.msra.mxu0 0.0
  %3837 = vmatpush.msra.mxu0 0.0
  %3838 = vmatpush.msra.mxu0 0.0
  %3839 = vmatpush.msra.mxu0 0.0
  %3840 = vmatpush.msra.mxu0 %v3776
  %3841 = vmatmul.f32.gmra.mxu0 %v3778
  %v3842 = vpop.f32.mrf.mxu0
  %v3843 = vadd.f32 0.0, %v3842
  %3844 = vmatmul.f32.gmra.mxu0 %v3781
  %v3845 = vpop.f32.mrf.mxu0
  %v3846 = vadd.f32 0.0, %v3845
  %3847 = vmatmul.f32.gmra.mxu0 %v3784
  %v3848 = vpop.f32.mrf.mxu0
  %v3849 = vadd.f32 0.0, %v3848
  %3850 = vmatmul.f32.gmra.mxu0 %v3787
  %v3851 = vpop.f32.mrf.mxu0
  %v3852 = vadd.f32 0.0, %v3851
  %3853 = vmatmul.f32.gmra.mxu0 %v3790
  %v3854 = vpop.f32.mrf.mxu0
  %v3855 = vadd.f32 0.0, %v3854
  %3856 = vmatmul.f32.gmra.mxu0 %v3793
  %v3857 = vpop.f32.mrf.mxu0
  %v3858 = vadd.f32 0.0, %v3857
  %3859 = vmatmul.f32.gmra.mxu0 %v3796
  %v3860 = vpop.f32.mrf.mxu0
  %v3861 = vadd.f32 0.0, %v3860
  %3862 = vmatmul.f32.gmra.mxu0 %v3799
  %v3863 = vpop.f32.mrf.mxu0
  %v3864 = vadd.f32 0.0, %v3863
  %3865 = vmatmul.f32.gmra.mxu0 %v3802
  %v3866 = vpop.f32.mrf.mxu0
  %v3867 = vadd.f32 0.0, %v3866
  %3868 = vmatmul.f32.gmra.mxu0 %v3805
  %v3869 = vpop.f32.mrf.mxu0
  %v3870 = vadd.f32 0.0, %v3869
  %3871 = vmatmul.f32.gmra.mxu0 %v3808
  %v3872 = vpop.f32.mrf.mxu0
  %v3873 = vadd.f32 0.0, %v3872
  %3874 = vmatmul.f32.gmra.mxu0 %v3811
  %v3875 = vpop.f32.mrf.mxu0
  %v3876 = vadd.f32 0.0, %v3875
  %3877 = vmatmul.f32.gmra.mxu0 %v3814
  %v3878 = vpop.f32.mrf.mxu0
  %v3879 = vadd.f32 0.0, %v3878
  %3880 = vmatmul.f32.gmra.mxu0 %v3817
  %v3881 = vpop.f32.mrf.mxu0
  %v3882 = vadd.f32 0.0, %v3881
  %3883 = vmatmul.f32.gmra.mxu0 %v3820
  %v3884 = vpop.f32.mrf.mxu0
  %v3885 = vadd.f32 0.0, %v3884
  %3886 = vmatmul.f32.gmra.mxu0 %v3823
  %v3887 = vpop.f32.mrf.mxu0
  %v3888 = vadd.f32 0.0, %v3887
  %3889 = vdwg.mxu0
  %v3890 = vadd.f32 %v2736, %v3843
  %v3891 = vadd.f32 %v2739, %v3846
  %v3892 = vadd.f32 %v2742, %v3849
  %v3893 = vadd.f32 %v2745, %v3852
  %v3894 = vadd.f32 %v2748, %v3855
  %v3895 = vadd.f32 %v2751, %v3858
  %v3896 = vadd.f32 %v2754, %v3861
  %v3897 = vadd.f32 %v2757, %v3864
  %v3898 = vadd.f32 %v2760, %v3867
  %v3899 = vadd.f32 %v2763, %v3870
  %v3900 = vadd.f32 %v2766, %v3873
  %v3901 = vadd.f32 %v2769, %v3876
  %v3902 = vadd.f32 %v2772, %v3879
  %v3903 = vadd.f32 %v2775, %v3882
  %v3904 = vadd.f32 %v2778, %v3885
  %v3905 = vadd.f32 %v2781, %v3888
  %s3906 = scalar_lea.vmem %s5, 384
  %v3907 = vld [vmem:[%s3906] sm:$0xff]
  %v3908 = vld [vmem:[%s3906 + $0x8] sm:$0xff]
  %v3909 = vld [vmem:[%s3906 + $0x10] sm:$0xff]
  %v3910 = vld [vmem:[%s3906 + $0x18] sm:$0xff]
  %v3911 = vld [vmem:[%s3906 + $0x20] sm:$0xff]
  %v3912 = vld [vmem:[%s3906 + $0x28] sm:$0xff]
  %v3913 = vld [vmem:[%s3906 + $0x30] sm:$0xff]
  %v3914 = vld [vmem:[%s3906 + $0x38] sm:$0xff]
  %v3915 = vld [vmem:[%s3906 + $0x40] sm:$0xff]
  %v3916 = vld [vmem:[%s3906 + $0x48] sm:$0xff]
  %v3917 = vld [vmem:[%s3906 + $0x50] sm:$0xff]
  %v3918 = vld [vmem:[%s3906 + $0x58] sm:$0xff]
  %v3919 = vld [vmem:[%s3906 + $0x60] sm:$0xff]
  %v3920 = vld [vmem:[%s3906 + $0x68] sm:$0xff]
  %v3921 = vld [vmem:[%s3906 + $0x70] sm:$0xff]
  %v3922 = vld [vmem:[%s3906 + $0x78] sm:$0xff]
  %3923 = vrot.lane.b32.xlu0 %v537, 104
  %v3924 = vpop.permute.xlu0 %3923
  %3925 = vrot.lane.b32.xlu0 %v540, 104
  %v3926 = vpop.permute.xlu0 %3925
  %3927 = vrot.lane.b32.xlu0 %v537, 72
  %v3928 = vpop.permute.xlu0 %3927
  %3929 = vrot.lane.b32.xlu0 %v540, 72
  %v3930 = vpop.permute.xlu0 %3929
  %v3931 = vsel %vm606, %v3924, 0
  %v3933 = vsel %vm606, %v3926, 0
  %v3935 = vsel %vm606, %v3928, 0
  %v3937 = vsel %vm606, %v3930, 0
  %3939 = vmatpush.xpose.msra.mxu0 0.0
  %3940 = vmatpush.xpose.msra.mxu0 0.0
  %3941 = vmatpush.xpose.msra.mxu0 0.0
  %3942 = vmatpush.xpose.msra.mxu0 0.0
  %3943 = vmatpush.xpose.msra.mxu0 0.0
  %3944 = vmatpush.xpose.msra.mxu0 0.0
  %3945 = vmatpush.xpose.msra.mxu0 0.0
  %3946 = vmatpush.xpose.msra.mxu0 0.0
  %3947 = vmatpush.xpose.msra.mxu0 0.0
  %3948 = vmatpush.xpose.msra.mxu0 0.0
  %3949 = vmatpush.xpose.msra.mxu0 0.0
  %3950 = vmatpush.xpose.msra.mxu0 0.0
  %3951 = vmatpush.xpose.msra.mxu0 0.0
  %3952 = vmatpush.xpose.msra.mxu0 0.0
  %3953 = vmatpush.xpose.msra.mxu0 %v3937
  %3954 = vmatpush.xpose.msra.mxu0 %v3935
  %3955 = vmatmul.f32.gmra.mxu0 %v3931
  %v3956 = vpop.f32.mrf.mxu0
  %v3957 = vadd.f32 %v3907, %v3956
  %3958 = vmatmul.f32.gmra.mxu0 %v3933
  %v3959 = vpop.f32.mrf.mxu0
  %v3960 = vadd.f32 %v3908, %v3959
  %3961 = vdwg.mxu0
  %3962 = vrot.lane.b32.xlu0 %v543, 104
  %v3963 = vpop.permute.xlu0 %3962
  %3964 = vrot.lane.b32.xlu0 %v546, 104
  %v3965 = vpop.permute.xlu0 %3964
  %3966 = vrot.lane.b32.xlu0 %v543, 72
  %v3967 = vpop.permute.xlu0 %3966
  %3968 = vrot.lane.b32.xlu0 %v546, 72
  %v3969 = vpop.permute.xlu0 %3968
  %v3970 = vsel %vm606, %v3963, 0
  %v3972 = vsel %vm606, %v3965, 0
  %v3974 = vsel %vm606, %v3967, 0
  %v3976 = vsel %vm606, %v3969, 0
  %3978 = vmatpush.xpose.msra.mxu0 0.0
  %3979 = vmatpush.xpose.msra.mxu0 0.0
  %3980 = vmatpush.xpose.msra.mxu0 0.0
  %3981 = vmatpush.xpose.msra.mxu0 0.0
  %3982 = vmatpush.xpose.msra.mxu0 0.0
  %3983 = vmatpush.xpose.msra.mxu0 0.0
  %3984 = vmatpush.xpose.msra.mxu0 0.0
  %3985 = vmatpush.xpose.msra.mxu0 0.0
  %3986 = vmatpush.xpose.msra.mxu0 0.0
  %3987 = vmatpush.xpose.msra.mxu0 0.0
  %3988 = vmatpush.xpose.msra.mxu0 0.0
  %3989 = vmatpush.xpose.msra.mxu0 0.0
  %3990 = vmatpush.xpose.msra.mxu0 0.0
  %3991 = vmatpush.xpose.msra.mxu0 0.0
  %3992 = vmatpush.xpose.msra.mxu0 %v3976
  %3993 = vmatpush.xpose.msra.mxu0 %v3974
  %3994 = vmatmul.f32.gmra.mxu0 %v3970
  %v3995 = vpop.f32.mrf.mxu0
  %v3996 = vadd.f32 %v3909, %v3995
  %3997 = vmatmul.f32.gmra.mxu0 %v3972
  %v3998 = vpop.f32.mrf.mxu0
  %v3999 = vadd.f32 %v3910, %v3998
  %4000 = vdwg.mxu0
  %4001 = vrot.lane.b32.xlu0 %v549, 104
  %v4002 = vpop.permute.xlu0 %4001
  %4003 = vrot.lane.b32.xlu0 %v552, 104
  %v4004 = vpop.permute.xlu0 %4003
  %4005 = vrot.lane.b32.xlu0 %v549, 72
  %v4006 = vpop.permute.xlu0 %4005
  %4007 = vrot.lane.b32.xlu0 %v552, 72
  %v4008 = vpop.permute.xlu0 %4007
  %v4009 = vsel %vm606, %v4002, 0
  %v4011 = vsel %vm606, %v4004, 0
  %v4013 = vsel %vm606, %v4006, 0
  %v4015 = vsel %vm606, %v4008, 0
  %4017 = vmatpush.xpose.msra.mxu0 0.0
  %4018 = vmatpush.xpose.msra.mxu0 0.0
  %4019 = vmatpush.xpose.msra.mxu0 0.0
  %4020 = vmatpush.xpose.msra.mxu0 0.0
  %4021 = vmatpush.xpose.msra.mxu0 0.0
  %4022 = vmatpush.xpose.msra.mxu0 0.0
  %4023 = vmatpush.xpose.msra.mxu0 0.0
  %4024 = vmatpush.xpose.msra.mxu0 0.0
  %4025 = vmatpush.xpose.msra.mxu0 0.0
  %4026 = vmatpush.xpose.msra.mxu0 0.0
  %4027 = vmatpush.xpose.msra.mxu0 0.0
  %4028 = vmatpush.xpose.msra.mxu0 0.0
  %4029 = vmatpush.xpose.msra.mxu0 0.0
  %4030 = vmatpush.xpose.msra.mxu0 0.0
  %4031 = vmatpush.xpose.msra.mxu0 %v4015
  %4032 = vmatpush.xpose.msra.mxu0 %v4013
  %4033 = vmatmul.f32.gmra.mxu0 %v4009
  %v4034 = vpop.f32.mrf.mxu0
  %v4035 = vadd.f32 %v3911, %v4034
  %4036 = vmatmul.f32.gmra.mxu0 %v4011
  %v4037 = vpop.f32.mrf.mxu0
  %v4038 = vadd.f32 %v3912, %v4037
  %4039 = vdwg.mxu0
  %4040 = vrot.lane.b32.xlu0 %v555, 104
  %v4041 = vpop.permute.xlu0 %4040
  %4042 = vrot.lane.b32.xlu0 %v558, 104
  %v4043 = vpop.permute.xlu0 %4042
  %4044 = vrot.lane.b32.xlu0 %v555, 72
  %v4045 = vpop.permute.xlu0 %4044
  %4046 = vrot.lane.b32.xlu0 %v558, 72
  %v4047 = vpop.permute.xlu0 %4046
  %v4048 = vsel %vm606, %v4041, 0
  %v4050 = vsel %vm606, %v4043, 0
  %v4052 = vsel %vm606, %v4045, 0
  %v4054 = vsel %vm606, %v4047, 0
  %4056 = vmatpush.xpose.msra.mxu0 0.0
  %4057 = vmatpush.xpose.msra.mxu0 0.0
  %4058 = vmatpush.xpose.msra.mxu0 0.0
  %4059 = vmatpush.xpose.msra.mxu0 0.0
  %4060 = vmatpush.xpose.msra.mxu0 0.0
  %4061 = vmatpush.xpose.msra.mxu0 0.0
  %4062 = vmatpush.xpose.msra.mxu0 0.0
  %4063 = vmatpush.xpose.msra.mxu0 0.0
  %4064 = vmatpush.xpose.msra.mxu0 0.0
  %4065 = vmatpush.xpose.msra.mxu0 0.0
  %4066 = vmatpush.xpose.msra.mxu0 0.0
  %4067 = vmatpush.xpose.msra.mxu0 0.0
  %4068 = vmatpush.xpose.msra.mxu0 0.0
  %4069 = vmatpush.xpose.msra.mxu0 0.0
  %4070 = vmatpush.xpose.msra.mxu0 %v4054
  %4071 = vmatpush.xpose.msra.mxu0 %v4052
  %4072 = vmatmul.f32.gmra.mxu0 %v4048
  %v4073 = vpop.f32.mrf.mxu0
  %v4074 = vadd.f32 %v3913, %v4073
  %4075 = vmatmul.f32.gmra.mxu0 %v4050
  %v4076 = vpop.f32.mrf.mxu0
  %v4077 = vadd.f32 %v3914, %v4076
  %4078 = vdwg.mxu0
  %4079 = vrot.lane.b32.xlu0 %v561, 104
  %v4080 = vpop.permute.xlu0 %4079
  %4081 = vrot.lane.b32.xlu0 %v564, 104
  %v4082 = vpop.permute.xlu0 %4081
  %4083 = vrot.lane.b32.xlu0 %v561, 72
  %v4084 = vpop.permute.xlu0 %4083
  %4085 = vrot.lane.b32.xlu0 %v564, 72
  %v4086 = vpop.permute.xlu0 %4085
  %v4087 = vsel %vm606, %v4080, 0
  %v4089 = vsel %vm606, %v4082, 0
  %v4091 = vsel %vm606, %v4084, 0
  %v4093 = vsel %vm606, %v4086, 0
  %4095 = vmatpush.xpose.msra.mxu0 0.0
  %4096 = vmatpush.xpose.msra.mxu0 0.0
  %4097 = vmatpush.xpose.msra.mxu0 0.0
  %4098 = vmatpush.xpose.msra.mxu0 0.0
  %4099 = vmatpush.xpose.msra.mxu0 0.0
  %4100 = vmatpush.xpose.msra.mxu0 0.0
  %4101 = vmatpush.xpose.msra.mxu0 0.0
  %4102 = vmatpush.xpose.msra.mxu0 0.0
  %4103 = vmatpush.xpose.msra.mxu0 0.0
  %4104 = vmatpush.xpose.msra.mxu0 0.0
  %4105 = vmatpush.xpose.msra.mxu0 0.0
  %4106 = vmatpush.xpose.msra.mxu0 0.0
  %4107 = vmatpush.xpose.msra.mxu0 0.0
  %4108 = vmatpush.xpose.msra.mxu0 0.0
  %4109 = vmatpush.xpose.msra.mxu0 %v4093
  %4110 = vmatpush.xpose.msra.mxu0 %v4091
  %4111 = vmatmul.f32.gmra.mxu0 %v4087
  %v4112 = vpop.f32.mrf.mxu0
  %v4113 = vadd.f32 %v3915, %v4112
  %4114 = vmatmul.f32.gmra.mxu0 %v4089
  %v4115 = vpop.f32.mrf.mxu0
  %v4116 = vadd.f32 %v3916, %v4115
  %4117 = vdwg.mxu0
  %4118 = vrot.lane.b32.xlu0 %v567, 104
  %v4119 = vpop.permute.xlu0 %4118
  %4120 = vrot.lane.b32.xlu0 %v570, 104
  %v4121 = vpop.permute.xlu0 %4120
  %4122 = vrot.lane.b32.xlu0 %v567, 72
  %v4123 = vpop.permute.xlu0 %4122
  %4124 = vrot.lane.b32.xlu0 %v570, 72
  %v4125 = vpop.permute.xlu0 %4124
  %v4126 = vsel %vm606, %v4119, 0
  %v4128 = vsel %vm606, %v4121, 0
  %v4130 = vsel %vm606, %v4123, 0
  %v4132 = vsel %vm606, %v4125, 0
  %4134 = vmatpush.xpose.msra.mxu0 0.0
  %4135 = vmatpush.xpose.msra.mxu0 0.0
  %4136 = vmatpush.xpose.msra.mxu0 0.0
  %4137 = vmatpush.xpose.msra.mxu0 0.0
  %4138 = vmatpush.xpose.msra.mxu0 0.0
  %4139 = vmatpush.xpose.msra.mxu0 0.0
  %4140 = vmatpush.xpose.msra.mxu0 0.0
  %4141 = vmatpush.xpose.msra.mxu0 0.0
  %4142 = vmatpush.xpose.msra.mxu0 0.0
  %4143 = vmatpush.xpose.msra.mxu0 0.0
  %4144 = vmatpush.xpose.msra.mxu0 0.0
  %4145 = vmatpush.xpose.msra.mxu0 0.0
  %4146 = vmatpush.xpose.msra.mxu0 0.0
  %4147 = vmatpush.xpose.msra.mxu0 0.0
  %4148 = vmatpush.xpose.msra.mxu0 %v4132
  %4149 = vmatpush.xpose.msra.mxu0 %v4130
  %4150 = vmatmul.f32.gmra.mxu0 %v4126
  %v4151 = vpop.f32.mrf.mxu0
  %v4152 = vadd.f32 %v3917, %v4151
  %4153 = vmatmul.f32.gmra.mxu0 %v4128
  %v4154 = vpop.f32.mrf.mxu0
  %v4155 = vadd.f32 %v3918, %v4154
  %4156 = vdwg.mxu0
  %4157 = vrot.lane.b32.xlu0 %v573, 104
  %v4158 = vpop.permute.xlu0 %4157
  %4159 = vrot.lane.b32.xlu0 %v576, 104
  %v4160 = vpop.permute.xlu0 %4159
  %4161 = vrot.lane.b32.xlu0 %v573, 72
  %v4162 = vpop.permute.xlu0 %4161
  %4163 = vrot.lane.b32.xlu0 %v576, 72
  %v4164 = vpop.permute.xlu0 %4163
  %v4165 = vsel %vm606, %v4158, 0
  %v4167 = vsel %vm606, %v4160, 0
  %v4169 = vsel %vm606, %v4162, 0
  %v4171 = vsel %vm606, %v4164, 0
  %4173 = vmatpush.xpose.msra.mxu0 0.0
  %4174 = vmatpush.xpose.msra.mxu0 0.0
  %4175 = vmatpush.xpose.msra.mxu0 0.0
  %4176 = vmatpush.xpose.msra.mxu0 0.0
  %4177 = vmatpush.xpose.msra.mxu0 0.0
  %4178 = vmatpush.xpose.msra.mxu0 0.0
  %4179 = vmatpush.xpose.msra.mxu0 0.0
  %4180 = vmatpush.xpose.msra.mxu0 0.0
  %4181 = vmatpush.xpose.msra.mxu0 0.0
  %4182 = vmatpush.xpose.msra.mxu0 0.0
  %4183 = vmatpush.xpose.msra.mxu0 0.0
  %4184 = vmatpush.xpose.msra.mxu0 0.0
  %4185 = vmatpush.xpose.msra.mxu0 0.0
  %4186 = vmatpush.xpose.msra.mxu0 0.0
  %4187 = vmatpush.xpose.msra.mxu0 %v4171
  %4188 = vmatpush.xpose.msra.mxu0 %v4169
  %4189 = vmatmul.f32.gmra.mxu0 %v4165
  %v4190 = vpop.f32.mrf.mxu0
  %v4191 = vadd.f32 %v3919, %v4190
  %4192 = vmatmul.f32.gmra.mxu0 %v4167
  %v4193 = vpop.f32.mrf.mxu0
  %v4194 = vadd.f32 %v3920, %v4193
  %4195 = vdwg.mxu0
  %4196 = vrot.lane.b32.xlu0 %v579, 104
  %v4197 = vpop.permute.xlu0 %4196
  %4198 = vrot.lane.b32.xlu0 %v582, 104
  %v4199 = vpop.permute.xlu0 %4198
  %4200 = vrot.lane.b32.xlu0 %v579, 72
  %v4201 = vpop.permute.xlu0 %4200
  %4202 = vrot.lane.b32.xlu0 %v582, 72
  %v4203 = vpop.permute.xlu0 %4202
  %v4204 = vsel %vm606, %v4197, 0
  %v4206 = vsel %vm606, %v4199, 0
  %v4208 = vsel %vm606, %v4201, 0
  %v4210 = vsel %vm606, %v4203, 0
  %4212 = vmatpush.xpose.msra.mxu0 0.0
  %4213 = vmatpush.xpose.msra.mxu0 0.0
  %4214 = vmatpush.xpose.msra.mxu0 0.0
  %4215 = vmatpush.xpose.msra.mxu0 0.0
  %4216 = vmatpush.xpose.msra.mxu0 0.0
  %4217 = vmatpush.xpose.msra.mxu0 0.0
  %4218 = vmatpush.xpose.msra.mxu0 0.0
  %4219 = vmatpush.xpose.msra.mxu0 0.0
  %4220 = vmatpush.xpose.msra.mxu0 0.0
  %4221 = vmatpush.xpose.msra.mxu0 0.0
  %4222 = vmatpush.xpose.msra.mxu0 0.0
  %4223 = vmatpush.xpose.msra.mxu0 0.0
  %4224 = vmatpush.xpose.msra.mxu0 0.0
  %4225 = vmatpush.xpose.msra.mxu0 0.0
  %4226 = vmatpush.xpose.msra.mxu0 %v4210
  %4227 = vmatpush.xpose.msra.mxu0 %v4208
  %4228 = vmatmul.f32.gmra.mxu0 %v4204
  %v4229 = vpop.f32.mrf.mxu0
  %v4230 = vadd.f32 %v3921, %v4229
  %4231 = vmatmul.f32.gmra.mxu0 %v4206
  %v4232 = vpop.f32.mrf.mxu0
  %v4233 = vadd.f32 %v3922, %v4232
  %4234 = vdwg.mxu0
  %v4235 = vsel %vm897, %v3957, -inf
  %4236 = vmax.xlane.f32.xlu0 %v4235
  %v4237 = vpop.xlane.xlu0 %4236
  %v4238 = vsel %vm897, %v3960, -inf
  %4239 = vmax.xlane.f32.xlu0 %v4238
  %v4240 = vpop.xlane.xlu0 %4239
  %v4241 = vsel %vm897, %v3996, -inf
  %4242 = vmax.xlane.f32.xlu0 %v4241
  %v4243 = vpop.xlane.xlu0 %4242
  %v4244 = vsel %vm897, %v3999, -inf
  %4245 = vmax.xlane.f32.xlu0 %v4244
  %v4246 = vpop.xlane.xlu0 %4245
  %v4247 = vsel %vm897, %v4035, -inf
  %4248 = vmax.xlane.f32.xlu0 %v4247
  %v4249 = vpop.xlane.xlu0 %4248
  %v4250 = vsel %vm897, %v4038, -inf
  %4251 = vmax.xlane.f32.xlu0 %v4250
  %v4252 = vpop.xlane.xlu0 %4251
  %v4253 = vsel %vm897, %v4074, -inf
  %4254 = vmax.xlane.f32.xlu0 %v4253
  %v4255 = vpop.xlane.xlu0 %4254
  %v4256 = vsel %vm897, %v4077, -inf
  %4257 = vmax.xlane.f32.xlu0 %v4256
  %v4258 = vpop.xlane.xlu0 %4257
  %v4259 = vsel %vm897, %v4113, -inf
  %4260 = vmax.xlane.f32.xlu0 %v4259
  %v4261 = vpop.xlane.xlu0 %4260
  %v4262 = vsel %vm897, %v4116, -inf
  %4263 = vmax.xlane.f32.xlu0 %v4262
  %v4264 = vpop.xlane.xlu0 %4263
  %v4265 = vsel %vm897, %v4152, -inf
  %4266 = vmax.xlane.f32.xlu0 %v4265
  %v4267 = vpop.xlane.xlu0 %4266
  %v4268 = vsel %vm897, %v4155, -inf
  %4269 = vmax.xlane.f32.xlu0 %v4268
  %v4270 = vpop.xlane.xlu0 %4269
  %v4271 = vsel %vm897, %v4191, -inf
  %4272 = vmax.xlane.f32.xlu0 %v4271
  %v4273 = vpop.xlane.xlu0 %4272
  %v4274 = vsel %vm897, %v4194, -inf
  %4275 = vmax.xlane.f32.xlu0 %v4274
  %v4276 = vpop.xlane.xlu0 %4275
  %v4277 = vsel %vm897, %v4230, -inf
  %4278 = vmax.xlane.f32.xlu0 %v4277
  %v4279 = vpop.xlane.xlu0 %4278
  %v4280 = vsel %vm897, %v4233, -inf
  %4281 = vmax.xlane.f32.xlu0 %v4280
  %v4282 = vpop.xlane.xlu0 %4281
  %v4283 = vsub.f32 %v3957, %v4237
  %v4284 = vsub.f32 %v3960, %v4240
  %v4285 = vsub.f32 %v3996, %v4243
  %v4286 = vsub.f32 %v3999, %v4246
  %v4287 = vsub.f32 %v4035, %v4249
  %v4288 = vsub.f32 %v4038, %v4252
  %v4289 = vsub.f32 %v4074, %v4255
  %v4290 = vsub.f32 %v4077, %v4258
  %v4291 = vsub.f32 %v4113, %v4261
  %v4292 = vsub.f32 %v4116, %v4264
  %v4293 = vsub.f32 %v4152, %v4267
  %v4294 = vsub.f32 %v4155, %v4270
  %v4295 = vsub.f32 %v4191, %v4273
  %v4296 = vsub.f32 %v4194, %v4276
  %v4297 = vsub.f32 %v4230, %v4279
  %v4298 = vsub.f32 %v4233, %v4282
  %v4299 = vmul.f32 %v4283, 1.442695
  %v4300 = vpow.pop %v4299
  %v4301 = vmul.f32 %v4284, 1.442695
  %v4302 = vpow.pop %v4301
  %v4303 = vmul.f32 %v4285, 1.442695
  %v4304 = vpow.pop %v4303
  %v4305 = vmul.f32 %v4286, 1.442695
  %v4306 = vpow.pop %v4305
  %v4307 = vmul.f32 %v4287, 1.442695
  %v4308 = vpow.pop %v4307
  %v4309 = vmul.f32 %v4288, 1.442695
  %v4310 = vpow.pop %v4309
  %v4311 = vmul.f32 %v4289, 1.442695
  %v4312 = vpow.pop %v4311
  %v4313 = vmul.f32 %v4290, 1.442695
  %v4314 = vpow.pop %v4313
  %v4315 = vmul.f32 %v4291, 1.442695
  %v4316 = vpow.pop %v4315
  %v4317 = vmul.f32 %v4292, 1.442695
  %v4318 = vpow.pop %v4317
  %v4319 = vmul.f32 %v4293, 1.442695
  %v4320 = vpow.pop %v4319
  %v4321 = vmul.f32 %v4294, 1.442695
  %v4322 = vpow.pop %v4321
  %v4323 = vmul.f32 %v4295, 1.442695
  %v4324 = vpow.pop %v4323
  %v4325 = vmul.f32 %v4296, 1.442695
  %v4326 = vpow.pop %v4325
  %v4327 = vmul.f32 %v4297, 1.442695
  %v4328 = vpow.pop %v4327
  %v4329 = vmul.f32 %v4298, 1.442695
  %v4330 = vpow.pop %v4329
  %v4331 = vsel %vm897, %v4300, 0.0
  %4332 = vadd.xlane.f32.xlu0 %v4331
  %v4333 = vpop.xlane.xlu0 %4332
  %v4334 = vsel %vm897, %v4302, 0.0
  %4335 = vadd.xlane.f32.xlu0 %v4334
  %v4336 = vpop.xlane.xlu0 %4335
  %v4337 = vsel %vm897, %v4304, 0.0
  %4338 = vadd.xlane.f32.xlu0 %v4337
  %v4339 = vpop.xlane.xlu0 %4338
  %v4340 = vsel %vm897, %v4306, 0.0
  %4341 = vadd.xlane.f32.xlu0 %v4340
  %v4342 = vpop.xlane.xlu0 %4341
  %v4343 = vsel %vm897, %v4308, 0.0
  %4344 = vadd.xlane.f32.xlu0 %v4343
  %v4345 = vpop.xlane.xlu0 %4344
  %v4346 = vsel %vm897, %v4310, 0.0
  %4347 = vadd.xlane.f32.xlu0 %v4346
  %v4348 = vpop.xlane.xlu0 %4347
  %v4349 = vsel %vm897, %v4312, 0.0
  %4350 = vadd.xlane.f32.xlu0 %v4349
  %v4351 = vpop.xlane.xlu0 %4350
  %v4352 = vsel %vm897, %v4314, 0.0
  %4353 = vadd.xlane.f32.xlu0 %v4352
  %v4354 = vpop.xlane.xlu0 %4353
  %v4355 = vsel %vm897, %v4316, 0.0
  %4356 = vadd.xlane.f32.xlu0 %v4355
  %v4357 = vpop.xlane.xlu0 %4356
  %v4358 = vsel %vm897, %v4318, 0.0
  %4359 = vadd.xlane.f32.xlu0 %v4358
  %v4360 = vpop.xlane.xlu0 %4359
  %v4361 = vsel %vm897, %v4320, 0.0
  %4362 = vadd.xlane.f32.xlu0 %v4361
  %v4363 = vpop.xlane.xlu0 %4362
  %v4364 = vsel %vm897, %v4322, 0.0
  %4365 = vadd.xlane.f32.xlu0 %v4364
  %v4366 = vpop.xlane.xlu0 %4365
  %v4367 = vsel %vm897, %v4324, 0.0
  %4368 = vadd.xlane.f32.xlu0 %v4367
  %v4369 = vpop.xlane.xlu0 %4368
  %v4370 = vsel %vm897, %v4326, 0.0
  %4371 = vadd.xlane.f32.xlu0 %v4370
  %v4372 = vpop.xlane.xlu0 %4371
  %v4373 = vsel %vm897, %v4328, 0.0
  %4374 = vadd.xlane.f32.xlu0 %v4373
  %v4375 = vpop.xlane.xlu0 %4374
  %v4376 = vsel %vm897, %v4330, 0.0
  %4377 = vadd.xlane.f32.xlu0 %v4376
  %v4378 = vpop.xlane.xlu0 %4377
  %v4379 = vrcp.pop %v4333
  %v4380 = vmul.f32 %v4333, %v4379
  %v4381 = vsub.f32 1.0, %v4380
  %v4382 = vmul.f32 %v4379, %v4381
  %v4383 = vadd.f32 %v4379, %v4382
  %vm4384 = vweird.f32 %v4333
  %vm4385 = vweird.f32 %v4379
  %vm4386 = vmor %vm4384, %vm4385
  %v4387 = vsel %vm4386, %v4379, %v4383
  %v4388 = vand.u32 2147483647, %v4333
  %vm4389 = vcmp.eq.f32.partialorder %v4388, 8.507059e+37
  %v4390 = vand.u32 %v4333, 2147483648
  %v4391 = vor.u32 1.1754944e-38, %v4390
  %v4392 = vsel %vm4389, %v4391, %v4387
  %v4393 = vmul.f32 %v4300, %v4392
  %v4394 = vrcp.pop %v4336
  %v4395 = vmul.f32 %v4336, %v4394
  %v4396 = vsub.f32 1.0, %v4395
  %v4397 = vmul.f32 %v4394, %v4396
  %v4398 = vadd.f32 %v4394, %v4397
  %vm4399 = vweird.f32 %v4336
  %vm4400 = vweird.f32 %v4394
  %vm4401 = vmor %vm4399, %vm4400
  %v4402 = vsel %vm4401, %v4394, %v4398
  %v4403 = vand.u32 2147483647, %v4336
  %vm4404 = vcmp.eq.f32.partialorder %v4403, 8.507059e+37
  %v4405 = vand.u32 %v4336, 2147483648
  %v4406 = vor.u32 1.1754944e-38, %v4405
  %v4407 = vsel %vm4404, %v4406, %v4402
  %v4408 = vmul.f32 %v4302, %v4407
  %v4409 = vrcp.pop %v4339
  %v4410 = vmul.f32 %v4339, %v4409
  %v4411 = vsub.f32 1.0, %v4410
  %v4412 = vmul.f32 %v4409, %v4411
  %v4413 = vadd.f32 %v4409, %v4412
  %vm4414 = vweird.f32 %v4339
  %vm4415 = vweird.f32 %v4409
  %vm4416 = vmor %vm4414, %vm4415
  %v4417 = vsel %vm4416, %v4409, %v4413
  %v4418 = vand.u32 2147483647, %v4339
  %vm4419 = vcmp.eq.f32.partialorder %v4418, 8.507059e+37
  %v4420 = vand.u32 %v4339, 2147483648
  %v4421 = vor.u32 1.1754944e-38, %v4420
  %v4422 = vsel %vm4419, %v4421, %v4417
  %v4423 = vmul.f32 %v4304, %v4422
  %v4424 = vrcp.pop %v4342
  %v4425 = vmul.f32 %v4342, %v4424
  %v4426 = vsub.f32 1.0, %v4425
  %v4427 = vmul.f32 %v4424, %v4426
  %v4428 = vadd.f32 %v4424, %v4427
  %vm4429 = vweird.f32 %v4342
  %vm4430 = vweird.f32 %v4424
  %vm4431 = vmor %vm4429, %vm4430
  %v4432 = vsel %vm4431, %v4424, %v4428
  %v4433 = vand.u32 2147483647, %v4342
  %vm4434 = vcmp.eq.f32.partialorder %v4433, 8.507059e+37
  %v4435 = vand.u32 %v4342, 2147483648
  %v4436 = vor.u32 1.1754944e-38, %v4435
  %v4437 = vsel %vm4434, %v4436, %v4432
  %v4438 = vmul.f32 %v4306, %v4437
  %v4439 = vrcp.pop %v4345
  %v4440 = vmul.f32 %v4345, %v4439
  %v4441 = vsub.f32 1.0, %v4440
  %v4442 = vmul.f32 %v4439, %v4441
  %v4443 = vadd.f32 %v4439, %v4442
  %vm4444 = vweird.f32 %v4345
  %vm4445 = vweird.f32 %v4439
  %vm4446 = vmor %vm4444, %vm4445
  %v4447 = vsel %vm4446, %v4439, %v4443
  %v4448 = vand.u32 2147483647, %v4345
  %vm4449 = vcmp.eq.f32.partialorder %v4448, 8.507059e+37
  %v4450 = vand.u32 %v4345, 2147483648
  %v4451 = vor.u32 1.1754944e-38, %v4450
  %v4452 = vsel %vm4449, %v4451, %v4447
  %v4453 = vmul.f32 %v4308, %v4452
  %v4454 = vrcp.pop %v4348
  %v4455 = vmul.f32 %v4348, %v4454
  %v4456 = vsub.f32 1.0, %v4455
  %v4457 = vmul.f32 %v4454, %v4456
  %v4458 = vadd.f32 %v4454, %v4457
  %vm4459 = vweird.f32 %v4348
  %vm4460 = vweird.f32 %v4454
  %vm4461 = vmor %vm4459, %vm4460
  %v4462 = vsel %vm4461, %v4454, %v4458
  %v4463 = vand.u32 2147483647, %v4348
  %vm4464 = vcmp.eq.f32.partialorder %v4463, 8.507059e+37
  %v4465 = vand.u32 %v4348, 2147483648
  %v4466 = vor.u32 1.1754944e-38, %v4465
  %v4467 = vsel %vm4464, %v4466, %v4462
  %v4468 = vmul.f32 %v4310, %v4467
  %v4469 = vrcp.pop %v4351
  %v4470 = vmul.f32 %v4351, %v4469
  %v4471 = vsub.f32 1.0, %v4470
  %v4472 = vmul.f32 %v4469, %v4471
  %v4473 = vadd.f32 %v4469, %v4472
  %vm4474 = vweird.f32 %v4351
  %vm4475 = vweird.f32 %v4469
  %vm4476 = vmor %vm4474, %vm4475
  %v4477 = vsel %vm4476, %v4469, %v4473
  %v4478 = vand.u32 2147483647, %v4351
  %vm4479 = vcmp.eq.f32.partialorder %v4478, 8.507059e+37
  %v4480 = vand.u32 %v4351, 2147483648
  %v4481 = vor.u32 1.1754944e-38, %v4480
  %v4482 = vsel %vm4479, %v4481, %v4477
  %v4483 = vmul.f32 %v4312, %v4482
  %v4484 = vrcp.pop %v4354
  %v4485 = vmul.f32 %v4354, %v4484
  %v4486 = vsub.f32 1.0, %v4485
  %v4487 = vmul.f32 %v4484, %v4486
  %v4488 = vadd.f32 %v4484, %v4487
  %vm4489 = vweird.f32 %v4354
  %vm4490 = vweird.f32 %v4484
  %vm4491 = vmor %vm4489, %vm4490
  %v4492 = vsel %vm4491, %v4484, %v4488
  %v4493 = vand.u32 2147483647, %v4354
  %vm4494 = vcmp.eq.f32.partialorder %v4493, 8.507059e+37
  %v4495 = vand.u32 %v4354, 2147483648
  %v4496 = vor.u32 1.1754944e-38, %v4495
  %v4497 = vsel %vm4494, %v4496, %v4492
  %v4498 = vmul.f32 %v4314, %v4497
  %v4499 = vrcp.pop %v4357
  %v4500 = vmul.f32 %v4357, %v4499
  %v4501 = vsub.f32 1.0, %v4500
  %v4502 = vmul.f32 %v4499, %v4501
  %v4503 = vadd.f32 %v4499, %v4502
  %vm4504 = vweird.f32 %v4357
  %vm4505 = vweird.f32 %v4499
  %vm4506 = vmor %vm4504, %vm4505
  %v4507 = vsel %vm4506, %v4499, %v4503
  %v4508 = vand.u32 2147483647, %v4357
  %vm4509 = vcmp.eq.f32.partialorder %v4508, 8.507059e+37
  %v4510 = vand.u32 %v4357, 2147483648
  %v4511 = vor.u32 1.1754944e-38, %v4510
  %v4512 = vsel %vm4509, %v4511, %v4507
  %v4513 = vmul.f32 %v4316, %v4512
  %v4514 = vrcp.pop %v4360
  %v4515 = vmul.f32 %v4360, %v4514
  %v4516 = vsub.f32 1.0, %v4515
  %v4517 = vmul.f32 %v4514, %v4516
  %v4518 = vadd.f32 %v4514, %v4517
  %vm4519 = vweird.f32 %v4360
  %vm4520 = vweird.f32 %v4514
  %vm4521 = vmor %vm4519, %vm4520
  %v4522 = vsel %vm4521, %v4514, %v4518
  %v4523 = vand.u32 2147483647, %v4360
  %vm4524 = vcmp.eq.f32.partialorder %v4523, 8.507059e+37
  %v4525 = vand.u32 %v4360, 2147483648
  %v4526 = vor.u32 1.1754944e-38, %v4525
  %v4527 = vsel %vm4524, %v4526, %v4522
  %v4528 = vmul.f32 %v4318, %v4527
  %v4529 = vrcp.pop %v4363
  %v4530 = vmul.f32 %v4363, %v4529
  %v4531 = vsub.f32 1.0, %v4530
  %v4532 = vmul.f32 %v4529, %v4531
  %v4533 = vadd.f32 %v4529, %v4532
  %vm4534 = vweird.f32 %v4363
  %vm4535 = vweird.f32 %v4529
  %vm4536 = vmor %vm4534, %vm4535
  %v4537 = vsel %vm4536, %v4529, %v4533
  %v4538 = vand.u32 2147483647, %v4363
  %vm4539 = vcmp.eq.f32.partialorder %v4538, 8.507059e+37
  %v4540 = vand.u32 %v4363, 2147483648
  %v4541 = vor.u32 1.1754944e-38, %v4540
  %v4542 = vsel %vm4539, %v4541, %v4537
  %v4543 = vmul.f32 %v4320, %v4542
  %v4544 = vrcp.pop %v4366
  %v4545 = vmul.f32 %v4366, %v4544
  %v4546 = vsub.f32 1.0, %v4545
  %v4547 = vmul.f32 %v4544, %v4546
  %v4548 = vadd.f32 %v4544, %v4547
  %vm4549 = vweird.f32 %v4366
  %vm4550 = vweird.f32 %v4544
  %vm4551 = vmor %vm4549, %vm4550
  %v4552 = vsel %vm4551, %v4544, %v4548
  %v4553 = vand.u32 2147483647, %v4366
  %vm4554 = vcmp.eq.f32.partialorder %v4553, 8.507059e+37
  %v4555 = vand.u32 %v4366, 2147483648
  %v4556 = vor.u32 1.1754944e-38, %v4555
  %v4557 = vsel %vm4554, %v4556, %v4552
  %v4558 = vmul.f32 %v4322, %v4557
  %v4559 = vrcp.pop %v4369
  %v4560 = vmul.f32 %v4369, %v4559
  %v4561 = vsub.f32 1.0, %v4560
  %v4562 = vmul.f32 %v4559, %v4561
  %v4563 = vadd.f32 %v4559, %v4562
  %vm4564 = vweird.f32 %v4369
  %vm4565 = vweird.f32 %v4559
  %vm4566 = vmor %vm4564, %vm4565
  %v4567 = vsel %vm4566, %v4559, %v4563
  %v4568 = vand.u32 2147483647, %v4369
  %vm4569 = vcmp.eq.f32.partialorder %v4568, 8.507059e+37
  %v4570 = vand.u32 %v4369, 2147483648
  %v4571 = vor.u32 1.1754944e-38, %v4570
  %v4572 = vsel %vm4569, %v4571, %v4567
  %v4573 = vmul.f32 %v4324, %v4572
  %v4574 = vrcp.pop %v4372
  %v4575 = vmul.f32 %v4372, %v4574
  %v4576 = vsub.f32 1.0, %v4575
  %v4577 = vmul.f32 %v4574, %v4576
  %v4578 = vadd.f32 %v4574, %v4577
  %vm4579 = vweird.f32 %v4372
  %vm4580 = vweird.f32 %v4574
  %vm4581 = vmor %vm4579, %vm4580
  %v4582 = vsel %vm4581, %v4574, %v4578
  %v4583 = vand.u32 2147483647, %v4372
  %vm4584 = vcmp.eq.f32.partialorder %v4583, 8.507059e+37
  %v4585 = vand.u32 %v4372, 2147483648
  %v4586 = vor.u32 1.1754944e-38, %v4585
  %v4587 = vsel %vm4584, %v4586, %v4582
  %v4588 = vmul.f32 %v4326, %v4587
  %v4589 = vrcp.pop %v4375
  %v4590 = vmul.f32 %v4375, %v4589
  %v4591 = vsub.f32 1.0, %v4590
  %v4592 = vmul.f32 %v4589, %v4591
  %v4593 = vadd.f32 %v4589, %v4592
  %vm4594 = vweird.f32 %v4375
  %vm4595 = vweird.f32 %v4589
  %vm4596 = vmor %vm4594, %vm4595
  %v4597 = vsel %vm4596, %v4589, %v4593
  %v4598 = vand.u32 2147483647, %v4375
  %vm4599 = vcmp.eq.f32.partialorder %v4598, 8.507059e+37
  %v4600 = vand.u32 %v4375, 2147483648
  %v4601 = vor.u32 1.1754944e-38, %v4600
  %v4602 = vsel %vm4599, %v4601, %v4597
  %v4603 = vmul.f32 %v4328, %v4602
  %v4604 = vrcp.pop %v4378
  %v4605 = vmul.f32 %v4378, %v4604
  %v4606 = vsub.f32 1.0, %v4605
  %v4607 = vmul.f32 %v4604, %v4606
  %v4608 = vadd.f32 %v4604, %v4607
  %vm4609 = vweird.f32 %v4378
  %vm4610 = vweird.f32 %v4604
  %vm4611 = vmor %vm4609, %vm4610
  %v4612 = vsel %vm4611, %v4604, %v4608
  %v4613 = vand.u32 2147483647, %v4378
  %vm4614 = vcmp.eq.f32.partialorder %v4613, 8.507059e+37
  %v4615 = vand.u32 %v4378, 2147483648
  %v4616 = vor.u32 1.1754944e-38, %v4615
  %v4617 = vsel %vm4614, %v4616, %v4612
  %v4618 = vmul.f32 %v4330, %v4617
  %4619 = vrot.lane.b32.xlu0 %v537, 40
  %v4620 = vpop.permute.xlu0 %4619
  %4621 = vrot.lane.b32.xlu0 %v540, 40
  %v4622 = vpop.permute.xlu0 %4621
  %v4626 = vsel %vm897, %v4393, 0
  %v4629 = vsel %vm897, %v4408, 0
  %4631 = vmatpush.msra.mxu0 0.0
  %4632 = vmatpush.msra.mxu0 0.0
  %4633 = vmatpush.msra.mxu0 0.0
  %4634 = vmatpush.msra.mxu0 0.0
  %4635 = vmatpush.msra.mxu0 0.0
  %4636 = vmatpush.msra.mxu0 0.0
  %4637 = vmatpush.msra.mxu0 0.0
  %4638 = vmatpush.msra.mxu0 0.0
  %4639 = vmatpush.msra.mxu0 0.0
  %4640 = vmatpush.msra.mxu0 0.0
  %4641 = vmatpush.msra.mxu0 0.0
  %4642 = vmatpush.msra.mxu0 0.0
  %4643 = vmatpush.msra.mxu0 0.0
  %4644 = vmatpush.msra.mxu0 0.0
  %4645 = vmatpush.msra.mxu0 %v4622
  %4646 = vmatpush.msra.mxu0 %v4620
  %4647 = vmatmul.f32.gmra.mxu0 %v4626
  %v4648 = vpop.f32.mrf.mxu0
  %v4649 = vadd.f32 0.0, %v4648
  %4650 = vmatmul.f32.gmra.mxu0 %v4629
  %v4651 = vpop.f32.mrf.mxu0
  %v4652 = vadd.f32 0.0, %v4651
  %4653 = vdwg.mxu0
  %4654 = vrot.lane.b32.xlu0 %v543, 40
  %v4655 = vpop.permute.xlu0 %4654
  %4656 = vrot.lane.b32.xlu0 %v546, 40
  %v4657 = vpop.permute.xlu0 %4656
  %v4661 = vsel %vm897, %v4423, 0
  %v4664 = vsel %vm897, %v4438, 0
  %4666 = vmatpush.msra.mxu0 0.0
  %4667 = vmatpush.msra.mxu0 0.0
  %4668 = vmatpush.msra.mxu0 0.0
  %4669 = vmatpush.msra.mxu0 0.0
  %4670 = vmatpush.msra.mxu0 0.0
  %4671 = vmatpush.msra.mxu0 0.0
  %4672 = vmatpush.msra.mxu0 0.0
  %4673 = vmatpush.msra.mxu0 0.0
  %4674 = vmatpush.msra.mxu0 0.0
  %4675 = vmatpush.msra.mxu0 0.0
  %4676 = vmatpush.msra.mxu0 0.0
  %4677 = vmatpush.msra.mxu0 0.0
  %4678 = vmatpush.msra.mxu0 0.0
  %4679 = vmatpush.msra.mxu0 0.0
  %4680 = vmatpush.msra.mxu0 %v4657
  %4681 = vmatpush.msra.mxu0 %v4655
  %4682 = vmatmul.f32.gmra.mxu0 %v4661
  %v4683 = vpop.f32.mrf.mxu0
  %v4684 = vadd.f32 0.0, %v4683
  %4685 = vmatmul.f32.gmra.mxu0 %v4664
  %v4686 = vpop.f32.mrf.mxu0
  %v4687 = vadd.f32 0.0, %v4686
  %4688 = vdwg.mxu0
  %4689 = vrot.lane.b32.xlu0 %v549, 40
  %v4690 = vpop.permute.xlu0 %4689
  %4691 = vrot.lane.b32.xlu0 %v552, 40
  %v4692 = vpop.permute.xlu0 %4691
  %v4696 = vsel %vm897, %v4453, 0
  %v4699 = vsel %vm897, %v4468, 0
  %4701 = vmatpush.msra.mxu0 0.0
  %4702 = vmatpush.msra.mxu0 0.0
  %4703 = vmatpush.msra.mxu0 0.0
  %4704 = vmatpush.msra.mxu0 0.0
  %4705 = vmatpush.msra.mxu0 0.0
  %4706 = vmatpush.msra.mxu0 0.0
  %4707 = vmatpush.msra.mxu0 0.0
  %4708 = vmatpush.msra.mxu0 0.0
  %4709 = vmatpush.msra.mxu0 0.0
  %4710 = vmatpush.msra.mxu0 0.0
  %4711 = vmatpush.msra.mxu0 0.0
  %4712 = vmatpush.msra.mxu0 0.0
  %4713 = vmatpush.msra.mxu0 0.0
  %4714 = vmatpush.msra.mxu0 0.0
  %4715 = vmatpush.msra.mxu0 %v4692
  %4716 = vmatpush.msra.mxu0 %v4690
  %4717 = vmatmul.f32.gmra.mxu0 %v4696
  %v4718 = vpop.f32.mrf.mxu0
  %v4719 = vadd.f32 0.0, %v4718
  %4720 = vmatmul.f32.gmra.mxu0 %v4699
  %v4721 = vpop.f32.mrf.mxu0
  %v4722 = vadd.f32 0.0, %v4721
  %4723 = vdwg.mxu0
  %4724 = vrot.lane.b32.xlu0 %v555, 40
  %v4725 = vpop.permute.xlu0 %4724
  %4726 = vrot.lane.b32.xlu0 %v558, 40
  %v4727 = vpop.permute.xlu0 %4726
  %v4731 = vsel %vm897, %v4483, 0
  %v4734 = vsel %vm897, %v4498, 0
  %4736 = vmatpush.msra.mxu0 0.0
  %4737 = vmatpush.msra.mxu0 0.0
  %4738 = vmatpush.msra.mxu0 0.0
  %4739 = vmatpush.msra.mxu0 0.0
  %4740 = vmatpush.msra.mxu0 0.0
  %4741 = vmatpush.msra.mxu0 0.0
  %4742 = vmatpush.msra.mxu0 0.0
  %4743 = vmatpush.msra.mxu0 0.0
  %4744 = vmatpush.msra.mxu0 0.0
  %4745 = vmatpush.msra.mxu0 0.0
  %4746 = vmatpush.msra.mxu0 0.0
  %4747 = vmatpush.msra.mxu0 0.0
  %4748 = vmatpush.msra.mxu0 0.0
  %4749 = vmatpush.msra.mxu0 0.0
  %4750 = vmatpush.msra.mxu0 %v4727
  %4751 = vmatpush.msra.mxu0 %v4725
  %4752 = vmatmul.f32.gmra.mxu0 %v4731
  %v4753 = vpop.f32.mrf.mxu0
  %v4754 = vadd.f32 0.0, %v4753
  %4755 = vmatmul.f32.gmra.mxu0 %v4734
  %v4756 = vpop.f32.mrf.mxu0
  %v4757 = vadd.f32 0.0, %v4756
  %4758 = vdwg.mxu0
  %4759 = vrot.lane.b32.xlu0 %v561, 40
  %v4760 = vpop.permute.xlu0 %4759
  %4761 = vrot.lane.b32.xlu0 %v564, 40
  %v4762 = vpop.permute.xlu0 %4761
  %v4766 = vsel %vm897, %v4513, 0
  %v4769 = vsel %vm897, %v4528, 0
  %4771 = vmatpush.msra.mxu0 0.0
  %4772 = vmatpush.msra.mxu0 0.0
  %4773 = vmatpush.msra.mxu0 0.0
  %4774 = vmatpush.msra.mxu0 0.0
  %4775 = vmatpush.msra.mxu0 0.0
  %4776 = vmatpush.msra.mxu0 0.0
  %4777 = vmatpush.msra.mxu0 0.0
  %4778 = vmatpush.msra.mxu0 0.0
  %4779 = vmatpush.msra.mxu0 0.0
  %4780 = vmatpush.msra.mxu0 0.0
  %4781 = vmatpush.msra.mxu0 0.0
  %4782 = vmatpush.msra.mxu0 0.0
  %4783 = vmatpush.msra.mxu0 0.0
  %4784 = vmatpush.msra.mxu0 0.0
  %4785 = vmatpush.msra.mxu0 %v4762
  %4786 = vmatpush.msra.mxu0 %v4760
  %4787 = vmatmul.f32.gmra.mxu0 %v4766
  %v4788 = vpop.f32.mrf.mxu0
  %v4789 = vadd.f32 0.0, %v4788
  %4790 = vmatmul.f32.gmra.mxu0 %v4769
  %v4791 = vpop.f32.mrf.mxu0
  %v4792 = vadd.f32 0.0, %v4791
  %4793 = vdwg.mxu0
  %4794 = vrot.lane.b32.xlu0 %v567, 40
  %v4795 = vpop.permute.xlu0 %4794
  %4796 = vrot.lane.b32.xlu0 %v570, 40
  %v4797 = vpop.permute.xlu0 %4796
  %v4801 = vsel %vm897, %v4543, 0
  %v4804 = vsel %vm897, %v4558, 0
  %4806 = vmatpush.msra.mxu0 0.0
  %4807 = vmatpush.msra.mxu0 0.0
  %4808 = vmatpush.msra.mxu0 0.0
  %4809 = vmatpush.msra.mxu0 0.0
  %4810 = vmatpush.msra.mxu0 0.0
  %4811 = vmatpush.msra.mxu0 0.0
  %4812 = vmatpush.msra.mxu0 0.0
  %4813 = vmatpush.msra.mxu0 0.0
  %4814 = vmatpush.msra.mxu0 0.0
  %4815 = vmatpush.msra.mxu0 0.0
  %4816 = vmatpush.msra.mxu0 0.0
  %4817 = vmatpush.msra.mxu0 0.0
  %4818 = vmatpush.msra.mxu0 0.0
  %4819 = vmatpush.msra.mxu0 0.0
  %4820 = vmatpush.msra.mxu0 %v4797
  %4821 = vmatpush.msra.mxu0 %v4795
  %4822 = vmatmul.f32.gmra.mxu0 %v4801
  %v4823 = vpop.f32.mrf.mxu0
  %v4824 = vadd.f32 0.0, %v4823
  %4825 = vmatmul.f32.gmra.mxu0 %v4804
  %v4826 = vpop.f32.mrf.mxu0
  %v4827 = vadd.f32 0.0, %v4826
  %4828 = vdwg.mxu0
  %4829 = vrot.lane.b32.xlu0 %v573, 40
  %v4830 = vpop.permute.xlu0 %4829
  %4831 = vrot.lane.b32.xlu0 %v576, 40
  %v4832 = vpop.permute.xlu0 %4831
  %v4836 = vsel %vm897, %v4573, 0
  %v4839 = vsel %vm897, %v4588, 0
  %4841 = vmatpush.msra.mxu0 0.0
  %4842 = vmatpush.msra.mxu0 0.0
  %4843 = vmatpush.msra.mxu0 0.0
  %4844 = vmatpush.msra.mxu0 0.0
  %4845 = vmatpush.msra.mxu0 0.0
  %4846 = vmatpush.msra.mxu0 0.0
  %4847 = vmatpush.msra.mxu0 0.0
  %4848 = vmatpush.msra.mxu0 0.0
  %4849 = vmatpush.msra.mxu0 0.0
  %4850 = vmatpush.msra.mxu0 0.0
  %4851 = vmatpush.msra.mxu0 0.0
  %4852 = vmatpush.msra.mxu0 0.0
  %4853 = vmatpush.msra.mxu0 0.0
  %4854 = vmatpush.msra.mxu0 0.0
  %4855 = vmatpush.msra.mxu0 %v4832
  %4856 = vmatpush.msra.mxu0 %v4830
  %4857 = vmatmul.f32.gmra.mxu0 %v4836
  %v4858 = vpop.f32.mrf.mxu0
  %v4859 = vadd.f32 0.0, %v4858
  %4860 = vmatmul.f32.gmra.mxu0 %v4839
  %v4861 = vpop.f32.mrf.mxu0
  %v4862 = vadd.f32 0.0, %v4861
  %4863 = vdwg.mxu0
  %4864 = vrot.lane.b32.xlu0 %v579, 40
  %v4865 = vpop.permute.xlu0 %4864
  %4866 = vrot.lane.b32.xlu0 %v582, 40
  %v4867 = vpop.permute.xlu0 %4866
  %v4871 = vsel %vm897, %v4603, 0
  %v4874 = vsel %vm897, %v4618, 0
  %4876 = vmatpush.msra.mxu0 0.0
  %4877 = vmatpush.msra.mxu0 0.0
  %4878 = vmatpush.msra.mxu0 0.0
  %4879 = vmatpush.msra.mxu0 0.0
  %4880 = vmatpush.msra.mxu0 0.0
  %4881 = vmatpush.msra.mxu0 0.0
  %4882 = vmatpush.msra.mxu0 0.0
  %4883 = vmatpush.msra.mxu0 0.0
  %4884 = vmatpush.msra.mxu0 0.0
  %4885 = vmatpush.msra.mxu0 0.0
  %4886 = vmatpush.msra.mxu0 0.0
  %4887 = vmatpush.msra.mxu0 0.0
  %4888 = vmatpush.msra.mxu0 0.0
  %4889 = vmatpush.msra.mxu0 0.0
  %4890 = vmatpush.msra.mxu0 %v4867
  %4891 = vmatpush.msra.mxu0 %v4865
  %4892 = vmatmul.f32.gmra.mxu0 %v4871
  %v4893 = vpop.f32.mrf.mxu0
  %v4894 = vadd.f32 0.0, %v4893
  %4895 = vmatmul.f32.gmra.mxu0 %v4874
  %v4896 = vpop.f32.mrf.mxu0
  %v4897 = vadd.f32 0.0, %v4896
  %4898 = vdwg.mxu0
  %v4899 = vld [vmem:[%s6 + $0x18] sm:$0xff]
  %v4901 = vsel %vm606, %v4649, 0
  %v4904 = vsel %vm606, %v4652, 0
  %v4907 = vsel %vm606, %v4684, 0
  %v4910 = vsel %vm606, %v4687, 0
  %v4913 = vsel %vm606, %v4719, 0
  %v4916 = vsel %vm606, %v4722, 0
  %v4919 = vsel %vm606, %v4754, 0
  %v4922 = vsel %vm606, %v4757, 0
  %v4925 = vsel %vm606, %v4789, 0
  %v4928 = vsel %vm606, %v4792, 0
  %v4931 = vsel %vm606, %v4824, 0
  %v4934 = vsel %vm606, %v4827, 0
  %v4937 = vsel %vm606, %v4859, 0
  %v4940 = vsel %vm606, %v4862, 0
  %v4943 = vsel %vm606, %v4894, 0
  %v4946 = vsel %vm606, %v4897, 0
  %4948 = vmatpush.msra.mxu0 0.0
  %4949 = vmatpush.msra.mxu0 0.0
  %4950 = vmatpush.msra.mxu0 0.0
  %4951 = vmatpush.msra.mxu0 0.0
  %4952 = vmatpush.msra.mxu0 0.0
  %4953 = vmatpush.msra.mxu0 0.0
  %4954 = vmatpush.msra.mxu0 0.0
  %4955 = vmatpush.msra.mxu0 0.0
  %4956 = vmatpush.msra.mxu0 0.0
  %4957 = vmatpush.msra.mxu0 0.0
  %4958 = vmatpush.msra.mxu0 0.0
  %4959 = vmatpush.msra.mxu0 0.0
  %4960 = vmatpush.msra.mxu0 0.0
  %4961 = vmatpush.msra.mxu0 0.0
  %4962 = vmatpush.msra.mxu0 0.0
  %4963 = vmatpush.msra.mxu0 %v4899
  %4964 = vmatmul.f32.gmra.mxu0 %v4901
  %v4965 = vpop.f32.mrf.mxu0
  %v4966 = vadd.f32 0.0, %v4965
  %4967 = vmatmul.f32.gmra.mxu0 %v4904
  %v4968 = vpop.f32.mrf.mxu0
  %v4969 = vadd.f32 0.0, %v4968
  %4970 = vmatmul.f32.gmra.mxu0 %v4907
  %v4971 = vpop.f32.mrf.mxu0
  %v4972 = vadd.f32 0.0, %v4971
  %4973 = vmatmul.f32.gmra.mxu0 %v4910
  %v4974 = vpop.f32.mrf.mxu0
  %v4975 = vadd.f32 0.0, %v4974
  %4976 = vmatmul.f32.gmra.mxu0 %v4913
  %v4977 = vpop.f32.mrf.mxu0
  %v4978 = vadd.f32 0.0, %v4977
  %4979 = vmatmul.f32.gmra.mxu0 %v4916
  %v4980 = vpop.f32.mrf.mxu0
  %v4981 = vadd.f32 0.0, %v4980
  %4982 = vmatmul.f32.gmra.mxu0 %v4919
  %v4983 = vpop.f32.mrf.mxu0
  %v4984 = vadd.f32 0.0, %v4983
  %4985 = vmatmul.f32.gmra.mxu0 %v4922
  %v4986 = vpop.f32.mrf.mxu0
  %v4987 = vadd.f32 0.0, %v4986
  %4988 = vmatmul.f32.gmra.mxu0 %v4925
  %v4989 = vpop.f32.mrf.mxu0
  %v4990 = vadd.f32 0.0, %v4989
  %4991 = vmatmul.f32.gmra.mxu0 %v4928
  %v4992 = vpop.f32.mrf.mxu0
  %v4993 = vadd.f32 0.0, %v4992
  %4994 = vmatmul.f32.gmra.mxu0 %v4931
  %v4995 = vpop.f32.mrf.mxu0
  %v4996 = vadd.f32 0.0, %v4995
  %4997 = vmatmul.f32.gmra.mxu0 %v4934
  %v4998 = vpop.f32.mrf.mxu0
  %v4999 = vadd.f32 0.0, %v4998
  %5000 = vmatmul.f32.gmra.mxu0 %v4937
  %v5001 = vpop.f32.mrf.mxu0
  %v5002 = vadd.f32 0.0, %v5001
  %5003 = vmatmul.f32.gmra.mxu0 %v4940
  %v5004 = vpop.f32.mrf.mxu0
  %v5005 = vadd.f32 0.0, %v5004
  %5006 = vmatmul.f32.gmra.mxu0 %v4943
  %v5007 = vpop.f32.mrf.mxu0
  %v5008 = vadd.f32 0.0, %v5007
  %5009 = vmatmul.f32.gmra.mxu0 %v4946
  %v5010 = vpop.f32.mrf.mxu0
  %v5011 = vadd.f32 0.0, %v5010
  %5012 = vdwg.mxu0
  %v5013 = vadd.f32 %v3890, %v4966
  %v5014 = vadd.f32 %v3891, %v4969
  %v5015 = vadd.f32 %v3892, %v4972
  %v5016 = vadd.f32 %v3893, %v4975
  %v5017 = vadd.f32 %v3894, %v4978
  %v5018 = vadd.f32 %v3895, %v4981
  %v5019 = vadd.f32 %v3896, %v4984
  %v5020 = vadd.f32 %v3897, %v4987
  %v5021 = vadd.f32 %v3898, %v4990
  %v5022 = vadd.f32 %v3899, %v4993
  %v5023 = vadd.f32 %v3900, %v4996
  %v5024 = vadd.f32 %v3901, %v4999
  %v5025 = vadd.f32 %v3902, %v5002
  %v5026 = vadd.f32 %v3903, %v5005
  %v5027 = vadd.f32 %v3904, %v5008
  %v5028 = vadd.f32 %v3905, %v5011
  %v5029 = vadd.f32 %v47, %v5013
  %v5030 = vadd.f32 %v48, %v5014
  %v5031 = vadd.f32 %v49, %v5015
  %v5032 = vadd.f32 %v50, %v5016
  %v5033 = vadd.f32 %v51, %v5017
  %v5034 = vadd.f32 %v52, %v5018
  %v5035 = vadd.f32 %v53, %v5019
  %v5036 = vadd.f32 %v54, %v5020
  %v5037 = vadd.f32 %v55, %v5021
  %v5038 = vadd.f32 %v56, %v5022
  %v5039 = vadd.f32 %v57, %v5023
  %v5040 = vadd.f32 %v58, %v5024
  %v5041 = vadd.f32 %v59, %v5025
  %v5042 = vadd.f32 %v60, %v5026
  %v5043 = vadd.f32 %v61, %v5027
  %v5044 = vadd.f32 %v62, %v5028
  %v5045 = vld [vmem:[%s7] sm:$0x1]
  %v5047 = vperm.slane %v5045, 0
  %v5049 = vadd.f32 %v5029, %v5047
  %v5050 = vadd.f32 %v5030, %v5047
  %v5051 = vadd.f32 %v5031, %v5047
  %v5052 = vadd.f32 %v5032, %v5047
  %v5053 = vadd.f32 %v5033, %v5047
  %v5054 = vadd.f32 %v5034, %v5047
  %v5055 = vadd.f32 %v5035, %v5047
  %v5056 = vadd.f32 %v5036, %v5047
  %v5057 = vadd.f32 %v5037, %v5047
  %v5058 = vadd.f32 %v5038, %v5047
  %v5059 = vadd.f32 %v5039, %v5047
  %v5060 = vadd.f32 %v5040, %v5047
  %v5061 = vadd.f32 %v5041, %v5047
  %v5062 = vadd.f32 %v5042, %v5047
  %v5063 = vadd.f32 %v5043, %v5047
  %v5064 = vadd.f32 %v5044, %v5047
  %v5065 = vsel %vm63, %v5049, 0.0
  %5066 = vadd.xlane.f32.xlu0 %v5065
  %v5067 = vpop.xlane.xlu0 %5066
  %v5068 = vsel %vm63, %v5050, 0.0
  %5069 = vadd.xlane.f32.xlu0 %v5068
  %v5070 = vpop.xlane.xlu0 %5069
  %v5071 = vsel %vm63, %v5051, 0.0
  %5072 = vadd.xlane.f32.xlu0 %v5071
  %v5073 = vpop.xlane.xlu0 %5072
  %v5074 = vsel %vm63, %v5052, 0.0
  %5075 = vadd.xlane.f32.xlu0 %v5074
  %v5076 = vpop.xlane.xlu0 %5075
  %v5077 = vsel %vm63, %v5053, 0.0
  %5078 = vadd.xlane.f32.xlu0 %v5077
  %v5079 = vpop.xlane.xlu0 %5078
  %v5080 = vsel %vm63, %v5054, 0.0
  %5081 = vadd.xlane.f32.xlu0 %v5080
  %v5082 = vpop.xlane.xlu0 %5081
  %v5083 = vsel %vm63, %v5055, 0.0
  %5084 = vadd.xlane.f32.xlu0 %v5083
  %v5085 = vpop.xlane.xlu0 %5084
  %v5086 = vsel %vm63, %v5056, 0.0
  %5087 = vadd.xlane.f32.xlu0 %v5086
  %v5088 = vpop.xlane.xlu0 %5087
  %v5089 = vsel %vm63, %v5057, 0.0
  %5090 = vadd.xlane.f32.xlu0 %v5089
  %v5091 = vpop.xlane.xlu0 %5090
  %v5092 = vsel %vm63, %v5058, 0.0
  %5093 = vadd.xlane.f32.xlu0 %v5092
  %v5094 = vpop.xlane.xlu0 %5093
  %v5095 = vsel %vm63, %v5059, 0.0
  %5096 = vadd.xlane.f32.xlu0 %v5095
  %v5097 = vpop.xlane.xlu0 %5096
  %v5098 = vsel %vm63, %v5060, 0.0
  %5099 = vadd.xlane.f32.xlu0 %v5098
  %v5100 = vpop.xlane.xlu0 %5099
  %v5101 = vsel %vm63, %v5061, 0.0
  %5102 = vadd.xlane.f32.xlu0 %v5101
  %v5103 = vpop.xlane.xlu0 %5102
  %v5104 = vsel %vm63, %v5062, 0.0
  %5105 = vadd.xlane.f32.xlu0 %v5104
  %v5106 = vpop.xlane.xlu0 %5105
  %v5107 = vsel %vm63, %v5063, 0.0
  %5108 = vadd.xlane.f32.xlu0 %v5107
  %v5109 = vpop.xlane.xlu0 %5108
  %v5110 = vsel %vm63, %v5064, 0.0
  %5111 = vadd.xlane.f32.xlu0 %v5110
  %v5112 = vpop.xlane.xlu0 %5111
  %v5113 = vmul.f32 %v5067, %v118
  %v5114 = vmul.f32 %v5070, %v118
  %v5115 = vmul.f32 %v5073, %v118
  %v5116 = vmul.f32 %v5076, %v118
  %v5117 = vmul.f32 %v5079, %v118
  %v5118 = vmul.f32 %v5082, %v118
  %v5119 = vmul.f32 %v5085, %v118
  %v5120 = vmul.f32 %v5088, %v118
  %v5121 = vmul.f32 %v5091, %v118
  %v5122 = vmul.f32 %v5094, %v118
  %v5123 = vmul.f32 %v5097, %v118
  %v5124 = vmul.f32 %v5100, %v118
  %v5125 = vmul.f32 %v5103, %v118
  %v5126 = vmul.f32 %v5106, %v118
  %v5127 = vmul.f32 %v5109, %v118
  %v5128 = vmul.f32 %v5112, %v118
  %v5129 = vsub.f32 %v5049, %v5113
  %v5130 = vsub.f32 %v5050, %v5114
  %v5131 = vsub.f32 %v5051, %v5115
  %v5132 = vsub.f32 %v5052, %v5116
  %v5133 = vsub.f32 %v5053, %v5117
  %v5134 = vsub.f32 %v5054, %v5118
  %v5135 = vsub.f32 %v5055, %v5119
  %v5136 = vsub.f32 %v5056, %v5120
  %v5137 = vsub.f32 %v5057, %v5121
  %v5138 = vsub.f32 %v5058, %v5122
  %v5139 = vsub.f32 %v5059, %v5123
  %v5140 = vsub.f32 %v5060, %v5124
  %v5141 = vsub.f32 %v5061, %v5125
  %v5142 = vsub.f32 %v5062, %v5126
  %v5143 = vsub.f32 %v5063, %v5127
  %v5144 = vsub.f32 %v5064, %v5128
  %v5145 = vmul.f32 %v5129, %v5129
  %v5146 = vmul.f32 %v5130, %v5130
  %v5147 = vmul.f32 %v5131, %v5131
  %v5148 = vmul.f32 %v5132, %v5132
  %v5149 = vmul.f32 %v5133, %v5133
  %v5150 = vmul.f32 %v5134, %v5134
  %v5151 = vmul.f32 %v5135, %v5135
  %v5152 = vmul.f32 %v5136, %v5136
  %v5153 = vmul.f32 %v5137, %v5137
  %v5154 = vmul.f32 %v5138, %v5138
  %v5155 = vmul.f32 %v5139, %v5139
  %v5156 = vmul.f32 %v5140, %v5140
  %v5157 = vmul.f32 %v5141, %v5141
  %v5158 = vmul.f32 %v5142, %v5142
  %v5159 = vmul.f32 %v5143, %v5143
  %v5160 = vmul.f32 %v5144, %v5144
  %v5161 = vsel %vm63, %v5145, 0.0
  %5162 = vadd.xlane.f32.xlu0 %v5161
  %v5163 = vpop.xlane.xlu0 %5162
  %v5164 = vsel %vm63, %v5146, 0.0
  %5165 = vadd.xlane.f32.xlu0 %v5164
  %v5166 = vpop.xlane.xlu0 %5165
  %v5167 = vsel %vm63, %v5147, 0.0
  %5168 = vadd.xlane.f32.xlu0 %v5167
  %v5169 = vpop.xlane.xlu0 %5168
  %v5170 = vsel %vm63, %v5148, 0.0
  %5171 = vadd.xlane.f32.xlu0 %v5170
  %v5172 = vpop.xlane.xlu0 %5171
  %v5173 = vsel %vm63, %v5149, 0.0
  %5174 = vadd.xlane.f32.xlu0 %v5173
  %v5175 = vpop.xlane.xlu0 %5174
  %v5176 = vsel %vm63, %v5150, 0.0
  %5177 = vadd.xlane.f32.xlu0 %v5176
  %v5178 = vpop.xlane.xlu0 %5177
  %v5179 = vsel %vm63, %v5151, 0.0
  %5180 = vadd.xlane.f32.xlu0 %v5179
  %v5181 = vpop.xlane.xlu0 %5180
  %v5182 = vsel %vm63, %v5152, 0.0
  %5183 = vadd.xlane.f32.xlu0 %v5182
  %v5184 = vpop.xlane.xlu0 %5183
  %v5185 = vsel %vm63, %v5153, 0.0
  %5186 = vadd.xlane.f32.xlu0 %v5185
  %v5187 = vpop.xlane.xlu0 %5186
  %v5188 = vsel %vm63, %v5154, 0.0
  %5189 = vadd.xlane.f32.xlu0 %v5188
  %v5190 = vpop.xlane.xlu0 %5189
  %v5191 = vsel %vm63, %v5155, 0.0
  %5192 = vadd.xlane.f32.xlu0 %v5191
  %v5193 = vpop.xlane.xlu0 %5192
  %v5194 = vsel %vm63, %v5156, 0.0
  %5195 = vadd.xlane.f32.xlu0 %v5194
  %v5196 = vpop.xlane.xlu0 %5195
  %v5197 = vsel %vm63, %v5157, 0.0
  %5198 = vadd.xlane.f32.xlu0 %v5197
  %v5199 = vpop.xlane.xlu0 %5198
  %v5200 = vsel %vm63, %v5158, 0.0
  %5201 = vadd.xlane.f32.xlu0 %v5200
  %v5202 = vpop.xlane.xlu0 %5201
  %v5203 = vsel %vm63, %v5159, 0.0
  %5204 = vadd.xlane.f32.xlu0 %v5203
  %v5205 = vpop.xlane.xlu0 %5204
  %v5206 = vsel %vm63, %v5160, 0.0
  %5207 = vadd.xlane.f32.xlu0 %v5206
  %v5208 = vpop.xlane.xlu0 %5207
  %v5209 = vmul.f32 %v5163, %v118
  %v5210 = vmul.f32 %v5166, %v118
  %v5211 = vmul.f32 %v5169, %v118
  %v5212 = vmul.f32 %v5172, %v118
  %v5213 = vmul.f32 %v5175, %v118
  %v5214 = vmul.f32 %v5178, %v118
  %v5215 = vmul.f32 %v5181, %v118
  %v5216 = vmul.f32 %v5184, %v118
  %v5217 = vmul.f32 %v5187, %v118
  %v5218 = vmul.f32 %v5190, %v118
  %v5219 = vmul.f32 %v5193, %v118
  %v5220 = vmul.f32 %v5196, %v118
  %v5221 = vmul.f32 %v5199, %v118
  %v5222 = vmul.f32 %v5202, %v118
  %v5223 = vmul.f32 %v5205, %v118
  %v5224 = vmul.f32 %v5208, %v118
  %v5225 = vadd.f32 %v5209, 1e-06
  %v5226 = vadd.f32 %v5210, 1e-06
  %v5227 = vadd.f32 %v5211, 1e-06
  %v5228 = vadd.f32 %v5212, 1e-06
  %v5229 = vadd.f32 %v5213, 1e-06
  %v5230 = vadd.f32 %v5214, 1e-06
  %v5231 = vadd.f32 %v5215, 1e-06
  %v5232 = vadd.f32 %v5216, 1e-06
  %v5233 = vadd.f32 %v5217, 1e-06
  %v5234 = vadd.f32 %v5218, 1e-06
  %v5235 = vadd.f32 %v5219, 1e-06
  %v5236 = vadd.f32 %v5220, 1e-06
  %v5237 = vadd.f32 %v5221, 1e-06
  %v5238 = vadd.f32 %v5222, 1e-06
  %v5239 = vadd.f32 %v5223, 1e-06
  %v5240 = vadd.f32 %v5224, 1e-06
  %v5241 = vrsqrt.pop %v5225
  %v5242 = vmul.f32 %v5241, %v5225
  %v5243 = vmul.f32 %v5242, %v5241
  %v5244 = vmul.f32 0.5, %v5243
  %v5245 = vsub.f32 1.5, %v5244
  %v5246 = vmul.f32 %v5241, %v5245
  %vm5247 = vweird.f32 %v5225
  %vm5248 = vweird.f32 %v5241
  %vm5249 = vmor %vm5247, %vm5248
  %v5250 = vsel %vm5249, %v5241, %v5246
  %v5251 = vrsqrt.pop %v5226
  %v5252 = vmul.f32 %v5251, %v5226
  %v5253 = vmul.f32 %v5252, %v5251
  %v5254 = vmul.f32 0.5, %v5253
  %v5255 = vsub.f32 1.5, %v5254
  %v5256 = vmul.f32 %v5251, %v5255
  %vm5257 = vweird.f32 %v5226
  %vm5258 = vweird.f32 %v5251
  %vm5259 = vmor %vm5257, %vm5258
  %v5260 = vsel %vm5259, %v5251, %v5256
  %v5261 = vrsqrt.pop %v5227
  %v5262 = vmul.f32 %v5261, %v5227
  %v5263 = vmul.f32 %v5262, %v5261
  %v5264 = vmul.f32 0.5, %v5263
  %v5265 = vsub.f32 1.5, %v5264
  %v5266 = vmul.f32 %v5261, %v5265
  %vm5267 = vweird.f32 %v5227
  %vm5268 = vweird.f32 %v5261
  %vm5269 = vmor %vm5267, %vm5268
  %v5270 = vsel %vm5269, %v5261, %v5266
  %v5271 = vrsqrt.pop %v5228
  %v5272 = vmul.f32 %v5271, %v5228
  %v5273 = vmul.f32 %v5272, %v5271
  %v5274 = vmul.f32 0.5, %v5273
  %v5275 = vsub.f32 1.5, %v5274
  %v5276 = vmul.f32 %v5271, %v5275
  %vm5277 = vweird.f32 %v5228
  %vm5278 = vweird.f32 %v5271
  %vm5279 = vmor %vm5277, %vm5278
  %v5280 = vsel %vm5279, %v5271, %v5276
  %v5281 = vrsqrt.pop %v5229
  %v5282 = vmul.f32 %v5281, %v5229
  %v5283 = vmul.f32 %v5282, %v5281
  %v5284 = vmul.f32 0.5, %v5283
  %v5285 = vsub.f32 1.5, %v5284
  %v5286 = vmul.f32 %v5281, %v5285
  %vm5287 = vweird.f32 %v5229
  %vm5288 = vweird.f32 %v5281
  %vm5289 = vmor %vm5287, %vm5288
  %v5290 = vsel %vm5289, %v5281, %v5286
  %v5291 = vrsqrt.pop %v5230
  %v5292 = vmul.f32 %v5291, %v5230
  %v5293 = vmul.f32 %v5292, %v5291
  %v5294 = vmul.f32 0.5, %v5293
  %v5295 = vsub.f32 1.5, %v5294
  %v5296 = vmul.f32 %v5291, %v5295
  %vm5297 = vweird.f32 %v5230
  %vm5298 = vweird.f32 %v5291
  %vm5299 = vmor %vm5297, %vm5298
  %v5300 = vsel %vm5299, %v5291, %v5296
  %v5301 = vrsqrt.pop %v5231
  %v5302 = vmul.f32 %v5301, %v5231
  %v5303 = vmul.f32 %v5302, %v5301
  %v5304 = vmul.f32 0.5, %v5303
  %v5305 = vsub.f32 1.5, %v5304
  %v5306 = vmul.f32 %v5301, %v5305
  %vm5307 = vweird.f32 %v5231
  %vm5308 = vweird.f32 %v5301
  %vm5309 = vmor %vm5307, %vm5308
  %v5310 = vsel %vm5309, %v5301, %v5306
  %v5311 = vrsqrt.pop %v5232
  %v5312 = vmul.f32 %v5311, %v5232
  %v5313 = vmul.f32 %v5312, %v5311
  %v5314 = vmul.f32 0.5, %v5313
  %v5315 = vsub.f32 1.5, %v5314
  %v5316 = vmul.f32 %v5311, %v5315
  %vm5317 = vweird.f32 %v5232
  %vm5318 = vweird.f32 %v5311
  %vm5319 = vmor %vm5317, %vm5318
  %v5320 = vsel %vm5319, %v5311, %v5316
  %v5321 = vrsqrt.pop %v5233
  %v5322 = vmul.f32 %v5321, %v5233
  %v5323 = vmul.f32 %v5322, %v5321
  %v5324 = vmul.f32 0.5, %v5323
  %v5325 = vsub.f32 1.5, %v5324
  %v5326 = vmul.f32 %v5321, %v5325
  %vm5327 = vweird.f32 %v5233
  %vm5328 = vweird.f32 %v5321
  %vm5329 = vmor %vm5327, %vm5328
  %v5330 = vsel %vm5329, %v5321, %v5326
  %v5331 = vrsqrt.pop %v5234
  %v5332 = vmul.f32 %v5331, %v5234
  %v5333 = vmul.f32 %v5332, %v5331
  %v5334 = vmul.f32 0.5, %v5333
  %v5335 = vsub.f32 1.5, %v5334
  %v5336 = vmul.f32 %v5331, %v5335
  %vm5337 = vweird.f32 %v5234
  %vm5338 = vweird.f32 %v5331
  %vm5339 = vmor %vm5337, %vm5338
  %v5340 = vsel %vm5339, %v5331, %v5336
  %v5341 = vrsqrt.pop %v5235
  %v5342 = vmul.f32 %v5341, %v5235
  %v5343 = vmul.f32 %v5342, %v5341
  %v5344 = vmul.f32 0.5, %v5343
  %v5345 = vsub.f32 1.5, %v5344
  %v5346 = vmul.f32 %v5341, %v5345
  %vm5347 = vweird.f32 %v5235
  %vm5348 = vweird.f32 %v5341
  %vm5349 = vmor %vm5347, %vm5348
  %v5350 = vsel %vm5349, %v5341, %v5346
  %v5351 = vrsqrt.pop %v5236
  %v5352 = vmul.f32 %v5351, %v5236
  %v5353 = vmul.f32 %v5352, %v5351
  %v5354 = vmul.f32 0.5, %v5353
  %v5355 = vsub.f32 1.5, %v5354
  %v5356 = vmul.f32 %v5351, %v5355
  %vm5357 = vweird.f32 %v5236
  %vm5358 = vweird.f32 %v5351
  %vm5359 = vmor %vm5357, %vm5358
  %v5360 = vsel %vm5359, %v5351, %v5356
  %v5361 = vrsqrt.pop %v5237
  %v5362 = vmul.f32 %v5361, %v5237
  %v5363 = vmul.f32 %v5362, %v5361
  %v5364 = vmul.f32 0.5, %v5363
  %v5365 = vsub.f32 1.5, %v5364
  %v5366 = vmul.f32 %v5361, %v5365
  %vm5367 = vweird.f32 %v5237
  %vm5368 = vweird.f32 %v5361
  %vm5369 = vmor %vm5367, %vm5368
  %v5370 = vsel %vm5369, %v5361, %v5366
  %v5371 = vrsqrt.pop %v5238
  %v5372 = vmul.f32 %v5371, %v5238
  %v5373 = vmul.f32 %v5372, %v5371
  %v5374 = vmul.f32 0.5, %v5373
  %v5375 = vsub.f32 1.5, %v5374
  %v5376 = vmul.f32 %v5371, %v5375
  %vm5377 = vweird.f32 %v5238
  %vm5378 = vweird.f32 %v5371
  %vm5379 = vmor %vm5377, %vm5378
  %v5380 = vsel %vm5379, %v5371, %v5376
  %v5381 = vrsqrt.pop %v5239
  %v5382 = vmul.f32 %v5381, %v5239
  %v5383 = vmul.f32 %v5382, %v5381
  %v5384 = vmul.f32 0.5, %v5383
  %v5385 = vsub.f32 1.5, %v5384
  %v5386 = vmul.f32 %v5381, %v5385
  %vm5387 = vweird.f32 %v5239
  %vm5388 = vweird.f32 %v5381
  %vm5389 = vmor %vm5387, %vm5388
  %v5390 = vsel %vm5389, %v5381, %v5386
  %v5391 = vrsqrt.pop %v5240
  %v5392 = vmul.f32 %v5391, %v5240
  %v5393 = vmul.f32 %v5392, %v5391
  %v5394 = vmul.f32 0.5, %v5393
  %v5395 = vsub.f32 1.5, %v5394
  %v5396 = vmul.f32 %v5391, %v5395
  %vm5397 = vweird.f32 %v5240
  %vm5398 = vweird.f32 %v5391
  %vm5399 = vmor %vm5397, %vm5398
  %v5400 = vsel %vm5399, %v5391, %v5396
  %v5401 = vmul.f32 %v5129, %v5250
  %v5402 = vmul.f32 %v5130, %v5260
  %v5403 = vmul.f32 %v5131, %v5270
  %v5404 = vmul.f32 %v5132, %v5280
  %v5405 = vmul.f32 %v5133, %v5290
  %v5406 = vmul.f32 %v5134, %v5300
  %v5407 = vmul.f32 %v5135, %v5310
  %v5408 = vmul.f32 %v5136, %v5320
  %v5409 = vmul.f32 %v5137, %v5330
  %v5410 = vmul.f32 %v5138, %v5340
  %v5411 = vmul.f32 %v5139, %v5350
  %v5412 = vmul.f32 %v5140, %v5360
  %v5413 = vmul.f32 %v5141, %v5370
  %v5414 = vmul.f32 %v5142, %v5380
  %v5415 = vmul.f32 %v5143, %v5390
  %v5416 = vmul.f32 %v5144, %v5400
  %v5417 = vld [vmem:[%s8] sm:$0x1]
  %v5419 = vperm.slane %v5417, 0
  %v5421 = vmul.f32 %v5401, %v5419
  %v5422 = vmul.f32 %v5402, %v5419
  %v5423 = vmul.f32 %v5403, %v5419
  %v5424 = vmul.f32 %v5404, %v5419
  %v5425 = vmul.f32 %v5405, %v5419
  %v5426 = vmul.f32 %v5406, %v5419
  %v5427 = vmul.f32 %v5407, %v5419
  %v5428 = vmul.f32 %v5408, %v5419
  %v5429 = vmul.f32 %v5409, %v5419
  %v5430 = vmul.f32 %v5410, %v5419
  %v5431 = vmul.f32 %v5411, %v5419
  %v5432 = vmul.f32 %v5412, %v5419
  %v5433 = vmul.f32 %v5413, %v5419
  %v5434 = vmul.f32 %v5414, %v5419
  %v5435 = vmul.f32 %v5415, %v5419
  %v5436 = vmul.f32 %v5416, %v5419
  %v5437 = vld [vmem:[%s9] sm:$0x1]
  %v5439 = vperm.slane %v5437, 0
  %v5441 = vadd.f32 %v5421, %v5439
  %v5442 = vadd.f32 %v5422, %v5439
  %v5443 = vadd.f32 %v5423, %v5439
  %v5444 = vadd.f32 %v5424, %v5439
  %v5445 = vadd.f32 %v5425, %v5439
  %v5446 = vadd.f32 %v5426, %v5439
  %v5447 = vadd.f32 %v5427, %v5439
  %v5448 = vadd.f32 %v5428, %v5439
  %v5449 = vadd.f32 %v5429, %v5439
  %v5450 = vadd.f32 %v5430, %v5439
  %v5451 = vadd.f32 %v5431, %v5439
  %v5452 = vadd.f32 %v5432, %v5439
  %v5453 = vadd.f32 %v5433, %v5439
  %v5454 = vadd.f32 %v5434, %v5439
  %v5455 = vadd.f32 %v5435, %v5439
  %v5456 = vadd.f32 %v5436, %v5439
  %v5457 = vld [vmem:[%s10] sm:$0xff]
  %v5458 = vld [vmem:[%s10 + $0x8] sm:$0xff]
  %v5459 = vld [vmem:[%s10 + $0x10] sm:$0xff]
  %v5460 = vld [vmem:[%s10 + $0x18] sm:$0xff]
  %v5461 = vld [vmem:[%s11] sm:$0x1]
  %v5463 = vperm.slane %v5461, 0
  %v5466 = vsel %vm63, %v5441, 0
  %v5469 = vsel %vm63, %v5442, 0
  %v5472 = vsel %vm63, %v5443, 0
  %v5475 = vsel %vm63, %v5444, 0
  %v5478 = vsel %vm63, %v5445, 0
  %v5481 = vsel %vm63, %v5446, 0
  %v5484 = vsel %vm63, %v5447, 0
  %v5487 = vsel %vm63, %v5448, 0
  %v5490 = vsel %vm63, %v5449, 0
  %v5493 = vsel %vm63, %v5450, 0
  %v5496 = vsel %vm63, %v5451, 0
  %v5499 = vsel %vm63, %v5452, 0
  %v5502 = vsel %vm63, %v5453, 0
  %v5505 = vsel %vm63, %v5454, 0
  %v5508 = vsel %vm63, %v5455, 0
  %v5511 = vsel %vm63, %v5456, 0
  %5513 = vmatpush.msra.mxu0 0.0
  %5514 = vmatpush.msra.mxu0 0.0
  %5515 = vmatpush.msra.mxu0 0.0
  %5516 = vmatpush.msra.mxu0 0.0
  %5517 = vmatpush.msra.mxu0 0.0
  %5518 = vmatpush.msra.mxu0 0.0
  %5519 = vmatpush.msra.mxu0 0.0
  %5520 = vmatpush.msra.mxu0 0.0
  %5521 = vmatpush.msra.mxu0 0.0
  %5522 = vmatpush.msra.mxu0 0.0
  %5523 = vmatpush.msra.mxu0 0.0
  %5524 = vmatpush.msra.mxu0 0.0
  %5525 = vmatpush.msra.mxu0 %v5460
  %5526 = vmatpush.msra.mxu0 %v5459
  %5527 = vmatpush.msra.mxu0 %v5458
  %5528 = vmatpush.msra.mxu0 %v5457
  %5529 = vmatmul.f32.gmra.mxu0 %v5466
  %v5530 = vpop.f32.mrf.mxu0
  %v5531 = vadd.f32 %v5463, %v5530
  %5532 = vmatmul.f32.gmra.mxu0 %v5469
  %v5533 = vpop.f32.mrf.mxu0
  %v5534 = vadd.f32 %v5463, %v5533
  %5535 = vmatmul.f32.gmra.mxu0 %v5472
  %v5536 = vpop.f32.mrf.mxu0
  %v5537 = vadd.f32 %v5463, %v5536
  %5538 = vmatmul.f32.gmra.mxu0 %v5475
  %v5539 = vpop.f32.mrf.mxu0
  %v5540 = vadd.f32 %v5463, %v5539
  %5541 = vmatmul.f32.gmra.mxu0 %v5478
  %v5542 = vpop.f32.mrf.mxu0
  %v5543 = vadd.f32 %v5463, %v5542
  %5544 = vmatmul.f32.gmra.mxu0 %v5481
  %v5545 = vpop.f32.mrf.mxu0
  %v5546 = vadd.f32 %v5463, %v5545
  %5547 = vmatmul.f32.gmra.mxu0 %v5484
  %v5548 = vpop.f32.mrf.mxu0
  %v5549 = vadd.f32 %v5463, %v5548
  %5550 = vmatmul.f32.gmra.mxu0 %v5487
  %v5551 = vpop.f32.mrf.mxu0
  %v5552 = vadd.f32 %v5463, %v5551
  %5553 = vmatmul.f32.gmra.mxu0 %v5490
  %v5554 = vpop.f32.mrf.mxu0
  %v5555 = vadd.f32 %v5463, %v5554
  %5556 = vmatmul.f32.gmra.mxu0 %v5493
  %v5557 = vpop.f32.mrf.mxu0
  %v5558 = vadd.f32 %v5463, %v5557
  %5559 = vmatmul.f32.gmra.mxu0 %v5496
  %v5560 = vpop.f32.mrf.mxu0
  %v5561 = vadd.f32 %v5463, %v5560
  %5562 = vmatmul.f32.gmra.mxu0 %v5499
  %v5563 = vpop.f32.mrf.mxu0
  %v5564 = vadd.f32 %v5463, %v5563
  %5565 = vmatmul.f32.gmra.mxu0 %v5502
  %v5566 = vpop.f32.mrf.mxu0
  %v5567 = vadd.f32 %v5463, %v5566
  %5568 = vmatmul.f32.gmra.mxu0 %v5505
  %v5569 = vpop.f32.mrf.mxu0
  %v5570 = vadd.f32 %v5463, %v5569
  %5571 = vmatmul.f32.gmra.mxu0 %v5508
  %v5572 = vpop.f32.mrf.mxu0
  %v5573 = vadd.f32 %v5463, %v5572
  %5574 = vmatmul.f32.gmra.mxu0 %v5511
  %v5575 = vpop.f32.mrf.mxu0
  %v5576 = vadd.f32 %v5463, %v5575
  %5577 = vdwg.mxu0
  %v5578 = vmul.f32 %v5531, 0.5
  %v5579 = vmul.f32 %v5534, 0.5
  %v5580 = vmul.f32 %v5537, 0.5
  %v5581 = vmul.f32 %v5540, 0.5
  %v5582 = vmul.f32 %v5543, 0.5
  %v5583 = vmul.f32 %v5546, 0.5
  %v5584 = vmul.f32 %v5549, 0.5
  %v5585 = vmul.f32 %v5552, 0.5
  %v5586 = vmul.f32 %v5555, 0.5
  %v5587 = vmul.f32 %v5558, 0.5
  %v5588 = vmul.f32 %v5561, 0.5
  %v5589 = vmul.f32 %v5564, 0.5
  %v5590 = vmul.f32 %v5567, 0.5
  %v5591 = vmul.f32 %v5570, 0.5
  %v5592 = vmul.f32 %v5573, 0.5
  %v5593 = vmul.f32 %v5576, 0.5
  %v5594 = vmul.f32 %v5531, 0.70710677
  %v5595 = vmul.f32 %v5534, 0.70710677
  %v5596 = vmul.f32 %v5537, 0.70710677
  %v5597 = vmul.f32 %v5540, 0.70710677
  %v5598 = vmul.f32 %v5543, 0.70710677
  %v5599 = vmul.f32 %v5546, 0.70710677
  %v5600 = vmul.f32 %v5549, 0.70710677
  %v5601 = vmul.f32 %v5552, 0.70710677
  %v5602 = vmul.f32 %v5555, 0.70710677
  %v5603 = vmul.f32 %v5558, 0.70710677
  %v5604 = vmul.f32 %v5561, 0.70710677
  %v5605 = vmul.f32 %v5564, 0.70710677
  %v5606 = vmul.f32 %v5567, 0.70710677
  %v5607 = vmul.f32 %v5570, 0.70710677
  %v5608 = vmul.f32 %v5573, 0.70710677
  %v5609 = vmul.f32 %v5576, 0.70710677
  %v5610 = vand.u32 2147483647, %v5594
  %v5611 = vand.u32 2147483647, %v5595
  %v5612 = vand.u32 2147483647, %v5596
  %v5613 = vand.u32 2147483647, %v5597
  %v5614 = vand.u32 2147483647, %v5598
  %v5615 = vand.u32 2147483647, %v5599
  %v5616 = vand.u32 2147483647, %v5600
  %v5617 = vand.u32 2147483647, %v5601
  %v5618 = vand.u32 2147483647, %v5602
  %v5619 = vand.u32 2147483647, %v5603
  %v5620 = vand.u32 2147483647, %v5604
  %v5621 = vand.u32 2147483647, %v5605
  %v5622 = vand.u32 2147483647, %v5606
  %v5623 = vand.u32 2147483647, %v5607
  %v5624 = vand.u32 2147483647, %v5608
  %v5625 = vand.u32 2147483647, %v5609
  %v5626 = vmul.f32 %v5610, 0.3275911
  %v5627 = vmul.f32 %v5611, 0.3275911
  %v5628 = vmul.f32 %v5612, 0.3275911
  %v5629 = vmul.f32 %v5613, 0.3275911
  %v5630 = vmul.f32 %v5614, 0.3275911
  %v5631 = vmul.f32 %v5615, 0.3275911
  %v5632 = vmul.f32 %v5616, 0.3275911
  %v5633 = vmul.f32 %v5617, 0.3275911
  %v5634 = vmul.f32 %v5618, 0.3275911
  %v5635 = vmul.f32 %v5619, 0.3275911
  %v5636 = vmul.f32 %v5620, 0.3275911
  %v5637 = vmul.f32 %v5621, 0.3275911
  %v5638 = vmul.f32 %v5622, 0.3275911
  %v5639 = vmul.f32 %v5623, 0.3275911
  %v5640 = vmul.f32 %v5624, 0.3275911
  %v5641 = vmul.f32 %v5625, 0.3275911
  %v5642 = vadd.f32 %v5626, 1.0
  %v5643 = vadd.f32 %v5627, 1.0
  %v5644 = vadd.f32 %v5628, 1.0
  %v5645 = vadd.f32 %v5629, 1.0
  %v5646 = vadd.f32 %v5630, 1.0
  %v5647 = vadd.f32 %v5631, 1.0
  %v5648 = vadd.f32 %v5632, 1.0
  %v5649 = vadd.f32 %v5633, 1.0
  %v5650 = vadd.f32 %v5634, 1.0
  %v5651 = vadd.f32 %v5635, 1.0
  %v5652 = vadd.f32 %v5636, 1.0
  %v5653 = vadd.f32 %v5637, 1.0
  %v5654 = vadd.f32 %v5638, 1.0
  %v5655 = vadd.f32 %v5639, 1.0
  %v5656 = vadd.f32 %v5640, 1.0
  %v5657 = vadd.f32 %v5641, 1.0
  %v5658 = vrcp.pop %v5642
  %v5659 = vmul.f32 %v5642, %v5658
  %v5660 = vsub.f32 1.0, %v5659
  %v5661 = vmul.f32 %v5658, %v5660
  %v5662 = vadd.f32 %v5658, %v5661
  %vm5663 = vweird.f32 %v5642
  %vm5664 = vweird.f32 %v5658
  %vm5665 = vmor %vm5663, %vm5664
  %v5666 = vsel %vm5665, %v5658, %v5662
  %v5667 = vand.u32 2147483647, %v5642
  %vm5668 = vcmp.eq.f32.partialorder %v5667, 8.507059e+37
  %v5669 = vand.u32 %v5642, 2147483648
  %v5670 = vor.u32 1.1754944e-38, %v5669
  %v5671 = vsel %vm5668, %v5670, %v5666
  %v5672 = vmul.f32 1.0, %v5671
  %v5673 = vrcp.pop %v5643
  %v5674 = vmul.f32 %v5643, %v5673
  %v5675 = vsub.f32 1.0, %v5674
  %v5676 = vmul.f32 %v5673, %v5675
  %v5677 = vadd.f32 %v5673, %v5676
  %vm5678 = vweird.f32 %v5643
  %vm5679 = vweird.f32 %v5673
  %vm5680 = vmor %vm5678, %vm5679
  %v5681 = vsel %vm5680, %v5673, %v5677
  %v5682 = vand.u32 2147483647, %v5643
  %vm5683 = vcmp.eq.f32.partialorder %v5682, 8.507059e+37
  %v5684 = vand.u32 %v5643, 2147483648
  %v5685 = vor.u32 1.1754944e-38, %v5684
  %v5686 = vsel %vm5683, %v5685, %v5681
  %v5687 = vmul.f32 1.0, %v5686
  %v5688 = vrcp.pop %v5644
  %v5689 = vmul.f32 %v5644, %v5688
  %v5690 = vsub.f32 1.0, %v5689
  %v5691 = vmul.f32 %v5688, %v5690
  %v5692 = vadd.f32 %v5688, %v5691
  %vm5693 = vweird.f32 %v5644
  %vm5694 = vweird.f32 %v5688
  %vm5695 = vmor %vm5693, %vm5694
  %v5696 = vsel %vm5695, %v5688, %v5692
  %v5697 = vand.u32 2147483647, %v5644
  %vm5698 = vcmp.eq.f32.partialorder %v5697, 8.507059e+37
  %v5699 = vand.u32 %v5644, 2147483648
  %v5700 = vor.u32 1.1754944e-38, %v5699
  %v5701 = vsel %vm5698, %v5700, %v5696
  %v5702 = vmul.f32 1.0, %v5701
  %v5703 = vrcp.pop %v5645
  %v5704 = vmul.f32 %v5645, %v5703
  %v5705 = vsub.f32 1.0, %v5704
  %v5706 = vmul.f32 %v5703, %v5705
  %v5707 = vadd.f32 %v5703, %v5706
  %vm5708 = vweird.f32 %v5645
  %vm5709 = vweird.f32 %v5703
  %vm5710 = vmor %vm5708, %vm5709
  %v5711 = vsel %vm5710, %v5703, %v5707
  %v5712 = vand.u32 2147483647, %v5645
  %vm5713 = vcmp.eq.f32.partialorder %v5712, 8.507059e+37
  %v5714 = vand.u32 %v5645, 2147483648
  %v5715 = vor.u32 1.1754944e-38, %v5714
  %v5716 = vsel %vm5713, %v5715, %v5711
  %v5717 = vmul.f32 1.0, %v5716
  %v5718 = vrcp.pop %v5646
  %v5719 = vmul.f32 %v5646, %v5718
  %v5720 = vsub.f32 1.0, %v5719
  %v5721 = vmul.f32 %v5718, %v5720
  %v5722 = vadd.f32 %v5718, %v5721
  %vm5723 = vweird.f32 %v5646
  %vm5724 = vweird.f32 %v5718
  %vm5725 = vmor %vm5723, %vm5724
  %v5726 = vsel %vm5725, %v5718, %v5722
  %v5727 = vand.u32 2147483647, %v5646
  %vm5728 = vcmp.eq.f32.partialorder %v5727, 8.507059e+37
  %v5729 = vand.u32 %v5646, 2147483648
  %v5730 = vor.u32 1.1754944e-38, %v5729
  %v5731 = vsel %vm5728, %v5730, %v5726
  %v5732 = vmul.f32 1.0, %v5731
  %v5733 = vrcp.pop %v5647
  %v5734 = vmul.f32 %v5647, %v5733
  %v5735 = vsub.f32 1.0, %v5734
  %v5736 = vmul.f32 %v5733, %v5735
  %v5737 = vadd.f32 %v5733, %v5736
  %vm5738 = vweird.f32 %v5647
  %vm5739 = vweird.f32 %v5733
  %vm5740 = vmor %vm5738, %vm5739
  %v5741 = vsel %vm5740, %v5733, %v5737
  %v5742 = vand.u32 2147483647, %v5647
  %vm5743 = vcmp.eq.f32.partialorder %v5742, 8.507059e+37
  %v5744 = vand.u32 %v5647, 2147483648
  %v5745 = vor.u32 1.1754944e-38, %v5744
  %v5746 = vsel %vm5743, %v5745, %v5741
  %v5747 = vmul.f32 1.0, %v5746
  %v5748 = vrcp.pop %v5648
  %v5749 = vmul.f32 %v5648, %v5748
  %v5750 = vsub.f32 1.0, %v5749
  %v5751 = vmul.f32 %v5748, %v5750
  %v5752 = vadd.f32 %v5748, %v5751
  %vm5753 = vweird.f32 %v5648
  %vm5754 = vweird.f32 %v5748
  %vm5755 = vmor %vm5753, %vm5754
  %v5756 = vsel %vm5755, %v5748, %v5752
  %v5757 = vand.u32 2147483647, %v5648
  %vm5758 = vcmp.eq.f32.partialorder %v5757, 8.507059e+37
  %v5759 = vand.u32 %v5648, 2147483648
  %v5760 = vor.u32 1.1754944e-38, %v5759
  %v5761 = vsel %vm5758, %v5760, %v5756
  %v5762 = vmul.f32 1.0, %v5761
  %v5763 = vrcp.pop %v5649
  %v5764 = vmul.f32 %v5649, %v5763
  %v5765 = vsub.f32 1.0, %v5764
  %v5766 = vmul.f32 %v5763, %v5765
  %v5767 = vadd.f32 %v5763, %v5766
  %vm5768 = vweird.f32 %v5649
  %vm5769 = vweird.f32 %v5763
  %vm5770 = vmor %vm5768, %vm5769
  %v5771 = vsel %vm5770, %v5763, %v5767
  %v5772 = vand.u32 2147483647, %v5649
  %vm5773 = vcmp.eq.f32.partialorder %v5772, 8.507059e+37
  %v5774 = vand.u32 %v5649, 2147483648
  %v5775 = vor.u32 1.1754944e-38, %v5774
  %v5776 = vsel %vm5773, %v5775, %v5771
  %v5777 = vmul.f32 1.0, %v5776
  %v5778 = vrcp.pop %v5650
  %v5779 = vmul.f32 %v5650, %v5778
  %v5780 = vsub.f32 1.0, %v5779
  %v5781 = vmul.f32 %v5778, %v5780
  %v5782 = vadd.f32 %v5778, %v5781
  %vm5783 = vweird.f32 %v5650
  %vm5784 = vweird.f32 %v5778
  %vm5785 = vmor %vm5783, %vm5784
  %v5786 = vsel %vm5785, %v5778, %v5782
  %v5787 = vand.u32 2147483647, %v5650
  %vm5788 = vcmp.eq.f32.partialorder %v5787, 8.507059e+37
  %v5789 = vand.u32 %v5650, 2147483648
  %v5790 = vor.u32 1.1754944e-38, %v5789
  %v5791 = vsel %vm5788, %v5790, %v5786
  %v5792 = vmul.f32 1.0, %v5791
  %v5793 = vrcp.pop %v5651
  %v5794 = vmul.f32 %v5651, %v5793
  %v5795 = vsub.f32 1.0, %v5794
  %v5796 = vmul.f32 %v5793, %v5795
  %v5797 = vadd.f32 %v5793, %v5796
  %vm5798 = vweird.f32 %v5651
  %vm5799 = vweird.f32 %v5793
  %vm5800 = vmor %vm5798, %vm5799
  %v5801 = vsel %vm5800, %v5793, %v5797
  %v5802 = vand.u32 2147483647, %v5651
  %vm5803 = vcmp.eq.f32.partialorder %v5802, 8.507059e+37
  %v5804 = vand.u32 %v5651, 2147483648
  %v5805 = vor.u32 1.1754944e-38, %v5804
  %v5806 = vsel %vm5803, %v5805, %v5801
  %v5807 = vmul.f32 1.0, %v5806
  %v5808 = vrcp.pop %v5652
  %v5809 = vmul.f32 %v5652, %v5808
  %v5810 = vsub.f32 1.0, %v5809
  %v5811 = vmul.f32 %v5808, %v5810
  %v5812 = vadd.f32 %v5808, %v5811
  %vm5813 = vweird.f32 %v5652
  %vm5814 = vweird.f32 %v5808
  %vm5815 = vmor %vm5813, %vm5814
  %v5816 = vsel %vm5815, %v5808, %v5812
  %v5817 = vand.u32 2147483647, %v5652
  %vm5818 = vcmp.eq.f32.partialorder %v5817, 8.507059e+37
  %v5819 = vand.u32 %v5652, 2147483648
  %v5820 = vor.u32 1.1754944e-38, %v5819
  %v5821 = vsel %vm5818, %v5820, %v5816
  %v5822 = vmul.f32 1.0, %v5821
  %v5823 = vrcp.pop %v5653
  %v5824 = vmul.f32 %v5653, %v5823
  %v5825 = vsub.f32 1.0, %v5824
  %v5826 = vmul.f32 %v5823, %v5825
  %v5827 = vadd.f32 %v5823, %v5826
  %vm5828 = vweird.f32 %v5653
  %vm5829 = vweird.f32 %v5823
  %vm5830 = vmor %vm5828, %vm5829
  %v5831 = vsel %vm5830, %v5823, %v5827
  %v5832 = vand.u32 2147483647, %v5653
  %vm5833 = vcmp.eq.f32.partialorder %v5832, 8.507059e+37
  %v5834 = vand.u32 %v5653, 2147483648
  %v5835 = vor.u32 1.1754944e-38, %v5834
  %v5836 = vsel %vm5833, %v5835, %v5831
  %v5837 = vmul.f32 1.0, %v5836
  %v5838 = vrcp.pop %v5654
  %v5839 = vmul.f32 %v5654, %v5838
  %v5840 = vsub.f32 1.0, %v5839
  %v5841 = vmul.f32 %v5838, %v5840
  %v5842 = vadd.f32 %v5838, %v5841
  %vm5843 = vweird.f32 %v5654
  %vm5844 = vweird.f32 %v5838
  %vm5845 = vmor %vm5843, %vm5844
  %v5846 = vsel %vm5845, %v5838, %v5842
  %v5847 = vand.u32 2147483647, %v5654
  %vm5848 = vcmp.eq.f32.partialorder %v5847, 8.507059e+37
  %v5849 = vand.u32 %v5654, 2147483648
  %v5850 = vor.u32 1.1754944e-38, %v5849
  %v5851 = vsel %vm5848, %v5850, %v5846
  %v5852 = vmul.f32 1.0, %v5851
  %v5853 = vrcp.pop %v5655
  %v5854 = vmul.f32 %v5655, %v5853
  %v5855 = vsub.f32 1.0, %v5854
  %v5856 = vmul.f32 %v5853, %v5855
  %v5857 = vadd.f32 %v5853, %v5856
  %vm5858 = vweird.f32 %v5655
  %vm5859 = vweird.f32 %v5853
  %vm5860 = vmor %vm5858, %vm5859
  %v5861 = vsel %vm5860, %v5853, %v5857
  %v5862 = vand.u32 2147483647, %v5655
  %vm5863 = vcmp.eq.f32.partialorder %v5862, 8.507059e+37
  %v5864 = vand.u32 %v5655, 2147483648
  %v5865 = vor.u32 1.1754944e-38, %v5864
  %v5866 = vsel %vm5863, %v5865, %v5861
  %v5867 = vmul.f32 1.0, %v5866
  %v5868 = vrcp.pop %v5656
  %v5869 = vmul.f32 %v5656, %v5868
  %v5870 = vsub.f32 1.0, %v5869
  %v5871 = vmul.f32 %v5868, %v5870
  %v5872 = vadd.f32 %v5868, %v5871
  %vm5873 = vweird.f32 %v5656
  %vm5874 = vweird.f32 %v5868
  %vm5875 = vmor %vm5873, %vm5874
  %v5876 = vsel %vm5875, %v5868, %v5872
  %v5877 = vand.u32 2147483647, %v5656
  %vm5878 = vcmp.eq.f32.partialorder %v5877, 8.507059e+37
  %v5879 = vand.u32 %v5656, 2147483648
  %v5880 = vor.u32 1.1754944e-38, %v5879
  %v5881 = vsel %vm5878, %v5880, %v5876
  %v5882 = vmul.f32 1.0, %v5881
  %v5883 = vrcp.pop %v5657
  %v5884 = vmul.f32 %v5657, %v5883
  %v5885 = vsub.f32 1.0, %v5884
  %v5886 = vmul.f32 %v5883, %v5885
  %v5887 = vadd.f32 %v5883, %v5886
  %vm5888 = vweird.f32 %v5657
  %vm5889 = vweird.f32 %v5883
  %vm5890 = vmor %vm5888, %vm5889
  %v5891 = vsel %vm5890, %v5883, %v5887
  %v5892 = vand.u32 2147483647, %v5657
  %vm5893 = vcmp.eq.f32.partialorder %v5892, 8.507059e+37
  %v5894 = vand.u32 %v5657, 2147483648
  %v5895 = vor.u32 1.1754944e-38, %v5894
  %v5896 = vsel %vm5893, %v5895, %v5891
  %v5897 = vmul.f32 1.0, %v5896
  %v5898 = vmul.f32 %v5672, 1.0614054
  %v5899 = vmul.f32 %v5687, 1.0614054
  %v5900 = vmul.f32 %v5702, 1.0614054
  %v5901 = vmul.f32 %v5717, 1.0614054
  %v5902 = vmul.f32 %v5732, 1.0614054
  %v5903 = vmul.f32 %v5747, 1.0614054
  %v5904 = vmul.f32 %v5762, 1.0614054
  %v5905 = vmul.f32 %v5777, 1.0614054
  %v5906 = vmul.f32 %v5792, 1.0614054
  %v5907 = vmul.f32 %v5807, 1.0614054
  %v5908 = vmul.f32 %v5822, 1.0614054
  %v5909 = vmul.f32 %v5837, 1.0614054
  %v5910 = vmul.f32 %v5852, 1.0614054
  %v5911 = vmul.f32 %v5867, 1.0614054
  %v5912 = vmul.f32 %v5882, 1.0614054
  %v5913 = vmul.f32 %v5897, 1.0614054
  %v5914 = vadd.f32 %v5898, -1.4531521
  %v5915 = vadd.f32 %v5899, -1.4531521
  %v5916 = vadd.f32 %v5900, -1.4531521
  %v5917 = vadd.f32 %v5901, -1.4531521
  %v5918 = vadd.f32 %v5902, -1.4531521
  %v5919 = vadd.f32 %v5903, -1.4531521
  %v5920 = vadd.f32 %v5904, -1.4531521
  %v5921 = vadd.f32 %v5905, -1.4531521
  %v5922 = vadd.f32 %v5906, -1.4531521
  %v5923 = vadd.f32 %v5907, -1.4531521
  %v5924 = vadd.f32 %v5908, -1.4531521
  %v5925 = vadd.f32 %v5909, -1.4531521
  %v5926 = vadd.f32 %v5910, -1.4531521
  %v5927 = vadd.f32 %v5911, -1.4531521
  %v5928 = vadd.f32 %v5912, -1.4531521
  %v5929 = vadd.f32 %v5913, -1.4531521
  %v5930 = vmul.f32 %v5914, %v5672
  %v5931 = vmul.f32 %v5915, %v5687
  %v5932 = vmul.f32 %v5916, %v5702
  %v5933 = vmul.f32 %v5917, %v5717
  %v5934 = vmul.f32 %v5918, %v5732
  %v5935 = vmul.f32 %v5919, %v5747
  %v5936 = vmul.f32 %v5920, %v5762
  %v5937 = vmul.f32 %v5921, %v5777
  %v5938 = vmul.f32 %v5922, %v5792
  %v5939 = vmul.f32 %v5923, %v5807
  %v5940 = vmul.f32 %v5924, %v5822
  %v5941 = vmul.f32 %v5925, %v5837
  %v5942 = vmul.f32 %v5926, %v5852
  %v5943 = vmul.f32 %v5927, %v5867
  %v5944 = vmul.f32 %v5928, %v5882
  %v5945 = vmul.f32 %v5929, %v5897
  %v5946 = vadd.f32 %v5930, 1.4214138
  %v5947 = vadd.f32 %v5931, 1.4214138
  %v5948 = vadd.f32 %v5932, 1.4214138
  %v5949 = vadd.f32 %v5933, 1.4214138
  %v5950 = vadd.f32 %v5934, 1.4214138
  %v5951 = vadd.f32 %v5935, 1.4214138
  %v5952 = vadd.f32 %v5936, 1.4214138
  %v5953 = vadd.f32 %v5937, 1.4214138
  %v5954 = vadd.f32 %v5938, 1.4214138
  %v5955 = vadd.f32 %v5939, 1.4214138
  %v5956 = vadd.f32 %v5940, 1.4214138
  %v5957 = vadd.f32 %v5941, 1.4214138
  %v5958 = vadd.f32 %v5942, 1.4214138
  %v5959 = vadd.f32 %v5943, 1.4214138
  %v5960 = vadd.f32 %v5944, 1.4214138
  %v5961 = vadd.f32 %v5945, 1.4214138
  %v5962 = vmul.f32 %v5946, %v5672
  %v5963 = vmul.f32 %v5947, %v5687
  %v5964 = vmul.f32 %v5948, %v5702
  %v5965 = vmul.f32 %v5949, %v5717
  %v5966 = vmul.f32 %v5950, %v5732
  %v5967 = vmul.f32 %v5951, %v5747
  %v5968 = vmul.f32 %v5952, %v5762
  %v5969 = vmul.f32 %v5953, %v5777
  %v5970 = vmul.f32 %v5954, %v5792
  %v5971 = vmul.f32 %v5955, %v5807
  %v5972 = vmul.f32 %v5956, %v5822
  %v5973 = vmul.f32 %v5957, %v5837
  %v5974 = vmul.f32 %v5958, %v5852
  %v5975 = vmul.f32 %v5959, %v5867
  %v5976 = vmul.f32 %v5960, %v5882
  %v5977 = vmul.f32 %v5961, %v5897
  %v5978 = vadd.f32 %v5962, -0.28449672
  %v5979 = vadd.f32 %v5963, -0.28449672
  %v5980 = vadd.f32 %v5964, -0.28449672
  %v5981 = vadd.f32 %v5965, -0.28449672
  %v5982 = vadd.f32 %v5966, -0.28449672
  %v5983 = vadd.f32 %v5967, -0.28449672
  %v5984 = vadd.f32 %v5968, -0.28449672
  %v5985 = vadd.f32 %v5969, -0.28449672
  %v5986 = vadd.f32 %v5970, -0.28449672
  %v5987 = vadd.f32 %v5971, -0.28449672
  %v5988 = vadd.f32 %v5972, -0.28449672
  %v5989 = vadd.f32 %v5973, -0.28449672
  %v5990 = vadd.f32 %v5974, -0.28449672
  %v5991 = vadd.f32 %v5975, -0.28449672
  %v5992 = vadd.f32 %v5976, -0.28449672
  %v5993 = vadd.f32 %v5977, -0.28449672
  %v5994 = vmul.f32 %v5978, %v5672
  %v5995 = vmul.f32 %v5979, %v5687
  %v5996 = vmul.f32 %v5980, %v5702
  %v5997 = vmul.f32 %v5981, %v5717
  %v5998 = vmul.f32 %v5982, %v5732
  %v5999 = vmul.f32 %v5983, %v5747
  %v6000 = vmul.f32 %v5984, %v5762
  %v6001 = vmul.f32 %v5985, %v5777
  %v6002 = vmul.f32 %v5986, %v5792
  %v6003 = vmul.f32 %v5987, %v5807
  %v6004 = vmul.f32 %v5988, %v5822
  %v6005 = vmul.f32 %v5989, %v5837
  %v6006 = vmul.f32 %v5990, %v5852
  %v6007 = vmul.f32 %v5991, %v5867
  %v6008 = vmul.f32 %v5992, %v5882
  %v6009 = vmul.f32 %v5993, %v5897
  %v6010 = vadd.f32 %v5994, 0.2548296
  %v6011 = vadd.f32 %v5995, 0.2548296
  %v6012 = vadd.f32 %v5996, 0.2548296
  %v6013 = vadd.f32 %v5997, 0.2548296
  %v6014 = vadd.f32 %v5998, 0.2548296
  %v6015 = vadd.f32 %v5999, 0.2548296
  %v6016 = vadd.f32 %v6000, 0.2548296
  %v6017 = vadd.f32 %v6001, 0.2548296
  %v6018 = vadd.f32 %v6002, 0.2548296
  %v6019 = vadd.f32 %v6003, 0.2548296
  %v6020 = vadd.f32 %v6004, 0.2548296
  %v6021 = vadd.f32 %v6005, 0.2548296
  %v6022 = vadd.f32 %v6006, 0.2548296
  %v6023 = vadd.f32 %v6007, 0.2548296
  %v6024 = vadd.f32 %v6008, 0.2548296
  %v6025 = vadd.f32 %v6009, 0.2548296
  %v6026 = vmul.f32 %v6010, %v5672
  %v6027 = vmul.f32 %v6011, %v5687
  %v6028 = vmul.f32 %v6012, %v5702
  %v6029 = vmul.f32 %v6013, %v5717
  %v6030 = vmul.f32 %v6014, %v5732
  %v6031 = vmul.f32 %v6015, %v5747
  %v6032 = vmul.f32 %v6016, %v5762
  %v6033 = vmul.f32 %v6017, %v5777
  %v6034 = vmul.f32 %v6018, %v5792
  %v6035 = vmul.f32 %v6019, %v5807
  %v6036 = vmul.f32 %v6020, %v5822
  %v6037 = vmul.f32 %v6021, %v5837
  %v6038 = vmul.f32 %v6022, %v5852
  %v6039 = vmul.f32 %v6023, %v5867
  %v6040 = vmul.f32 %v6024, %v5882
  %v6041 = vmul.f32 %v6025, %v5897
  %v6042 = vsub.f32 0.0, %v5610
  %v6043 = vsub.f32 0.0, %v5611
  %v6044 = vsub.f32 0.0, %v5612
  %v6045 = vsub.f32 0.0, %v5613
  %v6046 = vsub.f32 0.0, %v5614
  %v6047 = vsub.f32 0.0, %v5615
  %v6048 = vsub.f32 0.0, %v5616
  %v6049 = vsub.f32 0.0, %v5617
  %v6050 = vsub.f32 0.0, %v5618
  %v6051 = vsub.f32 0.0, %v5619
  %v6052 = vsub.f32 0.0, %v5620
  %v6053 = vsub.f32 0.0, %v5621
  %v6054 = vsub.f32 0.0, %v5622
  %v6055 = vsub.f32 0.0, %v5623
  %v6056 = vsub.f32 0.0, %v5624
  %v6057 = vsub.f32 0.0, %v5625
  %v6058 = vmul.f32 %v6042, %v5610
  %v6059 = vmul.f32 %v6043, %v5611
  %v6060 = vmul.f32 %v6044, %v5612
  %v6061 = vmul.f32 %v6045, %v5613
  %v6062 = vmul.f32 %v6046, %v5614
  %v6063 = vmul.f32 %v6047, %v5615
  %v6064 = vmul.f32 %v6048, %v5616
  %v6065 = vmul.f32 %v6049, %v5617
  %v6066 = vmul.f32 %v6050, %v5618
  %v6067 = vmul.f32 %v6051, %v5619
  %v6068 = vmul.f32 %v6052, %v5620
  %v6069 = vmul.f32 %v6053, %v5621
  %v6070 = vmul.f32 %v6054, %v5622
  %v6071 = vmul.f32 %v6055, %v5623
  %v6072 = vmul.f32 %v6056, %v5624
  %v6073 = vmul.f32 %v6057, %v5625
  %v6074 = vmul.f32 %v6058, 1.442695
  %v6075 = vpow.pop %v6074
  %v6076 = vmul.f32 %v6059, 1.442695
  %v6077 = vpow.pop %v6076
  %v6078 = vmul.f32 %v6060, 1.442695
  %v6079 = vpow.pop %v6078
  %v6080 = vmul.f32 %v6061, 1.442695
  %v6081 = vpow.pop %v6080
  %v6082 = vmul.f32 %v6062, 1.442695
  %v6083 = vpow.pop %v6082
  %v6084 = vmul.f32 %v6063, 1.442695
  %v6085 = vpow.pop %v6084
  %v6086 = vmul.f32 %v6064, 1.442695
  %v6087 = vpow.pop %v6086
  %v6088 = vmul.f32 %v6065, 1.442695
  %v6089 = vpow.pop %v6088
  %v6090 = vmul.f32 %v6066, 1.442695
  %v6091 = vpow.pop %v6090
  %v6092 = vmul.f32 %v6067, 1.442695
  %v6093 = vpow.pop %v6092
  %v6094 = vmul.f32 %v6068, 1.442695
  %v6095 = vpow.pop %v6094
  %v6096 = vmul.f32 %v6069, 1.442695
  %v6097 = vpow.pop %v6096
  %v6098 = vmul.f32 %v6070, 1.442695
  %v6099 = vpow.pop %v6098
  %v6100 = vmul.f32 %v6071, 1.442695
  %v6101 = vpow.pop %v6100
  %v6102 = vmul.f32 %v6072, 1.442695
  %v6103 = vpow.pop %v6102
  %v6104 = vmul.f32 %v6073, 1.442695
  %v6105 = vpow.pop %v6104
  %v6106 = vmul.f32 %v6026, %v6075
  %v6107 = vmul.f32 %v6027, %v6077
  %v6108 = vmul.f32 %v6028, %v6079
  %v6109 = vmul.f32 %v6029, %v6081
  %v6110 = vmul.f32 %v6030, %v6083
  %v6111 = vmul.f32 %v6031, %v6085
  %v6112 = vmul.f32 %v6032, %v6087
  %v6113 = vmul.f32 %v6033, %v6089
  %v6114 = vmul.f32 %v6034, %v6091
  %v6115 = vmul.f32 %v6035, %v6093
  %v6116 = vmul.f32 %v6036, %v6095
  %v6117 = vmul.f32 %v6037, %v6097
  %v6118 = vmul.f32 %v6038, %v6099
  %v6119 = vmul.f32 %v6039, %v6101
  %v6120 = vmul.f32 %v6040, %v6103
  %v6121 = vmul.f32 %v6041, %v6105
  %v6122 = vsub.f32 1.0, %v6106
  %v6123 = vsub.f32 1.0, %v6107
  %v6124 = vsub.f32 1.0, %v6108
  %v6125 = vsub.f32 1.0, %v6109
  %v6126 = vsub.f32 1.0, %v6110
  %v6127 = vsub.f32 1.0, %v6111
  %v6128 = vsub.f32 1.0, %v6112
  %v6129 = vsub.f32 1.0, %v6113
  %v6130 = vsub.f32 1.0, %v6114
  %v6131 = vsub.f32 1.0, %v6115
  %v6132 = vsub.f32 1.0, %v6116
  %v6133 = vsub.f32 1.0, %v6117
  %v6134 = vsub.f32 1.0, %v6118
  %v6135 = vsub.f32 1.0, %v6119
  %v6136 = vsub.f32 1.0, %v6120
  %v6137 = vsub.f32 1.0, %v6121
  %vm6138 = vcmp.ge.f32.partialorder %v5594, 0.0
  %vm6139 = vcmp.ge.f32.partialorder %v5595, 0.0
  %vm6140 = vcmp.ge.f32.partialorder %v5596, 0.0
  %vm6141 = vcmp.ge.f32.partialorder %v5597, 0.0
  %vm6142 = vcmp.ge.f32.partialorder %v5598, 0.0
  %vm6143 = vcmp.ge.f32.partialorder %v5599, 0.0
  %vm6144 = vcmp.ge.f32.partialorder %v5600, 0.0
  %vm6145 = vcmp.ge.f32.partialorder %v5601, 0.0
  %vm6146 = vcmp.ge.f32.partialorder %v5602, 0.0
  %vm6147 = vcmp.ge.f32.partialorder %v5603, 0.0
  %vm6148 = vcmp.ge.f32.partialorder %v5604, 0.0
  %vm6149 = vcmp.ge.f32.partialorder %v5605, 0.0
  %vm6150 = vcmp.ge.f32.partialorder %v5606, 0.0
  %vm6151 = vcmp.ge.f32.partialorder %v5607, 0.0
  %vm6152 = vcmp.ge.f32.partialorder %v5608, 0.0
  %vm6153 = vcmp.ge.f32.partialorder %v5609, 0.0
  %v6154 = vsub.f32 0.0, %v6122
  %v6155 = vsub.f32 0.0, %v6123
  %v6156 = vsub.f32 0.0, %v6124
  %v6157 = vsub.f32 0.0, %v6125
  %v6158 = vsub.f32 0.0, %v6126
  %v6159 = vsub.f32 0.0, %v6127
  %v6160 = vsub.f32 0.0, %v6128
  %v6161 = vsub.f32 0.0, %v6129
  %v6162 = vsub.f32 0.0, %v6130
  %v6163 = vsub.f32 0.0, %v6131
  %v6164 = vsub.f32 0.0, %v6132
  %v6165 = vsub.f32 0.0, %v6133
  %v6166 = vsub.f32 0.0, %v6134
  %v6167 = vsub.f32 0.0, %v6135
  %v6168 = vsub.f32 0.0, %v6136
  %v6169 = vsub.f32 0.0, %v6137
  %v6170 = vsel %vm6138, %v6122, %v6154
  %v6171 = vsel %vm6139, %v6123, %v6155
  %v6172 = vsel %vm6140, %v6124, %v6156
  %v6173 = vsel %vm6141, %v6125, %v6157
  %v6174 = vsel %vm6142, %v6126, %v6158
  %v6175 = vsel %vm6143, %v6127, %v6159
  %v6176 = vsel %vm6144, %v6128, %v6160
  %v6177 = vsel %vm6145, %v6129, %v6161
  %v6178 = vsel %vm6146, %v6130, %v6162
  %v6179 = vsel %vm6147, %v6131, %v6163
  %v6180 = vsel %vm6148, %v6132, %v6164
  %v6181 = vsel %vm6149, %v6133, %v6165
  %v6182 = vsel %vm6150, %v6134, %v6166
  %v6183 = vsel %vm6151, %v6135, %v6167
  %v6184 = vsel %vm6152, %v6136, %v6168
  %v6185 = vsel %vm6153, %v6137, %v6169
  %v6186 = vadd.f32 %v6170, 1.0
  %v6187 = vadd.f32 %v6171, 1.0
  %v6188 = vadd.f32 %v6172, 1.0
  %v6189 = vadd.f32 %v6173, 1.0
  %v6190 = vadd.f32 %v6174, 1.0
  %v6191 = vadd.f32 %v6175, 1.0
  %v6192 = vadd.f32 %v6176, 1.0
  %v6193 = vadd.f32 %v6177, 1.0
  %v6194 = vadd.f32 %v6178, 1.0
  %v6195 = vadd.f32 %v6179, 1.0
  %v6196 = vadd.f32 %v6180, 1.0
  %v6197 = vadd.f32 %v6181, 1.0
  %v6198 = vadd.f32 %v6182, 1.0
  %v6199 = vadd.f32 %v6183, 1.0
  %v6200 = vadd.f32 %v6184, 1.0
  %v6201 = vadd.f32 %v6185, 1.0
  %v6202 = vmul.f32 %v5578, %v6186
  %v6203 = vmul.f32 %v5579, %v6187
  %v6204 = vmul.f32 %v5580, %v6188
  %v6205 = vmul.f32 %v5581, %v6189
  %v6206 = vmul.f32 %v5582, %v6190
  %v6207 = vmul.f32 %v5583, %v6191
  %v6208 = vmul.f32 %v5584, %v6192
  %v6209 = vmul.f32 %v5585, %v6193
  %v6210 = vmul.f32 %v5586, %v6194
  %v6211 = vmul.f32 %v5587, %v6195
  %v6212 = vmul.f32 %v5588, %v6196
  %v6213 = vmul.f32 %v5589, %v6197
  %v6214 = vmul.f32 %v5590, %v6198
  %v6215 = vmul.f32 %v5591, %v6199
  %v6216 = vmul.f32 %v5592, %v6200
  %v6217 = vmul.f32 %v5593, %v6201
  %v6218 = vld [vmem:[%s12] sm:$0xff]
  %v6219 = vld [vmem:[%s12 + $0x8] sm:$0xff]
  %v6220 = vld [vmem:[%s12 + $0x10] sm:$0xff]
  %v6221 = vld [vmem:[%s12 + $0x18] sm:$0xff]
  %v6222 = vld [vmem:[%s12 + $0x20] sm:$0xff]
  %v6223 = vld [vmem:[%s12 + $0x28] sm:$0xff]
  %v6224 = vld [vmem:[%s12 + $0x30] sm:$0xff]
  %v6225 = vld [vmem:[%s12 + $0x38] sm:$0xff]
  %v6226 = vld [vmem:[%s12 + $0x40] sm:$0xff]
  %v6227 = vld [vmem:[%s12 + $0x48] sm:$0xff]
  %v6228 = vld [vmem:[%s12 + $0x50] sm:$0xff]
  %v6229 = vld [vmem:[%s12 + $0x58] sm:$0xff]
  %v6230 = vld [vmem:[%s12 + $0x60] sm:$0xff]
  %v6231 = vld [vmem:[%s12 + $0x68] sm:$0xff]
  %v6232 = vld [vmem:[%s12 + $0x70] sm:$0xff]
  %v6233 = vld [vmem:[%s12 + $0x78] sm:$0xff]
  %v6234 = vld [vmem:[%s13] sm:$0x1]
  %v6236 = vperm.slane %v6234, 0
  %6238 = vmatpush.msra.mxu0 %v6233
  %6239 = vmatpush.msra.mxu0 %v6232
  %6240 = vmatpush.msra.mxu0 %v6231
  %6241 = vmatpush.msra.mxu0 %v6230
  %6242 = vmatpush.msra.mxu0 %v6229
  %6243 = vmatpush.msra.mxu0 %v6228
  %6244 = vmatpush.msra.mxu0 %v6227
  %6245 = vmatpush.msra.mxu0 %v6226
  %6246 = vmatpush.msra.mxu0 %v6225
  %6247 = vmatpush.msra.mxu0 %v6224
  %6248 = vmatpush.msra.mxu0 %v6223
  %6249 = vmatpush.msra.mxu0 %v6222
  %6250 = vmatpush.msra.mxu0 %v6221
  %6251 = vmatpush.msra.mxu0 %v6220
  %6252 = vmatpush.msra.mxu0 %v6219
  %6253 = vmatpush.msra.mxu0 %v6218
  %6254 = vmatmul.f32.gmra.mxu0 %v6202
  %v6255 = vpop.f32.mrf.mxu0
  %v6256 = vadd.f32 %v6236, %v6255
  %6257 = vmatmul.f32.gmra.mxu0 %v6203
  %v6258 = vpop.f32.mrf.mxu0
  %v6259 = vadd.f32 %v6236, %v6258
  %6260 = vmatmul.f32.gmra.mxu0 %v6204
  %v6261 = vpop.f32.mrf.mxu0
  %v6262 = vadd.f32 %v6236, %v6261
  %6263 = vmatmul.f32.gmra.mxu0 %v6205
  %v6264 = vpop.f32.mrf.mxu0
  %v6265 = vadd.f32 %v6236, %v6264
  %6266 = vmatmul.f32.gmra.mxu0 %v6206
  %v6267 = vpop.f32.mrf.mxu0
  %v6268 = vadd.f32 %v6236, %v6267
  %6269 = vmatmul.f32.gmra.mxu0 %v6207
  %v6270 = vpop.f32.mrf.mxu0
  %v6271 = vadd.f32 %v6236, %v6270
  %6272 = vmatmul.f32.gmra.mxu0 %v6208
  %v6273 = vpop.f32.mrf.mxu0
  %v6274 = vadd.f32 %v6236, %v6273
  %6275 = vmatmul.f32.gmra.mxu0 %v6209
  %v6276 = vpop.f32.mrf.mxu0
  %v6277 = vadd.f32 %v6236, %v6276
  %6278 = vmatmul.f32.gmra.mxu0 %v6210
  %v6279 = vpop.f32.mrf.mxu0
  %v6280 = vadd.f32 %v6236, %v6279
  %6281 = vmatmul.f32.gmra.mxu0 %v6211
  %v6282 = vpop.f32.mrf.mxu0
  %v6283 = vadd.f32 %v6236, %v6282
  %6284 = vmatmul.f32.gmra.mxu0 %v6212
  %v6285 = vpop.f32.mrf.mxu0
  %v6286 = vadd.f32 %v6236, %v6285
  %6287 = vmatmul.f32.gmra.mxu0 %v6213
  %v6288 = vpop.f32.mrf.mxu0
  %v6289 = vadd.f32 %v6236, %v6288
  %6290 = vmatmul.f32.gmra.mxu0 %v6214
  %v6291 = vpop.f32.mrf.mxu0
  %v6292 = vadd.f32 %v6236, %v6291
  %6293 = vmatmul.f32.gmra.mxu0 %v6215
  %v6294 = vpop.f32.mrf.mxu0
  %v6295 = vadd.f32 %v6236, %v6294
  %6296 = vmatmul.f32.gmra.mxu0 %v6216
  %v6297 = vpop.f32.mrf.mxu0
  %v6298 = vadd.f32 %v6236, %v6297
  %6299 = vmatmul.f32.gmra.mxu0 %v6217
  %v6300 = vpop.f32.mrf.mxu0
  %v6301 = vadd.f32 %v6236, %v6300
  %6302 = vdwg.mxu0
  %v6303 = vadd.f32 %v5049, %v6256
  %v6304 = vadd.f32 %v5050, %v6259
  %v6305 = vadd.f32 %v5051, %v6262
  %v6306 = vadd.f32 %v5052, %v6265
  %v6307 = vadd.f32 %v5053, %v6268
  %v6308 = vadd.f32 %v5054, %v6271
  %v6309 = vadd.f32 %v5055, %v6274
  %v6310 = vadd.f32 %v5056, %v6277
  %v6311 = vadd.f32 %v5057, %v6280
  %v6312 = vadd.f32 %v5058, %v6283
  %v6313 = vadd.f32 %v5059, %v6286
  %v6314 = vadd.f32 %v5060, %v6289
  %v6315 = vadd.f32 %v5061, %v6292
  %v6316 = vadd.f32 %v5062, %v6295
  %v6317 = vadd.f32 %v5063, %v6298
  %v6318 = vadd.f32 %v5064, %v6301
  %6319 = vst.msk [vmem:[%s14] sm:$0xff] %vm63, %v6303
  %6320 = vst.msk [vmem:[%s14 + $0x8] sm:$0xff] %vm63, %v6304
  %6321 = vst.msk [vmem:[%s14 + $0x10] sm:$0xff] %vm63, %v6305
  %6322 = vst.msk [vmem:[%s14 + $0x18] sm:$0xff] %vm63, %v6306
  %6323 = vst.msk [vmem:[%s14 + $0x20] sm:$0xff] %vm63, %v6307
  %6324 = vst.msk [vmem:[%s14 + $0x28] sm:$0xff] %vm63, %v6308
  %6325 = vst.msk [vmem:[%s14 + $0x30] sm:$0xff] %vm63, %v6309
  %6326 = vst.msk [vmem:[%s14 + $0x38] sm:$0xff] %vm63, %v6310
  %6327 = vst.msk [vmem:[%s14 + $0x40] sm:$0xff] %vm63, %v6311
  %6328 = vst.msk [vmem:[%s14 + $0x48] sm:$0xff] %vm63, %v6312
  %6329 = vst.msk [vmem:[%s14 + $0x50] sm:$0xff] %vm63, %v6313
  %6330 = vst.msk [vmem:[%s14 + $0x58] sm:$0xff] %vm63, %v6314
  %6331 = vst.msk [vmem:[%s14 + $0x60] sm:$0xff] %vm63, %v6315
  %6332 = vst.msk [vmem:[%s14 + $0x68] sm:$0xff] %vm63, %v6316
  %6333 = vst.msk [vmem:[%s14 + $0x70] sm:$0xff] %vm63, %v6317
  %6334 = vst.msk [vmem:[%s14 + $0x78] sm:$0xff] %vm63, %v6318
  // Predicated region
  $region58: #{swin_block_forward.1} parent=0 // pred_check
    _
  $region59: #{swin_block_forward.1} parent=0 // pred_check_branch
    %6336 = sbr.rel (0) target = $region61
  $region60: #{swin_block_forward.1} parent=0 // pred_region
    _
  $region61: #{swin_block_forward.1} parent=0 // pred_fallthru
    _
  // Predicated region
  $region62: #{swin_block_forward.1} parent=0 // pred_check
    _
  $region63: #{swin_block_forward.1} parent=0 // pred_check_branch
    %6338 = sbr.rel (0) target = $region65
  $region64: #{swin_block_forward.1} parent=0 // pred_region
    _
  $region65: #{swin_block_forward.1} parent=0 // pred_fallthru
    _

</llo_original>
